<compile_context>
chip_gen: v7x
topology: tpu7x:2x2x1
jax: 0.10.0
libtpu: 0.0.40
codegen_flags: <defaults>
</compile_context>

<pallas_src>
import functools

import numpy as np

import jax
import jax.numpy as jnp
from jax.experimental import pallas as pl
from jax.experimental.pallas import tpu as pltpu


# --------------------------------------------------------------------------
# helpers
# --------------------------------------------------------------------------
def _round_up(x, m):
    return (x + m - 1) // m * m


_VMEM_LIMIT = 32 * 1024 * 1024  # explicit scoped-VMEM cap; tiles here are only a few MB,
                                # safe on v5e/v6e (128 MiB) and v7x (64 MiB).


# --------------------------------------------------------------------------
# Pallas kernels
# --------------------------------------------------------------------------
def _linear_kernel(x_ref, w_ref, b_ref, *rest, relu, dropout_p):
    """One M-tile of: dropout(relu(x @ w + b)).  x/w are bf16, accumulate in f32."""
    if dropout_p > 0.0:
        bits_ref, o_ref = rest
    else:
        (o_ref,) = rest

    y = jnp.dot(x_ref[...], w_ref[...], preferred_element_type=jnp.float32)
    y = y + b_ref[...]                      # (1, OCp) broadcasts over rows
    if relu:
        y = jnp.maximum(y, 0.0)
    if dropout_p > 0.0:
        # inverted dropout: single unsigned compare against p * 2^32 (no float convert).
        thresh = np.uint32(min(int(round(dropout_p * (2 ** 32))), 2 ** 32 - 1))
        keep = bits_ref[...] >= thresh
        y = jnp.where(keep, y * (1.0 / (1.0 - dropout_p)), 0.0)
    o_ref[...] = y.astype(o_ref.dtype)


def _maxpool_kernel(*refs):
    """Pairwise maximum tree over the K*K shifted window views (pure VPU)."""
    *in_refs, o_ref = refs
    vals = [r[...] for r in in_refs]
    while len(vals) > 1:
        nxt = [jnp.maximum(a, b) for a, b in zip(vals[0::2], vals[1::2])]
        if len(vals) % 2:
            nxt.append(vals[-1])
        vals = nxt
    o_ref[...] = vals[0]


# --------------------------------------------------------------------------
# Wrappers
# --------------------------------------------------------------------------
def linear_pallas(x, w_pad, b_pad, *, relu, dropout_p, out_cols, rng_key=None, tm=256):
    """x: (M, K)  @  w_pad: (K, OCp bf16, OCp % 128 == 0)  + b_pad: (1, OCp).

    Tiled over M with a "parallel" grid; returns (M, out_cols) f32.
    """
    M, K = x.shape
    OCp = w_pad.shape[1]

    tm = min(tm, _round_up(max(M, 1), 16))          # bf16 sublane tile = 16
    Mpad = _round_up(M, tm)
    xb = x.astype(jnp.bfloat16)
    if Mpad != M:
        xb = jnp.pad(xb, ((0, Mpad - M), (0, 0)))
    grid = (Mpad // tm,)

    in_specs = [
        pl.BlockSpec((tm, K), lambda i: (i, 0)),     # activation tile (bf16)
        pl.BlockSpec((K, OCp), lambda i: (0, 0)),    # resident weight block (bf16)
        pl.BlockSpec((1, OCp), lambda i: (0, 0)),    # bias (f32)
    ]
    args = [xb, w_pad, b_pad]
    if dropout_p > 0.0:
        bits = jax.random.bits(rng_key, (Mpad, OCp), dtype=jnp.uint32)
        in_specs.append(pl.BlockSpec((tm, OCp), lambda i: (i, 0)))
        args.append(bits)

    kernel = functools.partial(_linear_kernel, relu=relu, dropout_p=float(dropout_p))
    out = pl.pallas_call(
        kernel,
        grid=grid,
        in_specs=in_specs,
        out_specs=pl.BlockSpec((tm, OCp), lambda i: (i, 0)),
        out_shape=jax.ShapeDtypeStruct((Mpad, OCp), jnp.float32),
        compiler_params=pltpu.CompilerParams(
            dimension_semantics=("parallel",),
            vmem_limit_bytes=_VMEM_LIMIT,
        ),
    )(*args)
    return out[:M, :out_cols]


def im2col_nhwc(x, kh, kw, stride, pad):
    """NHWC -> (N*OH*OW, KH*KW*IC) patches, ordered (kh, kw, ic)."""
    N, H, W, C = x.shape
    xp = jnp.pad(x, ((0, 0), (pad, pad), (pad, pad), (0, 0)))
    OH = (H + 2 * pad - kh) // stride + 1
    OW = (W + 2 * pad - kw) // stride + 1
    cols = []
    for i in range(kh):
        for j in range(kw):
            cols.append(
                xp[:, i:i + stride * (OH - 1) + 1:stride,
                      j:j + stride * (OW - 1) + 1:stride, :]
            )  # (N, OH, OW, C)
    p = jnp.stack(cols, axis=3)                       # (N, OH, OW, KH*KW, C)
    p = p.reshape(N * OH * OW, kh * kw * C)
    return p, OH, OW


def conv_relu_dropout(x, wmat, b, *, oc, k, stride, pad, rng_key, dropout_p):
    """Conv2d(NHWC) + ReLU + Dropout as one fused tiled Pallas matmul."""
    n = x.shape[0]
    patches, OH, OW = im2col_nhwc(x, k, k, stride, pad)
    out = linear_pallas(patches, wmat, b, relu=True, dropout_p=dropout_p,
                        rng_key=rng_key, out_cols=oc)
    return out.reshape(n, OH, OW, oc)


def maxpool2d_pallas(x, k=3, s=2):
    """MaxPool2d(kernel_size=3, stride=2) on NHWC via a VPU max tree."""
    N, H, W, C = x.shape
    OH = (H - k) // s + 1
    OW = (W - k) // s + 1
    M = N * OH * OW
    views = []
    for i in range(k):
        for j in range(k):
            v = x[:, i:i + s * (OH - 1) + 1:s, j:j + s * (OW - 1) + 1:s, :]
            views.append(v.reshape(M, C))

    tm = min(512, _round_up(M, 8))
    Mpad = _round_up(M, tm)
    if Mpad != M:
        views = [jnp.pad(v, ((0, Mpad - M), (0, 0))) for v in views]
    grid = (Mpad // tm,)
    spec = pl.BlockSpec((tm, C), lambda i: (i, 0))

    out = pl.pallas_call(
        _maxpool_kernel,
        grid=grid,
        in_specs=[spec] * (k * k),
        out_specs=spec,
        out_shape=jax.ShapeDtypeStruct((Mpad, C), x.dtype),
        compiler_params=pltpu.CompilerParams(
            dimension_semantics=("parallel",),
            vmem_limit_bytes=_VMEM_LIMIT,
        ),
    )(*views)
    return out[:M].reshape(N, OH, OW, C)


# --------------------------------------------------------------------------
# Parameters (deterministic, scaled-down AlexNet)
# --------------------------------------------------------------------------
# (out_ch, kernel, stride, pad) — kernels/strides/pads identical to torchvision AlexNet
CONV_CFG = [
    (16, 11, 4, 2),
    (24, 5, 1, 2),
    (32, 3, 1, 1),
    (32, 3, 1, 1),
    (32, 3, 1, 1),
]
HIDDEN = 64        # stands in for 4096
NUM_FEATURES = 16  # stands in for num_features=4096
DROPOUT_P = 0.5
LANE = 128


def init_params(key, in_ch, flat_dim):
    """Weights are stored pre-transposed, OC-padded to 128, and cast to bf16."""
    params = {}
    keys = jax.random.split(key, 16)
    ki = 0
    c_in = in_ch
    for li, (oc, k, _, _) in enumerate(CONV_CFG):
        fan_in = c_in * k * k
        w = jax.random.normal(keys[ki], (oc, c_in, k, k), jnp.float32) / jnp.sqrt(fan_in)
        b = jax.random.normal(keys[ki + 1], (oc,), jnp.float32) * 0.01
        ocp = _round_up(oc, LANE)
        wmat = jnp.transpose(w, (2, 3, 1, 0)).reshape(k * k * c_in, oc)  # (kh,kw,ic) x oc
        wmat = jnp.pad(wmat, ((0, 0), (0, ocp - oc))).astype(jnp.bfloat16)
        bpad = jnp.pad(b, (0, ocp - oc)).reshape(1, ocp)
        params[f"conv{li}"] = (wmat, bpad)
        ki += 2
        c_in = oc
    dims = [(flat_dim, HIDDEN), (HIDDEN, HIDDEN), (HIDDEN, NUM_FEATURES)]
    for li, (din, dout) in enumerate(dims):
        w = jax.random.normal(keys[ki], (din, dout), jnp.float32) / jnp.sqrt(din)
        b = jax.random.normal(keys[ki + 1], (dout,), jnp.float32) * 0.01
        dp = _round_up(dout, LANE)
        wp = jnp.pad(w, ((0, 0), (0, dp - dout))).astype(jnp.bfloat16)
        bp = jnp.pad(b, (0, dp - dout)).reshape(1, dp)
        params[f"fc{li}"] = (wp, bp)
        ki += 2
    return params


# --------------------------------------------------------------------------
# Forward pass (do_dropout == True branch of the PyTorch module)
# --------------------------------------------------------------------------
def probabilistic_alexnet_forward(params, x_nchw, rng_key, dropout_p=DROPOUT_P):
    keys = jax.random.split(rng_key, 7)            # fresh dropout mask per call / layer
    x = jnp.transpose(x_nchw, (0, 2, 3, 1))        # NCHW -> NHWC once
    for li, (oc, k, s, p) in enumerate(CONV_CFG):
        w, b = params[f"conv{li}"]
        x = conv_relu_dropout(x, w, b, oc=oc, k=k, stride=s, pad=p,
                              rng_key=keys[li], dropout_p=dropout_p)
        if li in (0, 1, 4):                        # features[2], [5], [12]
            x = maxpool2d_pallas(x)
    n = x.shape[0]
    # match torch's x.view(N, -1) flatten order (C, H, W); final map is tiny
    x = jnp.transpose(x, (0, 3, 1, 2)).reshape(n, -1)
    w, b = params["fc0"]
    x = linear_pallas(x, w, b, relu=True, dropout_p=dropout_p,
                      rng_key=keys[5], out_cols=HIDDEN)
    w, b = params["fc1"]
    x = linear_pallas(x, w, b, relu=True, dropout_p=dropout_p,
                      rng_key=keys[6], out_cols=HIDDEN)
    w, b = params["fc2"]
    x = linear_pallas(x, w, b, relu=False, dropout_p=0.0, out_cols=NUM_FEATURES)
    return x


def _feature_output_hw(h, w):
    """Trace the spatial sizes through the (scaled) AlexNet feature stack."""
    def conv(sz, k, s, p):
        return (sz + 2 * p - k) // s + 1
    def pool(sz):
        return (sz - 3) // 2 + 1
    h, w = conv(h, 11, 4, 2), conv(w, 11, 4, 2)
    h, w = pool(h), pool(w)
    h, w = conv(h, 5, 1, 2), conv(w, 5, 1, 2)
    h, w = pool(h), pool(w)
    # three 3x3 pad-1 convs preserve size
    h, w = pool(h), pool(w)
    return h, w


if __name__ == "__main__":
    key = jax.random.PRNGKey(0)
    k_x, k_p, k_drop = jax.random.split(key, 3)

    N, C, H, W = 2, 3, 63, 127
    x = jax.random.normal(k_x, (N, C, H, W), jnp.float32)

    fh, fw = _feature_output_hw(H, W)
    flat_dim = CONV_CFG[-1][0] * fh * fw
    params = init_params(k_p, C, flat_dim)

    fwd = jax.jit(probabilistic_alexnet_forward)
    out = fwd(params, x, k_drop)
    out = jax.block_until_ready(out)

    assert out.shape == (N, NUM_FEATURES), out.shape
    assert bool(jnp.all(jnp.isfinite(out)))
    print("KERNEL_OK")
</pallas_src>

<mosaic_0001>
module attributes {stable_mosaic.version = 11 : i64} {
  func.func @_linear_kernel(%arg0: i32, %arg1: memref<256x363xbf16, #tpu.memory_space<vmem>>, %arg2: memref<363x128xbf16, #tpu.memory_space<vmem>>, %arg3: memref<1x128xf32, #tpu.memory_space<vmem>>, %arg4: memref<256x128xi32, #tpu.memory_space<vmem>>, %arg5: memref<256x128xf32, #tpu.memory_space<vmem>>) attributes {dimension_semantics = [#tpu.dimension_semantics<parallel>], iteration_bounds = array<i64: 4>, scalar_prefetch = 0 : i64, scratch_operands = 0 : i64, tpu.core_type = #tpu.core_type<tc>, window_params = [{transform_indices = @transform_0, window_bounds = array<i64: 256, 363>}, {pipeline_mode = #tpu.pipeline_mode<synchronous>, transform_indices = @transform_1, window_bounds = array<i64: 363, 128>}, {pipeline_mode = #tpu.pipeline_mode<synchronous>, transform_indices = @transform_2, window_bounds = array<i64: 1, 128>}, {transform_indices = @transform_3, window_bounds = array<i64: 256, 128>}, {transform_indices = @transform_4, window_bounds = array<i64: 256, 128>}]} {
    %c0 = arith.constant 0 : index
    %c0_0 = arith.constant 0 : index
    %0 = vector.load %arg1[%c0, %c0_0] : memref<256x363xbf16, #tpu.memory_space<vmem>>, vector<256x363xbf16>
    %c0_1 = arith.constant 0 : index
    %c0_2 = arith.constant 0 : index
    %1 = vector.load %arg2[%c0_1, %c0_2] : memref<363x128xbf16, #tpu.memory_space<vmem>>, vector<363x128xbf16>
    %cst = arith.constant dense<0.000000e+00> : vector<256x128xf32>
    %2 = tpu.matmul %0, %1, %cst {dimension_numbers = #tpu.dot_dimension_numbers<[1], [0], [0], [1], [0, 0, 1, 1], [], []>} : vector<256x363xbf16>, vector<363x128xbf16>, vector<256x128xf32> -> vector<256x128xf32>
    %c0_3 = arith.constant 0 : index
    %c0_4 = arith.constant 0 : index
    %3 = vector.load %arg3[%c0_3, %c0_4] : memref<1x128xf32, #tpu.memory_space<vmem>>, vector<1x128xf32>
    %4 = vector.broadcast %3 : vector<1x128xf32> to vector<256x128xf32>
    %5 = arith.addf %2, %4 : vector<256x128xf32>
    %cst_5 = arith.constant 0.000000e+00 : f32
    %6 = vector.broadcast %cst_5 : f32 to vector<256x128xf32>
    %7 = arith.maximumf %5, %6 : vector<256x128xf32>
    %c0_6 = arith.constant 0 : index
    %c0_7 = arith.constant 0 : index
    %8 = vector.load %arg4[%c0_6, %c0_7] : memref<256x128xi32, #tpu.memory_space<vmem>>, vector<256x128xi32>
    %c-2147483648_i32 = arith.constant -2147483648 : i32
    %9 = vector.broadcast %c-2147483648_i32 : i32 to vector<256x128xi32>
    %10 = arith.cmpi uge, %8, %9 : vector<256x128xi32>
    %cst_8 = arith.constant 2.000000e+00 : f32
    %11 = vector.broadcast %cst_8 : f32 to vector<256x128xf32>
    %12 = arith.mulf %7, %11 : vector<256x128xf32>
    %cst_9 = arith.constant 0.000000e+00 : f32
    %13 = vector.broadcast %cst_9 : f32 to vector<256x128xf32>
    %14 = arith.select %10, %12, %13 : vector<256x128xi1>, vector<256x128xf32>
    %c0_10 = arith.constant 0 : index
    %c0_11 = arith.constant 0 : index
    %15 = vector.load %arg5[%c0_10, %c0_11] : memref<256x128xf32, #tpu.memory_space<vmem>>, vector<256x128xf32>
    tpu.vector_store %arg5[%c0_10, %c0_11], %14 {strides = array<i32>} : memref<256x128xf32, #tpu.memory_space<vmem>>, vector<256x128xf32>,
    return
  }
  func.func @transform_0(%arg0: i32) -> (i32, i32) {
    %c0_i32 = arith.constant 0 : i32
    %c0_i32_0 = arith.constant 0 : i32
    return %arg0, %c0_i32 : i32, i32
  }
  func.func @transform_1(%arg0: i32) -> (i32, i32) {
    %c0_i32 = arith.constant 0 : i32
    %c0_i32_0 = arith.constant 0 : i32
    %c0_i32_1 = arith.constant 0 : i32
    return %c0_i32, %c0_i32_0 : i32, i32
  }
  func.func @transform_2(%arg0: i32) -> (i32, i32) {
    %c0_i32 = arith.constant 0 : i32
    %c0_i32_0 = arith.constant 0 : i32
    %c0_i32_1 = arith.constant 0 : i32
    return %c0_i32, %c0_i32_0 : i32, i32
  }
  func.func @transform_3(%arg0: i32) -> (i32, i32) {
    %c0_i32 = arith.constant 0 : i32
    %c0_i32_0 = arith.constant 0 : i32
    return %arg0, %c0_i32 : i32, i32
  }
  func.func @transform_4(%arg0: i32) -> (i32, i32) {
    %c0_i32 = arith.constant 0 : i32
    %c0_i32_0 = arith.constant 0 : i32
    return %arg0, %c0_i32 : i32, i32
  }
}

module attributes {stable_mosaic.version = 11 : i64} {
  func.func @_maxpool_kernel(%arg0: i32, %arg1: memref<216x16xf32, #tpu.memory_space<vmem>>, %arg2: memref<216x16xf32, #tpu.memory_space<vmem>>, %arg3: memref<216x16xf32, #tpu.memory_space<vmem>>, %arg4: memref<216x16xf32, #tpu.memory_space<vmem>>, %arg5: memref<216x16xf32, #tpu.memory_space<vmem>>, %arg6: memref<216x16xf32, #tpu.memory_space<vmem>>, %arg7: memref<216x16xf32, #tpu.memory_space<vmem>>, %arg8: memref<216x16xf32, #tpu.memory_space<vmem>>, %arg9: memref<216x16xf32, #tpu.memory_space<vmem>>, %arg10: memref<216x16xf32, #tpu.memory_space<vmem>>) attributes {dimension_semantics = [#tpu.dimension_semantics<parallel>], iteration_bounds = array<i64: 1>, scalar_prefetch = 0 : i64, scratch_operands = 0 : i64, tpu.core_type = #tpu.core_type<tc>, window_params = [{transform_indices = @transform_0, window_bounds = array<i64: 216, 16>}, {transform_indices = @transform_1, window_bounds = array<i64: 216, 16>}, {transform_indices = @transform_2, window_bounds = array<i64: 216, 16>}, {transform_indices = @transform_3, window_bounds = array<i64: 216, 16>}, {transform_indices = @transform_4, window_bounds = array<i64: 216, 16>}, {transform_indices = @transform_5, window_bounds = array<i64: 216, 16>}, {transform_indices = @transform_6, window_bounds = array<i64: 216, 16>}, {transform_indices = @transform_7, window_bounds = array<i64: 216, 16>}, {transform_indices = @transform_8, window_bounds = array<i64: 216, 16>}, {transform_indices = @transform_9, window_bounds = array<i64: 216, 16>}]} {
    %c0 = arith.constant 0 : index
    %c0_0 = arith.constant 0 : index
    %0 = vector.load %arg1[%c0, %c0_0] : memref<216x16xf32, #tpu.memory_space<vmem>>, vector<216x16xf32>
    %c0_1 = arith.constant 0 : index
    %c0_2 = arith.constant 0 : index
    %1 = vector.load %arg2[%c0_1, %c0_2] : memref<216x16xf32, #tpu.memory_space<vmem>>, vector<216x16xf32>
    %c0_3 = arith.constant 0 : index
    %c0_4 = arith.constant 0 : index
    %2 = vector.load %arg3[%c0_3, %c0_4] : memref<216x16xf32, #tpu.memory_space<vmem>>, vector<216x16xf32>
    %c0_5 = arith.constant 0 : index
    %c0_6 = arith.constant 0 : index
    %3 = vector.load %arg4[%c0_5, %c0_6] : memref<216x16xf32, #tpu.memory_space<vmem>>, vector<216x16xf32>
    %c0_7 = arith.constant 0 : index
    %c0_8 = arith.constant 0 : index
    %4 = vector.load %arg5[%c0_7, %c0_8] : memref<216x16xf32, #tpu.memory_space<vmem>>, vector<216x16xf32>
    %c0_9 = arith.constant 0 : index
    %c0_10 = arith.constant 0 : index
    %5 = vector.load %arg6[%c0_9, %c0_10] : memref<216x16xf32, #tpu.memory_space<vmem>>, vector<216x16xf32>
    %c0_11 = arith.constant 0 : index
    %c0_12 = arith.constant 0 : index
    %6 = vector.load %arg7[%c0_11, %c0_12] : memref<216x16xf32, #tpu.memory_space<vmem>>, vector<216x16xf32>
    %c0_13 = arith.constant 0 : index
    %c0_14 = arith.constant 0 : index
    %7 = vector.load %arg8[%c0_13, %c0_14] : memref<216x16xf32, #tpu.memory_space<vmem>>, vector<216x16xf32>
    %c0_15 = arith.constant 0 : index
    %c0_16 = arith.constant 0 : index
    %8 = vector.load %arg9[%c0_15, %c0_16] : memref<216x16xf32, #tpu.memory_space<vmem>>, vector<216x16xf32>
    %9 = arith.maximumf %0, %1 : vector<216x16xf32>
    %10 = arith.maximumf %2, %3 : vector<216x16xf32>
    %11 = arith.maximumf %4, %5 : vector<216x16xf32>
    %12 = arith.maximumf %6, %7 : vector<216x16xf32>
    %13 = arith.maximumf %9, %10 : vector<216x16xf32>
    %14 = arith.maximumf %11, %12 : vector<216x16xf32>
    %15 = arith.maximumf %13, %14 : vector<216x16xf32>
    %16 = arith.maximumf %15, %8 : vector<216x16xf32>
    %c0_17 = arith.constant 0 : index
    %c0_18 = arith.constant 0 : index
    %17 = vector.load %arg10[%c0_17, %c0_18] : memref<216x16xf32, #tpu.memory_space<vmem>>, vector<216x16xf32>
    tpu.vector_store %arg10[%c0_17, %c0_18], %16 {strides = array<i32>} : memref<216x16xf32, #tpu.memory_space<vmem>>, vector<216x16xf32>,
    return
  }
  func.func @transform_0(%arg0: i32) -> (i32, i32) {
    %c0_i32 = arith.constant 0 : i32
    %c0_i32_0 = arith.constant 0 : i32
    return %arg0, %c0_i32 : i32, i32
  }
  func.func @transform_1(%arg0: i32) -> (i32, i32) {
    %c0_i32 = arith.constant 0 : i32
    %c0_i32_0 = arith.constant 0 : i32
    return %arg0, %c0_i32 : i32, i32
  }
  func.func @transform_2(%arg0: i32) -> (i32, i32) {
    %c0_i32 = arith.constant 0 : i32
    %c0_i32_0 = arith.constant 0 : i32
    return %arg0, %c0_i32 : i32, i32
  }
  func.func @transform_3(%arg0: i32) -> (i32, i32) {
    %c0_i32 = arith.constant 0 : i32
    %c0_i32_0 = arith.constant 0 : i32
    return %arg0, %c0_i32 : i32, i32
  }
  func.func @transform_4(%arg0: i32) -> (i32, i32) {
    %c0_i32 = arith.constant 0 : i32
    %c0_i32_0 = arith.constant 0 : i32
    return %arg0, %c0_i32 : i32, i32
  }
  func.func @transform_5(%arg0: i32) -> (i32, i32) {
    %c0_i32 = arith.constant 0 : i32
    %c0_i32_0 = arith.constant 0 : i32
    return %arg0, %c0_i32 : i32, i32
  }
  func.func @transform_6(%arg0: i32) -> (i32, i32) {
    %c0_i32 = arith.constant 0 : i32
    %c0_i32_0 = arith.constant 0 : i32
    return %arg0, %c0_i32 : i32, i32
  }
  func.func @transform_7(%arg0: i32) -> (i32, i32) {
    %c0_i32 = arith.constant 0 : i32
    %c0_i32_0 = arith.constant 0 : i32
    return %arg0, %c0_i32 : i32, i32
  }
  func.func @transform_8(%arg0: i32) -> (i32, i32) {
    %c0_i32 = arith.constant 0 : i32
    %c0_i32_0 = arith.constant 0 : i32
    return %arg0, %c0_i32 : i32, i32
  }
  func.func @transform_9(%arg0: i32) -> (i32, i32) {
    %c0_i32 = arith.constant 0 : i32
    %c0_i32_0 = arith.constant 0 : i32
    return %arg0, %c0_i32 : i32, i32
  }
}

module attributes {stable_mosaic.version = 11 : i64} {
  func.func @_linear_kernel(%arg0: i32, %arg1: memref<224x400xbf16, #tpu.memory_space<vmem>>, %arg2: memref<400x128xbf16, #tpu.memory_space<vmem>>, %arg3: memref<1x128xf32, #tpu.memory_space<vmem>>, %arg4: memref<224x128xi32, #tpu.memory_space<vmem>>, %arg5: memref<224x128xf32, #tpu.memory_space<vmem>>) attributes {dimension_semantics = [#tpu.dimension_semantics<parallel>], iteration_bounds = array<i64: 1>, scalar_prefetch = 0 : i64, scratch_operands = 0 : i64, tpu.core_type = #tpu.core_type<tc>, window_params = [{transform_indices = @transform_0, window_bounds = array<i64: 224, 400>}, {pipeline_mode = #tpu.pipeline_mode<synchronous>, transform_indices = @transform_1, window_bounds = array<i64: 400, 128>}, {pipeline_mode = #tpu.pipeline_mode<synchronous>, transform_indices = @transform_2, window_bounds = array<i64: 1, 128>}, {transform_indices = @transform_3, window_bounds = array<i64: 224, 128>}, {transform_indices = @transform_4, window_bounds = array<i64: 224, 128>}]} {
    %c0 = arith.constant 0 : index
    %c0_0 = arith.constant 0 : index
    %0 = vector.load %arg1[%c0, %c0_0] : memref<224x400xbf16, #tpu.memory_space<vmem>>, vector<224x400xbf16>
    %c0_1 = arith.constant 0 : index
    %c0_2 = arith.constant 0 : index
    %1 = vector.load %arg2[%c0_1, %c0_2] : memref<400x128xbf16, #tpu.memory_space<vmem>>, vector<400x128xbf16>
    %cst = arith.constant dense<0.000000e+00> : vector<224x128xf32>
    %2 = tpu.matmul %0, %1, %cst {dimension_numbers = #tpu.dot_dimension_numbers<[1], [0], [0], [1], [0, 0, 1, 1], [], []>} : vector<224x400xbf16>, vector<400x128xbf16>, vector<224x128xf32> -> vector<224x128xf32>
    %c0_3 = arith.constant 0 : index
    %c0_4 = arith.constant 0 : index
    %3 = vector.load %arg3[%c0_3, %c0_4] : memref<1x128xf32, #tpu.memory_space<vmem>>, vector<1x128xf32>
    %4 = vector.broadcast %3 : vector<1x128xf32> to vector<224x128xf32>
    %5 = arith.addf %2, %4 : vector<224x128xf32>
    %cst_5 = arith.constant 0.000000e+00 : f32
    %6 = vector.broadcast %cst_5 : f32 to vector<224x128xf32>
    %7 = arith.maximumf %5, %6 : vector<224x128xf32>
    %c0_6 = arith.constant 0 : index
    %c0_7 = arith.constant 0 : index
    %8 = vector.load %arg4[%c0_6, %c0_7] : memref<224x128xi32, #tpu.memory_space<vmem>>, vector<224x128xi32>
    %c-2147483648_i32 = arith.constant -2147483648 : i32
    %9 = vector.broadcast %c-2147483648_i32 : i32 to vector<224x128xi32>
    %10 = arith.cmpi uge, %8, %9 : vector<224x128xi32>
    %cst_8 = arith.constant 2.000000e+00 : f32
    %11 = vector.broadcast %cst_8 : f32 to vector<224x128xf32>
    %12 = arith.mulf %7, %11 : vector<224x128xf32>
    %cst_9 = arith.constant 0.000000e+00 : f32
    %13 = vector.broadcast %cst_9 : f32 to vector<224x128xf32>
    %14 = arith.select %10, %12, %13 : vector<224x128xi1>, vector<224x128xf32>
    %c0_10 = arith.constant 0 : index
    %c0_11 = arith.constant 0 : index
    %15 = vector.load %arg5[%c0_10, %c0_11] : memref<224x128xf32, #tpu.memory_space<vmem>>, vector<224x128xf32>
    tpu.vector_store %arg5[%c0_10, %c0_11], %14 {strides = array<i32>} : memref<224x128xf32, #tpu.memory_space<vmem>>, vector<224x128xf32>,
    return
  }
  func.func @transform_0(%arg0: i32) -> (i32, i32) {
    %c0_i32 = arith.constant 0 : i32
    %c0_i32_0 = arith.constant 0 : i32
    return %arg0, %c0_i32 : i32, i32
  }
  func.func @transform_1(%arg0: i32) -> (i32, i32) {
    %c0_i32 = arith.constant 0 : i32
    %c0_i32_0 = arith.constant 0 : i32
    %c0_i32_1 = arith.constant 0 : i32
    return %c0_i32, %c0_i32_0 : i32, i32
  }
  func.func @transform_2(%arg0: i32) -> (i32, i32) {
    %c0_i32 = arith.constant 0 : i32
    %c0_i32_0 = arith.constant 0 : i32
    %c0_i32_1 = arith.constant 0 : i32
    return %c0_i32, %c0_i32_0 : i32, i32
  }
  func.func @transform_3(%arg0: i32) -> (i32, i32) {
    %c0_i32 = arith.constant 0 : i32
    %c0_i32_0 = arith.constant 0 : i32
    return %arg0, %c0_i32 : i32, i32
  }
  func.func @transform_4(%arg0: i32) -> (i32, i32) {
    %c0_i32 = arith.constant 0 : i32
    %c0_i32_0 = arith.constant 0 : i32
    return %arg0, %c0_i32 : i32, i32
  }
}

module attributes {stable_mosaic.version = 11 : i64} {
  func.func @_maxpool_kernel(%arg0: i32, %arg1: memref<48x24xf32, #tpu.memory_space<vmem>>, %arg2: memref<48x24xf32, #tpu.memory_space<vmem>>, %arg3: memref<48x24xf32, #tpu.memory_space<vmem>>, %arg4: memref<48x24xf32, #tpu.memory_space<vmem>>, %arg5: memref<48x24xf32, #tpu.memory_space<vmem>>, %arg6: memref<48x24xf32, #tpu.memory_space<vmem>>, %arg7: memref<48x24xf32, #tpu.memory_space<vmem>>, %arg8: memref<48x24xf32, #tpu.memory_space<vmem>>, %arg9: memref<48x24xf32, #tpu.memory_space<vmem>>, %arg10: memref<48x24xf32, #tpu.memory_space<vmem>>) attributes {dimension_semantics = [#tpu.dimension_semantics<parallel>], iteration_bounds = array<i64: 1>, scalar_prefetch = 0 : i64, scratch_operands = 0 : i64, tpu.core_type = #tpu.core_type<tc>, window_params = [{transform_indices = @transform_0, window_bounds = array<i64: 48, 24>}, {transform_indices = @transform_1, window_bounds = array<i64: 48, 24>}, {transform_indices = @transform_2, window_bounds = array<i64: 48, 24>}, {transform_indices = @transform_3, window_bounds = array<i64: 48, 24>}, {transform_indices = @transform_4, window_bounds = array<i64: 48, 24>}, {transform_indices = @transform_5, window_bounds = array<i64: 48, 24>}, {transform_indices = @transform_6, window_bounds = array<i64: 48, 24>}, {transform_indices = @transform_7, window_bounds = array<i64: 48, 24>}, {transform_indices = @transform_8, window_bounds = array<i64: 48, 24>}, {transform_indices = @transform_9, window_bounds = array<i64: 48, 24>}]} {
    %c0 = arith.constant 0 : index
    %c0_0 = arith.constant 0 : index
    %0 = vector.load %arg1[%c0, %c0_0] : memref<48x24xf32, #tpu.memory_space<vmem>>, vector<48x24xf32>
    %c0_1 = arith.constant 0 : index
    %c0_2 = arith.constant 0 : index
    %1 = vector.load %arg2[%c0_1, %c0_2] : memref<48x24xf32, #tpu.memory_space<vmem>>, vector<48x24xf32>
    %c0_3 = arith.constant 0 : index
    %c0_4 = arith.constant 0 : index
    %2 = vector.load %arg3[%c0_3, %c0_4] : memref<48x24xf32, #tpu.memory_space<vmem>>, vector<48x24xf32>
    %c0_5 = arith.constant 0 : index
    %c0_6 = arith.constant 0 : index
    %3 = vector.load %arg4[%c0_5, %c0_6] : memref<48x24xf32, #tpu.memory_space<vmem>>, vector<48x24xf32>
    %c0_7 = arith.constant 0 : index
    %c0_8 = arith.constant 0 : index
    %4 = vector.load %arg5[%c0_7, %c0_8] : memref<48x24xf32, #tpu.memory_space<vmem>>, vector<48x24xf32>
    %c0_9 = arith.constant 0 : index
    %c0_10 = arith.constant 0 : index
    %5 = vector.load %arg6[%c0_9, %c0_10] : memref<48x24xf32, #tpu.memory_space<vmem>>, vector<48x24xf32>
    %c0_11 = arith.constant 0 : index
    %c0_12 = arith.constant 0 : index
    %6 = vector.load %arg7[%c0_11, %c0_12] : memref<48x24xf32, #tpu.memory_space<vmem>>, vector<48x24xf32>
    %c0_13 = arith.constant 0 : index
    %c0_14 = arith.constant 0 : index
    %7 = vector.load %arg8[%c0_13, %c0_14] : memref<48x24xf32, #tpu.memory_space<vmem>>, vector<48x24xf32>
    %c0_15 = arith.constant 0 : index
    %c0_16 = arith.constant 0 : index
    %8 = vector.load %arg9[%c0_15, %c0_16] : memref<48x24xf32, #tpu.memory_space<vmem>>, vector<48x24xf32>
    %9 = arith.maximumf %0, %1 : vector<48x24xf32>
    %10 = arith.maximumf %2, %3 : vector<48x24xf32>
    %11 = arith.maximumf %4, %5 : vector<48x24xf32>
    %12 = arith.maximumf %6, %7 : vector<48x24xf32>
    %13 = arith.maximumf %9, %10 : vector<48x24xf32>
    %14 = arith.maximumf %11, %12 : vector<48x24xf32>
    %15 = arith.maximumf %13, %14 : vector<48x24xf32>
    %16 = arith.maximumf %15, %8 : vector<48x24xf32>
    %c0_17 = arith.constant 0 : index
    %c0_18 = arith.constant 0 : index
    %17 = vector.load %arg10[%c0_17, %c0_18] : memref<48x24xf32, #tpu.memory_space<vmem>>, vector<48x24xf32>
    tpu.vector_store %arg10[%c0_17, %c0_18], %16 {strides = array<i32>} : memref<48x24xf32, #tpu.memory_space<vmem>>, vector<48x24xf32>,
    return
  }
  func.func @transform_0(%arg0: i32) -> (i32, i32) {
    %c0_i32 = arith.constant 0 : i32
    %c0_i32_0 = arith.constant 0 : i32
    return %arg0, %c0_i32 : i32, i32
  }
  func.func @transform_1(%arg0: i32) -> (i32, i32) {
    %c0_i32 = arith.constant 0 : i32
    %c0_i32_0 = arith.constant 0 : i32
    return %arg0, %c0_i32 : i32, i32
  }
  func.func @transform_2(%arg0: i32) -> (i32, i32) {
    %c0_i32 = arith.constant 0 : i32
    %c0_i32_0 = arith.constant 0 : i32
    return %arg0, %c0_i32 : i32, i32
  }
  func.func @transform_3(%arg0: i32) -> (i32, i32) {
    %c0_i32 = arith.constant 0 : i32
    %c0_i32_0 = arith.constant 0 : i32
    return %arg0, %c0_i32 : i32, i32
  }
  func.func @transform_4(%arg0: i32) -> (i32, i32) {
    %c0_i32 = arith.constant 0 : i32
    %c0_i32_0 = arith.constant 0 : i32
    return %arg0, %c0_i32 : i32, i32
  }
  func.func @transform_5(%arg0: i32) -> (i32, i32) {
    %c0_i32 = arith.constant 0 : i32
    %c0_i32_0 = arith.constant 0 : i32
    return %arg0, %c0_i32 : i32, i32
  }
  func.func @transform_6(%arg0: i32) -> (i32, i32) {
    %c0_i32 = arith.constant 0 : i32
    %c0_i32_0 = arith.constant 0 : i32
    return %arg0, %c0_i32 : i32, i32
  }
  func.func @transform_7(%arg0: i32) -> (i32, i32) {
    %c0_i32 = arith.constant 0 : i32
    %c0_i32_0 = arith.constant 0 : i32
    return %arg0, %c0_i32 : i32, i32
  }
  func.func @transform_8(%arg0: i32) -> (i32, i32) {
    %c0_i32 = arith.constant 0 : i32
    %c0_i32_0 = arith.constant 0 : i32
    return %arg0, %c0_i32 : i32, i32
  }
  func.func @transform_9(%arg0: i32) -> (i32, i32) {
    %c0_i32 = arith.constant 0 : i32
    %c0_i32_0 = arith.constant 0 : i32
    return %arg0, %c0_i32 : i32, i32
  }
}

module attributes {stable_mosaic.version = 11 : i64} {
  func.func @_linear_kernel(%arg0: i32, %arg1: memref<48x216xbf16, #tpu.memory_space<vmem>>, %arg2: memref<216x128xbf16, #tpu.memory_space<vmem>>, %arg3: memref<1x128xf32, #tpu.memory_space<vmem>>, %arg4: memref<48x128xi32, #tpu.memory_space<vmem>>, %arg5: memref<48x128xf32, #tpu.memory_space<vmem>>) attributes {dimension_semantics = [#tpu.dimension_semantics<parallel>], iteration_bounds = array<i64: 1>, scalar_prefetch = 0 : i64, scratch_operands = 0 : i64, tpu.core_type = #tpu.core_type<tc>, window_params = [{transform_indices = @transform_0, window_bounds = array<i64: 48, 216>}, {pipeline_mode = #tpu.pipeline_mode<synchronous>, transform_indices = @transform_1, window_bounds = array<i64: 216, 128>}, {pipeline_mode = #tpu.pipeline_mode<synchronous>, transform_indices = @transform_2, window_bounds = array<i64: 1, 128>}, {transform_indices = @transform_3, window_bounds = array<i64: 48, 128>}, {transform_indices = @transform_4, window_bounds = array<i64: 48, 128>}]} {
    %c0 = arith.constant 0 : index
    %c0_0 = arith.constant 0 : index
    %0 = vector.load %arg1[%c0, %c0_0] : memref<48x216xbf16, #tpu.memory_space<vmem>>, vector<48x216xbf16>
    %c0_1 = arith.constant 0 : index
    %c0_2 = arith.constant 0 : index
    %1 = vector.load %arg2[%c0_1, %c0_2] : memref<216x128xbf16, #tpu.memory_space<vmem>>, vector<216x128xbf16>
    %cst = arith.constant dense<0.000000e+00> : vector<48x128xf32>
    %2 = tpu.matmul %0, %1, %cst {dimension_numbers = #tpu.dot_dimension_numbers<[1], [0], [0], [1], [0, 0, 1, 1], [], []>} : vector<48x216xbf16>, vector<216x128xbf16>, vector<48x128xf32> -> vector<48x128xf32>
    %c0_3 = arith.constant 0 : index
    %c0_4 = arith.constant 0 : index
    %3 = vector.load %arg3[%c0_3, %c0_4] : memref<1x128xf32, #tpu.memory_space<vmem>>, vector<1x128xf32>
    %4 = vector.broadcast %3 : vector<1x128xf32> to vector<48x128xf32>
    %5 = arith.addf %2, %4 : vector<48x128xf32>
    %cst_5 = arith.constant 0.000000e+00 : f32
    %6 = vector.broadcast %cst_5 : f32 to vector<48x128xf32>
    %7 = arith.maximumf %5, %6 : vector<48x128xf32>
    %c0_6 = arith.constant 0 : index
    %c0_7 = arith.constant 0 : index
    %8 = vector.load %arg4[%c0_6, %c0_7] : memref<48x128xi32, #tpu.memory_space<vmem>>, vector<48x128xi32>
    %c-2147483648_i32 = arith.constant -2147483648 : i32
    %9 = vector.broadcast %c-2147483648_i32 : i32 to vector<48x128xi32>
    %10 = arith.cmpi uge, %8, %9 : vector<48x128xi32>
    %cst_8 = arith.constant 2.000000e+00 : f32
    %11 = vector.broadcast %cst_8 : f32 to vector<48x128xf32>
    %12 = arith.mulf %7, %11 : vector<48x128xf32>
    %cst_9 = arith.constant 0.000000e+00 : f32
    %13 = vector.broadcast %cst_9 : f32 to vector<48x128xf32>
    %14 = arith.select %10, %12, %13 : vector<48x128xi1>, vector<48x128xf32>
    %c0_10 = arith.constant 0 : index
    %c0_11 = arith.constant 0 : index
    %15 = vector.load %arg5[%c0_10, %c0_11] : memref<48x128xf32, #tpu.memory_space<vmem>>, vector<48x128xf32>
    tpu.vector_store %arg5[%c0_10, %c0_11], %14 {strides = array<i32>} : memref<48x128xf32, #tpu.memory_space<vmem>>, vector<48x128xf32>,
    return
  }
  func.func @transform_0(%arg0: i32) -> (i32, i32) {
    %c0_i32 = arith.constant 0 : i32
    %c0_i32_0 = arith.constant 0 : i32
    return %arg0, %c0_i32 : i32, i32
  }
  func.func @transform_1(%arg0: i32) -> (i32, i32) {
    %c0_i32 = arith.constant 0 : i32
    %c0_i32_0 = arith.constant 0 : i32
    %c0_i32_1 = arith.constant 0 : i32
    return %c0_i32, %c0_i32_0 : i32, i32
  }
  func.func @transform_2(%arg0: i32) -> (i32, i32) {
    %c0_i32 = arith.constant 0 : i32
    %c0_i32_0 = arith.constant 0 : i32
    %c0_i32_1 = arith.constant 0 : i32
    return %c0_i32, %c0_i32_0 : i32, i32
  }
  func.func @transform_3(%arg0: i32) -> (i32, i32) {
    %c0_i32 = arith.constant 0 : i32
    %c0_i32_0 = arith.constant 0 : i32
    return %arg0, %c0_i32 : i32, i32
  }
  func.func @transform_4(%arg0: i32) -> (i32, i32) {
    %c0_i32 = arith.constant 0 : i32
    %c0_i32_0 = arith.constant 0 : i32
    return %arg0, %c0_i32 : i32, i32
  }
}

module attributes {stable_mosaic.version = 11 : i64} {
  func.func @_linear_kernel(%arg0: i32, %arg1: memref<48x288xbf16, #tpu.memory_space<vmem>>, %arg2: memref<288x128xbf16, #tpu.memory_space<vmem>>, %arg3: memref<1x128xf32, #tpu.memory_space<vmem>>, %arg4: memref<48x128xi32, #tpu.memory_space<vmem>>, %arg5: memref<48x128xf32, #tpu.memory_space<vmem>>) attributes {dimension_semantics = [#tpu.dimension_semantics<parallel>], iteration_bounds = array<i64: 1>, scalar_prefetch = 0 : i64, scratch_operands = 0 : i64, tpu.core_type = #tpu.core_type<tc>, window_params = [{transform_indices = @transform_0, window_bounds = array<i64: 48, 288>}, {pipeline_mode = #tpu.pipeline_mode<synchronous>, transform_indices = @transform_1, window_bounds = array<i64: 288, 128>}, {pipeline_mode = #tpu.pipeline_mode<synchronous>, transform_indices = @transform_2, window_bounds = array<i64: 1, 128>}, {transform_indices = @transform_3, window_bounds = array<i64: 48, 128>}, {transform_indices = @transform_4, window_bounds = array<i64: 48, 128>}]} {
    %c0 = arith.constant 0 : index
    %c0_0 = arith.constant 0 : index
    %0 = vector.load %arg1[%c0, %c0_0] : memref<48x288xbf16, #tpu.memory_space<vmem>>, vector<48x288xbf16>
    %c0_1 = arith.constant 0 : index
    %c0_2 = arith.constant 0 : index
    %1 = vector.load %arg2[%c0_1, %c0_2] : memref<288x128xbf16, #tpu.memory_space<vmem>>, vector<288x128xbf16>
    %cst = arith.constant dense<0.000000e+00> : vector<48x128xf32>
    %2 = tpu.matmul %0, %1, %cst {dimension_numbers = #tpu.dot_dimension_numbers<[1], [0], [0], [1], [0, 0, 1, 1], [], []>} : vector<48x288xbf16>, vector<288x128xbf16>, vector<48x128xf32> -> vector<48x128xf32>
    %c0_3 = arith.constant 0 : index
    %c0_4 = arith.constant 0 : index
    %3 = vector.load %arg3[%c0_3, %c0_4] : memref<1x128xf32, #tpu.memory_space<vmem>>, vector<1x128xf32>
    %4 = vector.broadcast %3 : vector<1x128xf32> to vector<48x128xf32>
    %5 = arith.addf %2, %4 : vector<48x128xf32>
    %cst_5 = arith.constant 0.000000e+00 : f32
    %6 = vector.broadcast %cst_5 : f32 to vector<48x128xf32>
    %7 = arith.maximumf %5, %6 : vector<48x128xf32>
    %c0_6 = arith.constant 0 : index
    %c0_7 = arith.constant 0 : index
    %8 = vector.load %arg4[%c0_6, %c0_7] : memref<48x128xi32, #tpu.memory_space<vmem>>, vector<48x128xi32>
    %c-2147483648_i32 = arith.constant -2147483648 : i32
    %9 = vector.broadcast %c-2147483648_i32 : i32 to vector<48x128xi32>
    %10 = arith.cmpi uge, %8, %9 : vector<48x128xi32>
    %cst_8 = arith.constant 2.000000e+00 : f32
    %11 = vector.broadcast %cst_8 : f32 to vector<48x128xf32>
    %12 = arith.mulf %7, %11 : vector<48x128xf32>
    %cst_9 = arith.constant 0.000000e+00 : f32
    %13 = vector.broadcast %cst_9 : f32 to vector<48x128xf32>
    %14 = arith.select %10, %12, %13 : vector<48x128xi1>, vector<48x128xf32>
    %c0_10 = arith.constant 0 : index
    %c0_11 = arith.constant 0 : index
    %15 = vector.load %arg5[%c0_10, %c0_11] : memref<48x128xf32, #tpu.memory_space<vmem>>, vector<48x128xf32>
    tpu.vector_store %arg5[%c0_10, %c0_11], %14 {strides = array<i32>} : memref<48x128xf32, #tpu.memory_space<vmem>>, vector<48x128xf32>,
    return
  }
  func.func @transform_0(%arg0: i32) -> (i32, i32) {
    %c0_i32 = arith.constant 0 : i32
    %c0_i32_0 = arith.constant 0 : i32
    return %arg0, %c0_i32 : i32, i32
  }
  func.func @transform_1(%arg0: i32) -> (i32, i32) {
    %c0_i32 = arith.constant 0 : i32
    %c0_i32_0 = arith.constant 0 : i32
    %c0_i32_1 = arith.constant 0 : i32
    return %c0_i32, %c0_i32_0 : i32, i32
  }
  func.func @transform_2(%arg0: i32) -> (i32, i32) {
    %c0_i32 = arith.constant 0 : i32
    %c0_i32_0 = arith.constant 0 : i32
    %c0_i32_1 = arith.constant 0 : i32
    return %c0_i32, %c0_i32_0 : i32, i32
  }
  func.func @transform_3(%arg0: i32) -> (i32, i32) {
    %c0_i32 = arith.constant 0 : i32
    %c0_i32_0 = arith.constant 0 : i32
    return %arg0, %c0_i32 : i32, i32
  }
  func.func @transform_4(%arg0: i32) -> (i32, i32) {
    %c0_i32 = arith.constant 0 : i32
    %c0_i32_0 = arith.constant 0 : i32
    return %arg0, %c0_i32 : i32, i32
  }
}

module attributes {stable_mosaic.version = 11 : i64} {
  func.func @_maxpool_kernel(%arg0: i32, %arg1: memref<8x32xf32, #tpu.memory_space<vmem>>, %arg2: memref<8x32xf32, #tpu.memory_space<vmem>>, %arg3: memref<8x32xf32, #tpu.memory_space<vmem>>, %arg4: memref<8x32xf32, #tpu.memory_space<vmem>>, %arg5: memref<8x32xf32, #tpu.memory_space<vmem>>, %arg6: memref<8x32xf32, #tpu.memory_space<vmem>>, %arg7: memref<8x32xf32, #tpu.memory_space<vmem>>, %arg8: memref<8x32xf32, #tpu.memory_space<vmem>>, %arg9: memref<8x32xf32, #tpu.memory_space<vmem>>, %arg10: memref<8x32xf32, #tpu.memory_space<vmem>>) attributes {dimension_semantics = [#tpu.dimension_semantics<parallel>], iteration_bounds = array<i64: 1>, scalar_prefetch = 0 : i64, scratch_operands = 0 : i64, tpu.core_type = #tpu.core_type<tc>, window_params = [{transform_indices = @transform_0, window_bounds = array<i64: 8, 32>}, {transform_indices = @transform_1, window_bounds = array<i64: 8, 32>}, {transform_indices = @transform_2, window_bounds = array<i64: 8, 32>}, {transform_indices = @transform_3, window_bounds = array<i64: 8, 32>}, {transform_indices = @transform_4, window_bounds = array<i64: 8, 32>}, {transform_indices = @transform_5, window_bounds = array<i64: 8, 32>}, {transform_indices = @transform_6, window_bounds = array<i64: 8, 32>}, {transform_indices = @transform_7, window_bounds = array<i64: 8, 32>}, {transform_indices = @transform_8, window_bounds = array<i64: 8, 32>}, {transform_indices = @transform_9, window_bounds = array<i64: 8, 32>}]} {
    %c0 = arith.constant 0 : index
    %c0_0 = arith.constant 0 : index
    %0 = vector.load %arg1[%c0, %c0_0] : memref<8x32xf32, #tpu.memory_space<vmem>>, vector<8x32xf32>
    %c0_1 = arith.constant 0 : index
    %c0_2 = arith.constant 0 : index
    %1 = vector.load %arg2[%c0_1, %c0_2] : memref<8x32xf32, #tpu.memory_space<vmem>>, vector<8x32xf32>
    %c0_3 = arith.constant 0 : index
    %c0_4 = arith.constant 0 : index
    %2 = vector.load %arg3[%c0_3, %c0_4] : memref<8x32xf32, #tpu.memory_space<vmem>>, vector<8x32xf32>
    %c0_5 = arith.constant 0 : index
    %c0_6 = arith.constant 0 : index
    %3 = vector.load %arg4[%c0_5, %c0_6] : memref<8x32xf32, #tpu.memory_space<vmem>>, vector<8x32xf32>
    %c0_7 = arith.constant 0 : index
    %c0_8 = arith.constant 0 : index
    %4 = vector.load %arg5[%c0_7, %c0_8] : memref<8x32xf32, #tpu.memory_space<vmem>>, vector<8x32xf32>
    %c0_9 = arith.constant 0 : index
    %c0_10 = arith.constant 0 : index
    %5 = vector.load %arg6[%c0_9, %c0_10] : memref<8x32xf32, #tpu.memory_space<vmem>>, vector<8x32xf32>
    %c0_11 = arith.constant 0 : index
    %c0_12 = arith.constant 0 : index
    %6 = vector.load %arg7[%c0_11, %c0_12] : memref<8x32xf32, #tpu.memory_space<vmem>>, vector<8x32xf32>
    %c0_13 = arith.constant 0 : index
    %c0_14 = arith.constant 0 : index
    %7 = vector.load %arg8[%c0_13, %c0_14] : memref<8x32xf32, #tpu.memory_space<vmem>>, vector<8x32xf32>
    %c0_15 = arith.constant 0 : index
    %c0_16 = arith.constant 0 : index
    %8 = vector.load %arg9[%c0_15, %c0_16] : memref<8x32xf32, #tpu.memory_space<vmem>>, vector<8x32xf32>
    %9 = arith.maximumf %0, %1 : vector<8x32xf32>
    %10 = arith.maximumf %2, %3 : vector<8x32xf32>
    %11 = arith.maximumf %4, %5 : vector<8x32xf32>
    %12 = arith.maximumf %6, %7 : vector<8x32xf32>
    %13 = arith.maximumf %9, %10 : vector<8x32xf32>
    %14 = arith.maximumf %11, %12 : vector<8x32xf32>
    %15 = arith.maximumf %13, %14 : vector<8x32xf32>
    %16 = arith.maximumf %15, %8 : vector<8x32xf32>
    %c0_17 = arith.constant 0 : index
    %c0_18 = arith.constant 0 : index
    %17 = vector.load %arg10[%c0_17, %c0_18] : memref<8x32xf32, #tpu.memory_space<vmem>>, vector<8x32xf32>
    tpu.vector_store %arg10[%c0_17, %c0_18], %16 {strides = array<i32>} : memref<8x32xf32, #tpu.memory_space<vmem>>, vector<8x32xf32>,
    return
  }
  func.func @transform_0(%arg0: i32) -> (i32, i32) {
    %c0_i32 = arith.constant 0 : i32
    %c0_i32_0 = arith.constant 0 : i32
    return %arg0, %c0_i32 : i32, i32
  }
  func.func @transform_1(%arg0: i32) -> (i32, i32) {
    %c0_i32 = arith.constant 0 : i32
    %c0_i32_0 = arith.constant 0 : i32
    return %arg0, %c0_i32 : i32, i32
  }
  func.func @transform_2(%arg0: i32) -> (i32, i32) {
    %c0_i32 = arith.constant 0 : i32
    %c0_i32_0 = arith.constant 0 : i32
    return %arg0, %c0_i32 : i32, i32
  }
  func.func @transform_3(%arg0: i32) -> (i32, i32) {
    %c0_i32 = arith.constant 0 : i32
    %c0_i32_0 = arith.constant 0 : i32
    return %arg0, %c0_i32 : i32, i32
  }
  func.func @transform_4(%arg0: i32) -> (i32, i32) {
    %c0_i32 = arith.constant 0 : i32
    %c0_i32_0 = arith.constant 0 : i32
    return %arg0, %c0_i32 : i32, i32
  }
  func.func @transform_5(%arg0: i32) -> (i32, i32) {
    %c0_i32 = arith.constant 0 : i32
    %c0_i32_0 = arith.constant 0 : i32
    return %arg0, %c0_i32 : i32, i32
  }
  func.func @transform_6(%arg0: i32) -> (i32, i32) {
    %c0_i32 = arith.constant 0 : i32
    %c0_i32_0 = arith.constant 0 : i32
    return %arg0, %c0_i32 : i32, i32
  }
  func.func @transform_7(%arg0: i32) -> (i32, i32) {
    %c0_i32 = arith.constant 0 : i32
    %c0_i32_0 = arith.constant 0 : i32
    return %arg0, %c0_i32 : i32, i32
  }
  func.func @transform_8(%arg0: i32) -> (i32, i32) {
    %c0_i32 = arith.constant 0 : i32
    %c0_i32_0 = arith.constant 0 : i32
    return %arg0, %c0_i32 : i32, i32
  }
  func.func @transform_9(%arg0: i32) -> (i32, i32) {
    %c0_i32 = arith.constant 0 : i32
    %c0_i32_0 = arith.constant 0 : i32
    return %arg0, %c0_i32 : i32, i32
  }
}

module attributes {stable_mosaic.version = 11 : i64} {
  func.func @_linear_kernel(%arg0: i32, %arg1: memref<16x96xbf16, #tpu.memory_space<vmem>>, %arg2: memref<96x128xbf16, #tpu.memory_space<vmem>>, %arg3: memref<1x128xf32, #tpu.memory_space<vmem>>, %arg4: memref<16x128xi32, #tpu.memory_space<vmem>>, %arg5: memref<16x128xf32, #tpu.memory_space<vmem>>) attributes {dimension_semantics = [#tpu.dimension_semantics<parallel>], iteration_bounds = array<i64: 1>, scalar_prefetch = 0 : i64, scratch_operands = 0 : i64, tpu.core_type = #tpu.core_type<tc>, window_params = [{transform_indices = @transform_0, window_bounds = array<i64: 16, 96>}, {pipeline_mode = #tpu.pipeline_mode<synchronous>, transform_indices = @transform_1, window_bounds = array<i64: 96, 128>}, {pipeline_mode = #tpu.pipeline_mode<synchronous>, transform_indices = @transform_2, window_bounds = array<i64: 1, 128>}, {transform_indices = @transform_3, window_bounds = array<i64: 16, 128>}, {transform_indices = @transform_4, window_bounds = array<i64: 16, 128>}]} {
    %c0 = arith.constant 0 : index
    %c0_0 = arith.constant 0 : index
    %0 = vector.load %arg1[%c0, %c0_0] : memref<16x96xbf16, #tpu.memory_space<vmem>>, vector<16x96xbf16>
    %c0_1 = arith.constant 0 : index
    %c0_2 = arith.constant 0 : index
    %1 = vector.load %arg2[%c0_1, %c0_2] : memref<96x128xbf16, #tpu.memory_space<vmem>>, vector<96x128xbf16>
    %cst = arith.constant dense<0.000000e+00> : vector<16x128xf32>
    %2 = tpu.matmul %0, %1, %cst {dimension_numbers = #tpu.dot_dimension_numbers<[1], [0], [0], [1], [0, 0, 1, 1], [], []>} : vector<16x96xbf16>, vector<96x128xbf16>, vector<16x128xf32> -> vector<16x128xf32>
    %c0_3 = arith.constant 0 : index
    %c0_4 = arith.constant 0 : index
    %3 = vector.load %arg3[%c0_3, %c0_4] : memref<1x128xf32, #tpu.memory_space<vmem>>, vector<1x128xf32>
    %4 = vector.broadcast %3 : vector<1x128xf32> to vector<16x128xf32>
    %5 = arith.addf %2, %4 : vector<16x128xf32>
    %cst_5 = arith.constant 0.000000e+00 : f32
    %6 = vector.broadcast %cst_5 : f32 to vector<16x128xf32>
    %7 = arith.maximumf %5, %6 : vector<16x128xf32>
    %c0_6 = arith.constant 0 : index
    %c0_7 = arith.constant 0 : index
    %8 = vector.load %arg4[%c0_6, %c0_7] : memref<16x128xi32, #tpu.memory_space<vmem>>, vector<16x128xi32>
    %c-2147483648_i32 = arith.constant -2147483648 : i32
    %9 = vector.broadcast %c-2147483648_i32 : i32 to vector<16x128xi32>
    %10 = arith.cmpi uge, %8, %9 : vector<16x128xi32>
    %cst_8 = arith.constant 2.000000e+00 : f32
    %11 = vector.broadcast %cst_8 : f32 to vector<16x128xf32>
    %12 = arith.mulf %7, %11 : vector<16x128xf32>
    %cst_9 = arith.constant 0.000000e+00 : f32
    %13 = vector.broadcast %cst_9 : f32 to vector<16x128xf32>
    %14 = arith.select %10, %12, %13 : vector<16x128xi1>, vector<16x128xf32>
    %c0_10 = arith.constant 0 : index
    %c0_11 = arith.constant 0 : index
    %15 = vector.load %arg5[%c0_10, %c0_11] : memref<16x128xf32, #tpu.memory_space<vmem>>, vector<16x128xf32>
    tpu.vector_store %arg5[%c0_10, %c0_11], %14 {strides = array<i32>} : memref<16x128xf32, #tpu.memory_space<vmem>>, vector<16x128xf32>,
    return
  }
  func.func @transform_0(%arg0: i32) -> (i32, i32) {
    %c0_i32 = arith.constant 0 : i32
    %c0_i32_0 = arith.constant 0 : i32
    return %arg0, %c0_i32 : i32, i32
  }
  func.func @transform_1(%arg0: i32) -> (i32, i32) {
    %c0_i32 = arith.constant 0 : i32
    %c0_i32_0 = arith.constant 0 : i32
    %c0_i32_1 = arith.constant 0 : i32
    return %c0_i32, %c0_i32_0 : i32, i32
  }
  func.func @transform_2(%arg0: i32) -> (i32, i32) {
    %c0_i32 = arith.constant 0 : i32
    %c0_i32_0 = arith.constant 0 : i32
    %c0_i32_1 = arith.constant 0 : i32
    return %c0_i32, %c0_i32_0 : i32, i32
  }
  func.func @transform_3(%arg0: i32) -> (i32, i32) {
    %c0_i32 = arith.constant 0 : i32
    %c0_i32_0 = arith.constant 0 : i32
    return %arg0, %c0_i32 : i32, i32
  }
  func.func @transform_4(%arg0: i32) -> (i32, i32) {
    %c0_i32 = arith.constant 0 : i32
    %c0_i32_0 = arith.constant 0 : i32
    return %arg0, %c0_i32 : i32, i32
  }
}

module attributes {stable_mosaic.version = 11 : i64} {
  func.func @_linear_kernel(%arg0: i32, %arg1: memref<16x64xbf16, #tpu.memory_space<vmem>>, %arg2: memref<64x128xbf16, #tpu.memory_space<vmem>>, %arg3: memref<1x128xf32, #tpu.memory_space<vmem>>, %arg4: memref<16x128xi32, #tpu.memory_space<vmem>>, %arg5: memref<16x128xf32, #tpu.memory_space<vmem>>) attributes {dimension_semantics = [#tpu.dimension_semantics<parallel>], iteration_bounds = array<i64: 1>, scalar_prefetch = 0 : i64, scratch_operands = 0 : i64, tpu.core_type = #tpu.core_type<tc>, window_params = [{transform_indices = @transform_0, window_bounds = array<i64: 16, 64>}, {pipeline_mode = #tpu.pipeline_mode<synchronous>, transform_indices = @transform_1, window_bounds = array<i64: 64, 128>}, {pipeline_mode = #tpu.pipeline_mode<synchronous>, transform_indices = @transform_2, window_bounds = array<i64: 1, 128>}, {transform_indices = @transform_3, window_bounds = array<i64: 16, 128>}, {transform_indices = @transform_4, window_bounds = array<i64: 16, 128>}]} {
    %c0 = arith.constant 0 : index
    %c0_0 = arith.constant 0 : index
    %0 = vector.load %arg1[%c0, %c0_0] : memref<16x64xbf16, #tpu.memory_space<vmem>>, vector<16x64xbf16>
    %c0_1 = arith.constant 0 : index
    %c0_2 = arith.constant 0 : index
    %1 = vector.load %arg2[%c0_1, %c0_2] : memref<64x128xbf16, #tpu.memory_space<vmem>>, vector<64x128xbf16>
    %cst = arith.constant dense<0.000000e+00> : vector<16x128xf32>
    %2 = tpu.matmul %0, %1, %cst {dimension_numbers = #tpu.dot_dimension_numbers<[1], [0], [0], [1], [0, 0, 1, 1], [], []>} : vector<16x64xbf16>, vector<64x128xbf16>, vector<16x128xf32> -> vector<16x128xf32>
    %c0_3 = arith.constant 0 : index
    %c0_4 = arith.constant 0 : index
    %3 = vector.load %arg3[%c0_3, %c0_4] : memref<1x128xf32, #tpu.memory_space<vmem>>, vector<1x128xf32>
    %4 = vector.broadcast %3 : vector<1x128xf32> to vector<16x128xf32>
    %5 = arith.addf %2, %4 : vector<16x128xf32>
    %cst_5 = arith.constant 0.000000e+00 : f32
    %6 = vector.broadcast %cst_5 : f32 to vector<16x128xf32>
    %7 = arith.maximumf %5, %6 : vector<16x128xf32>
    %c0_6 = arith.constant 0 : index
    %c0_7 = arith.constant 0 : index
    %8 = vector.load %arg4[%c0_6, %c0_7] : memref<16x128xi32, #tpu.memory_space<vmem>>, vector<16x128xi32>
    %c-2147483648_i32 = arith.constant -2147483648 : i32
    %9 = vector.broadcast %c-2147483648_i32 : i32 to vector<16x128xi32>
    %10 = arith.cmpi uge, %8, %9 : vector<16x128xi32>
    %cst_8 = arith.constant 2.000000e+00 : f32
    %11 = vector.broadcast %cst_8 : f32 to vector<16x128xf32>
    %12 = arith.mulf %7, %11 : vector<16x128xf32>
    %cst_9 = arith.constant 0.000000e+00 : f32
    %13 = vector.broadcast %cst_9 : f32 to vector<16x128xf32>
    %14 = arith.select %10, %12, %13 : vector<16x128xi1>, vector<16x128xf32>
    %c0_10 = arith.constant 0 : index
    %c0_11 = arith.constant 0 : index
    %15 = vector.load %arg5[%c0_10, %c0_11] : memref<16x128xf32, #tpu.memory_space<vmem>>, vector<16x128xf32>
    tpu.vector_store %arg5[%c0_10, %c0_11], %14 {strides = array<i32>} : memref<16x128xf32, #tpu.memory_space<vmem>>, vector<16x128xf32>,
    return
  }
  func.func @transform_0(%arg0: i32) -> (i32, i32) {
    %c0_i32 = arith.constant 0 : i32
    %c0_i32_0 = arith.constant 0 : i32
    return %arg0, %c0_i32 : i32, i32
  }
  func.func @transform_1(%arg0: i32) -> (i32, i32) {
    %c0_i32 = arith.constant 0 : i32
    %c0_i32_0 = arith.constant 0 : i32
    %c0_i32_1 = arith.constant 0 : i32
    return %c0_i32, %c0_i32_0 : i32, i32
  }
  func.func @transform_2(%arg0: i32) -> (i32, i32) {
    %c0_i32 = arith.constant 0 : i32
    %c0_i32_0 = arith.constant 0 : i32
    %c0_i32_1 = arith.constant 0 : i32
    return %c0_i32, %c0_i32_0 : i32, i32
  }
  func.func @transform_3(%arg0: i32) -> (i32, i32) {
    %c0_i32 = arith.constant 0 : i32
    %c0_i32_0 = arith.constant 0 : i32
    return %arg0, %c0_i32 : i32, i32
  }
  func.func @transform_4(%arg0: i32) -> (i32, i32) {
    %c0_i32 = arith.constant 0 : i32
    %c0_i32_0 = arith.constant 0 : i32
    return %arg0, %c0_i32 : i32, i32
  }
}

module attributes {stable_mosaic.version = 11 : i64} {
  func.func @_linear_kernel(%arg0: i32, %arg1: memref<16x64xbf16, #tpu.memory_space<vmem>>, %arg2: memref<64x128xbf16, #tpu.memory_space<vmem>>, %arg3: memref<1x128xf32, #tpu.memory_space<vmem>>, %arg4: memref<16x128xf32, #tpu.memory_space<vmem>>) attributes {dimension_semantics = [#tpu.dimension_semantics<parallel>], iteration_bounds = array<i64: 1>, scalar_prefetch = 0 : i64, scratch_operands = 0 : i64, tpu.core_type = #tpu.core_type<tc>, window_params = [{transform_indices = @transform_0, window_bounds = array<i64: 16, 64>}, {pipeline_mode = #tpu.pipeline_mode<synchronous>, transform_indices = @transform_1, window_bounds = array<i64: 64, 128>}, {pipeline_mode = #tpu.pipeline_mode<synchronous>, transform_indices = @transform_2, window_bounds = array<i64: 1, 128>}, {transform_indices = @transform_3, window_bounds = array<i64: 16, 128>}]} {
    %c0 = arith.constant 0 : index
    %c0_0 = arith.constant 0 : index
    %0 = vector.load %arg1[%c0, %c0_0] : memref<16x64xbf16, #tpu.memory_space<vmem>>, vector<16x64xbf16>
    %c0_1 = arith.constant 0 : index
    %c0_2 = arith.constant 0 : index
    %1 = vector.load %arg2[%c0_1, %c0_2] : memref<64x128xbf16, #tpu.memory_space<vmem>>, vector<64x128xbf16>
    %cst = arith.constant dense<0.000000e+00> : vector<16x128xf32>
    %2 = tpu.matmul %0, %1, %cst {dimension_numbers = #tpu.dot_dimension_numbers<[1], [0], [0], [1], [0, 0, 1, 1], [], []>} : vector<16x64xbf16>, vector<64x128xbf16>, vector<16x128xf32> -> vector<16x128xf32>
    %c0_3 = arith.constant 0 : index
    %c0_4 = arith.constant 0 : index
    %3 = vector.load %arg3[%c0_3, %c0_4] : memref<1x128xf32, #tpu.memory_space<vmem>>, vector<1x128xf32>
    %4 = vector.broadcast %3 : vector<1x128xf32> to vector<16x128xf32>
    %5 = arith.addf %2, %4 : vector<16x128xf32>
    %c0_5 = arith.constant 0 : index
    %c0_6 = arith.constant 0 : index
    %6 = vector.load %arg4[%c0_5, %c0_6] : memref<16x128xf32, #tpu.memory_space<vmem>>, vector<16x128xf32>
    tpu.vector_store %arg4[%c0_5, %c0_6], %5 {strides = array<i32>} : memref<16x128xf32, #tpu.memory_space<vmem>>, vector<16x128xf32>,
    return
  }
  func.func @transform_0(%arg0: i32) -> (i32, i32) {
    %c0_i32 = arith.constant 0 : i32
    %c0_i32_0 = arith.constant 0 : i32
    return %arg0, %c0_i32 : i32, i32
  }
  func.func @transform_1(%arg0: i32) -> (i32, i32) {
    %c0_i32 = arith.constant 0 : i32
    %c0_i32_0 = arith.constant 0 : i32
    %c0_i32_1 = arith.constant 0 : i32
    return %c0_i32, %c0_i32_0 : i32, i32
  }
  func.func @transform_2(%arg0: i32) -> (i32, i32) {
    %c0_i32 = arith.constant 0 : i32
    %c0_i32_0 = arith.constant 0 : i32
    %c0_i32_1 = arith.constant 0 : i32
    return %c0_i32, %c0_i32_0 : i32, i32
  }
  func.func @transform_3(%arg0: i32) -> (i32, i32) {
    %c0_i32 = arith.constant 0 : i32
    %c0_i32_0 = arith.constant 0 : i32
    return %arg0, %c0_i32 : i32, i32
  }
}

</mosaic_0001>

<llo_original>
// kernel: probabilistic_alexnet_forward.13
$region0: #{probabilistic_alexnet_forward.13}
  #allocation0 [shape = 'u32[]', space=smem, size = 0x4, offset = 0x4, fixed_abs, tag = 'smem constant byte address 0x4 - core index']
  #allocation1 [shape = 'u32[144,128]{1,0:T(1,128)}', space=vmem, size = 0x12000, scoped, tag = 'internal scratch']
  %s0 = inlined_call_operand.vmem [shape: bf16[1024,363], index: 0, kind: input, shape index: {}]
  %s1 = inlined_call_operand.vmem [shape: bf16[363,128], index: 1, kind: input, shape index: {}]
  %s2 = inlined_call_operand.vmem [shape: f32[1,128], index: 2, kind: input, shape index: {}]
  %s3 = inlined_call_operand.vmem [shape: u32[1024,128], index: 3, kind: input, shape index: {}]
  %s4 = inlined_call_operand.vmem [shape: f32[1024,128], index: 4, kind: output, shape index: {}]
  %s5 = sld [smem:[#allocation0]]
  $region49: #{probabilistic_alexnet_forward.13} parent=0
    _
  %s7 = ssub.s32 1, %s5
  %s8 = scalar_select 0, %s7, %s5
  loop: start=0, step=1, limit=6
  $region2: #{probabilistic_alexnet_forward.13} parent=0 // loop_pre_header
    _
  $region3: #{probabilistic_alexnet_forward.13} parent=0 // loop_header
    %s10 = sphi 0, %s14
    %p11 = scmp.ge.s32.totalorder %s10, 6
    %s20 = sphi 0, %s22
    %s23 = sphi 0, %s20
    %s24 = sphi 0, %s23
    %s40 = sphi 0, %s24
    %s44 = sphi 0, %s44
    %s46 = sphi 0, %s44
    %s47 = sphi 0, %s46
    %s61 = sphi 0, %s47
    %s65 = sphi 0, %s65
    %s67 = sphi 0, %s65
    %s68 = sphi 0, %s67
    %s82 = sphi 0, %s68
    %s88 = sphi 0, %s90
    %s91 = sphi 0, %s88
    %s92 = sphi 0, %s91
    %s108 = sphi 0, %s92
    %s114 = sphi 0, %s116
    %s117 = sphi 0, %s114
    %s118 = sphi 0, %s117
    %s134 = sphi 0, %s118
  $region4: #{probabilistic_alexnet_forward.13} parent=0 // loop_header_branch
    %13 = sbr.rel (%p11) target = $region8
  $region5: #{probabilistic_alexnet_forward.13} parent=0 // loop_body
    %s15 = ssub.s32 %s10, 1
    %s16 = ssub.s32 %s10, 2
    %s17 = sadd.s32 %s10, 1
    %s18 = ssub.s32 %s10, %s17
    %p19 = scmp.eq.s32.totalorder %s18, 0
    %s21 = sadd.s32 %s20, 1
    %s22 = scalar_select %p19, %s20, %s21
    %p25 = pneg %p19
    %p26 = scmp.eq.s32.totalorder %s10, 3
    %p27 = por %p25, %p26
    %p28 = scmp.ne.s32.totalorder %s20, %s23
    %p29 = scmp.eq.s32.totalorder %s10, 0
    %p30 = por %p28, %p29
    %p31 = scmp.ne.s32.totalorder %s20, %s23
    %p32 = scmp.eq.s32.totalorder %s15, 3
    %p33 = por %p31, %p32
    %p34 = scmp.ne.s32.totalorder %s23, %s24
    %p35 = scmp.eq.s32.totalorder %s15, 0
    %p36 = por %p34, %p35
    %p37 = scmp.ne.s32.totalorder %s23, %s24
    %p38 = scmp.eq.s32.totalorder %s16, 3
    %p39 = por %p37, %p38
    %p41 = scmp.ne.s32.totalorder %s24, %s40
    %p42 = scmp.eq.s32.totalorder %s16, 0
    %p43 = por %p41, %p42
    %s45 = sadd.s32 %s44, 1
    %p48 = scmp.eq.s32.totalorder %s10, 3
    %p49 = scmp.ne.s32.totalorder %s44, %s46
    %p50 = scmp.eq.s32.totalorder %s10, 0
    %p51 = por %p49, %p50
    %p52 = scmp.ne.s32.totalorder %s44, %s46
    %p53 = scmp.eq.s32.totalorder %s15, 3
    %p54 = por %p52, %p53
    %p55 = scmp.ne.s32.totalorder %s46, %s47
    %p56 = scmp.eq.s32.totalorder %s15, 0
    %p57 = por %p55, %p56
    %p58 = scmp.ne.s32.totalorder %s46, %s47
    %p59 = scmp.eq.s32.totalorder %s16, 3
    %p60 = por %p58, %p59
    %p62 = scmp.ne.s32.totalorder %s47, %s61
    %p63 = scmp.eq.s32.totalorder %s16, 0
    %p64 = por %p62, %p63
    %s66 = sadd.s32 %s65, 1
    %p69 = scmp.eq.s32.totalorder %s10, 3
    %p70 = scmp.ne.s32.totalorder %s65, %s67
    %p71 = scmp.eq.s32.totalorder %s10, 0
    %p72 = por %p70, %p71
    %p73 = scmp.ne.s32.totalorder %s65, %s67
    %p74 = scmp.eq.s32.totalorder %s15, 3
    %p75 = por %p73, %p74
    %p76 = scmp.ne.s32.totalorder %s67, %s68
    %p77 = scmp.eq.s32.totalorder %s15, 0
    %p78 = por %p76, %p77
    %p79 = scmp.ne.s32.totalorder %s67, %s68
    %p80 = scmp.eq.s32.totalorder %s16, 3
    %p81 = por %p79, %p80
    %p83 = scmp.ne.s32.totalorder %s68, %s82
    %p84 = scmp.eq.s32.totalorder %s16, 0
    %p85 = por %p83, %p84
    %s86 = ssub.s32 %s10, %s17
    %p87 = scmp.eq.s32.totalorder %s86, 0
    %s89 = sadd.s32 %s88, 1
    %s90 = scalar_select %p87, %s88, %s89
    %p93 = pneg %p87
    %p94 = scmp.eq.s32.totalorder %s10, 3
    %p95 = por %p93, %p94
    %p96 = scmp.ne.s32.totalorder %s88, %s91
    %p97 = scmp.eq.s32.totalorder %s10, 0
    %p98 = por %p96, %p97
    %p99 = scmp.ne.s32.totalorder %s88, %s91
    %p100 = scmp.eq.s32.totalorder %s15, 3
    %p101 = por %p99, %p100
    %p102 = scmp.ne.s32.totalorder %s91, %s92
    %p103 = scmp.eq.s32.totalorder %s15, 0
    %p104 = por %p102, %p103
    %p105 = scmp.ne.s32.totalorder %s91, %s92
    %p106 = scmp.eq.s32.totalorder %s16, 3
    %p107 = por %p105, %p106
    %p109 = scmp.ne.s32.totalorder %s92, %s108
    %p110 = scmp.eq.s32.totalorder %s16, 0
    %p111 = por %p109, %p110
    %s112 = ssub.s32 %s10, %s17
    %p113 = scmp.eq.s32.totalorder %s112, 0
    %s115 = sadd.s32 %s114, 1
    %s116 = scalar_select %p113, %s114, %s115
    %p119 = pneg %p113
    %p120 = scmp.eq.s32.totalorder %s10, 3
    %p121 = por %p119, %p120
    %p122 = scmp.ne.s32.totalorder %s114, %s117
    %p123 = scmp.eq.s32.totalorder %s10, 0
    %p124 = por %p122, %p123
    %p125 = scmp.ne.s32.totalorder %s114, %s117
    %p126 = scmp.eq.s32.totalorder %s15, 3
    %p127 = por %p125, %p126
    %p128 = scmp.ne.s32.totalorder %s117, %s118
    %p129 = scmp.eq.s32.totalorder %s15, 0
    %p130 = por %p128, %p129
    %p131 = scmp.ne.s32.totalorder %s117, %s118
    %p132 = scmp.eq.s32.totalorder %s16, 3
    %p133 = por %p131, %p132
    %p135 = scmp.ne.s32.totalorder %s118, %s134
    %p136 = scmp.eq.s32.totalorder %s16, 0
    %p137 = por %p135, %p136
    %p138 = scmp.le.s32.totalorder 1, %s10
    %p139 = scmp.lt.s32.totalorder %s10, 5
    %p140 = pnand %p138, %p139
    %p141 = pneg %p140
    // Predicated region
    $region9: #{probabilistic_alexnet_forward.13} parent=5 // pred_check
      _
    $region10: #{probabilistic_alexnet_forward.13} parent=5 // pred_check_branch
      %143 = sbr.rel (%p140) target = $region12
    $region11: #{probabilistic_alexnet_forward.13} parent=5 // pred_region
      %s144 = ssub.s32 %s10, 1
      // Predicated region
      $region13: #{probabilistic_alexnet_forward.13} parent=11 // pred_check
        %p145 = pneg %p57
      $region14: #{probabilistic_alexnet_forward.13} parent=11 // pred_check_branch
        %147 = sbr.rel (%p145) target = $region16
      $region15: #{probabilistic_alexnet_forward.13} parent=11 // pred_region
        _
      $region16: #{probabilistic_alexnet_forward.13} parent=11 // pred_fallthru
        _
      // Predicated region
      $region17: #{probabilistic_alexnet_forward.13} parent=11 // pred_check
        %p148 = pneg %p78
      $region18: #{probabilistic_alexnet_forward.13} parent=11 // pred_check_branch
        %150 = sbr.rel (%p148) target = $region20
      $region19: #{probabilistic_alexnet_forward.13} parent=11 // pred_region
        _
      $region20: #{probabilistic_alexnet_forward.13} parent=11 // pred_fallthru
        _
    $region12: #{probabilistic_alexnet_forward.13} parent=5 // pred_fallthru
      _
    %p151 = scmp.lt.s32.totalorder %s10, 4
    // Predicated region
    $region21: #{probabilistic_alexnet_forward.13} parent=5 // pred_check
      %p152 = pneg %p151
    $region22: #{probabilistic_alexnet_forward.13} parent=5 // pred_check_branch
      %154 = sbr.rel (%p152) target = $region24
    $region23: #{probabilistic_alexnet_forward.13} parent=5 // pred_region
      // Predicated region
      $region25: #{probabilistic_alexnet_forward.13} parent=23 // pred_check
        %p155 = pneg %p30
      $region26: #{probabilistic_alexnet_forward.13} parent=23 // pred_check_branch
        %157 = sbr.rel (%p155) target = $region28
      $region27: #{probabilistic_alexnet_forward.13} parent=23 // pred_region
        %s158 = smul.u32 32, %s10
        %p159 = scmp.lt.s32.totalorder %s158, 127
        %s160 = scalar_select %p159, %s158, 127
        %s161 = smul.addr %s160, 3
        %s162 = smul.addr %s161, 4
        %s163 = scalar_lea.vmem %s0, %s162
        %s164 = smul.u32 32, %s10
      $region28: #{probabilistic_alexnet_forward.13} parent=23 // pred_fallthru
        _
      // Predicated region
      $region29: #{probabilistic_alexnet_forward.13} parent=23 // pred_check
        %p165 = pneg %p98
      $region30: #{probabilistic_alexnet_forward.13} parent=23 // pred_check_branch
        %167 = sbr.rel (%p165) target = $region32
      $region31: #{probabilistic_alexnet_forward.13} parent=23 // pred_region
        %s168 = smul.u32 32, %s10
        %p169 = scmp.lt.s32.totalorder %s168, 127
        %s170 = scalar_select %p169, %s168, 127
        %s171 = smul.addr %s170, 8
        %s172 = scalar_lea.vmem %s3, %s171
        %s173 = smul.u32 32, %s10
      $region32: #{probabilistic_alexnet_forward.13} parent=23 // pred_fallthru
        _
    $region24: #{probabilistic_alexnet_forward.13} parent=5 // pred_fallthru
      _
    %p174 = scmp.le.s32.totalorder 1, %s10
    %p175 = scmp.lt.s32.totalorder %s10, 5
    %p176 = pnand %p174, %p175
    %p177 = pneg %p176
    // Predicated region
    $region33: #{probabilistic_alexnet_forward.13} parent=5 // pred_check
      _
    $region34: #{probabilistic_alexnet_forward.13} parent=5 // pred_check_branch
      %179 = sbr.rel (%p176) target = $region36
    $region35: #{probabilistic_alexnet_forward.13} parent=5 // pred_region
      %s180 = ssub.s32 %s10, 1
      %s181 = smul.u32 32, %s15
      %p182 = scmp.lt.s32.totalorder %s181, 127
      %s183 = scalar_select %p182, %s181, 127
      %s184 = smul.addr %s183, 3
      %s185 = smul.addr %s184, 4
      %s186 = scalar_lea.vmem %s0, %s185
      %p187 = pneg %p36
      %p188 = pneg %p33
      %p189 = pneg %p57
      %p190 = pneg %p54
      %p191 = pneg %p78
      %p192 = pneg %p75
      %s193 = smul.u32 32, %s15
      %p194 = scmp.lt.s32.totalorder %s193, 127
      %s195 = scalar_select %p194, %s193, 127
      %s196 = smul.addr %s195, 8
      %s197 = scalar_lea.vmem %s3, %s196
      %p198 = pneg %p104
      %p199 = pneg %p101
      %p200 = pneg %p130
      %p201 = pneg %p127
      %s202 = smul.u32 32, %s15
      %p203 = scmp.lt.s32.totalorder %s202, 127
      %s204 = scalar_select %p203, %s202, 127
      %s205 = smul.addr %s204, 8
      %s206 = scalar_lea.vmem %s4, %s205
      %s207 = smul.u32 32, %s15
      %p208 = scmp.lt.s32.totalorder %s207, 127
      %s209 = scalar_select %p208, %s207, 127
      %s210 = smul.addr %s209, 3
      %s211 = smul.addr %s210, 4
      %s212 = scalar_lea.vmem %s0, %s211
      %s213 = smul.u32 32, %s15
      %s214 = smul.u32 32, %s15
      %p215 = scmp.lt.s32.totalorder %s214, 127
      %s216 = scalar_select %p215, %s214, 127
      %s217 = smul.addr %s216, 8
      %s218 = scalar_lea.vmem %s3, %s217
      %s219 = smul.u32 32, %s15
      %s220 = smul.u32 32, %s15
      %p221 = scmp.lt.s32.totalorder %s220, 127
      %s222 = scalar_select %p221, %s220, 127
      %s223 = smul.addr %s222, 8
      %s224 = scalar_lea.vmem %s4, %s223
      %s225 = smul.u32 32, %s15
      %v227 = vld [vmem:[%s212] sm:$0xff]
      %v228 = vld [vmem:[%s212 + $0x8] sm:$0xf]
      %v229 = vld [vmem:[%s212 + $0xc] sm:$0xff]
      %v230 = vld [vmem:[%s212 + $0x14] sm:$0xf]
      %v231 = vld [vmem:[%s212 + $0x18] sm:$0xff]
      %v232 = vld [vmem:[%s212 + $0x20] sm:$0xf]
      %v233 = vld [vmem:[%s212 + $0x24] sm:$0xff]
      %v234 = vld [vmem:[%s212 + $0x2c] sm:$0xf]
      %v235 = vld [vmem:[%s212 + $0x30] sm:$0xff]
      %v236 = vld [vmem:[%s212 + $0x38] sm:$0xf]
      %v237 = vld [vmem:[%s212 + $0x3c] sm:$0xff]
      %v238 = vld [vmem:[%s212 + $0x44] sm:$0xf]
      %v239 = vld [vmem:[%s212 + $0x48] sm:$0xff]
      %v240 = vld [vmem:[%s212 + $0x50] sm:$0xf]
      %v241 = vld [vmem:[%s212 + $0x54] sm:$0xff]
      %v242 = vld [vmem:[%s212 + $0x5c] sm:$0xf]
      %v243 = vld [vmem:[%s212 + $0x60] sm:$0xff]
      %v244 = vld [vmem:[%s212 + $0x68] sm:$0xf]
      %v245 = vld [vmem:[%s212 + $0x6c] sm:$0xff]
      %v246 = vld [vmem:[%s212 + $0x74] sm:$0xf]
      %v247 = vld [vmem:[%s212 + $0x78] sm:$0xff]
      %v248 = vld [vmem:[%s212 + $0x80] sm:$0xf]
      %v249 = vld [vmem:[%s212 + $0x84] sm:$0xff]
      %v250 = vld [vmem:[%s212 + $0x8c] sm:$0xf]
      %v251 = vld [vmem:[%s212 + $0x90] sm:$0xff]
      %v252 = vld [vmem:[%s212 + $0x98] sm:$0xf]
      %v253 = vld [vmem:[%s212 + $0x9c] sm:$0xff]
      %v254 = vld [vmem:[%s212 + $0xa4] sm:$0xf]
      %v255 = vld [vmem:[%s212 + $0xa8] sm:$0xff]
      %v256 = vld [vmem:[%s212 + $0xb0] sm:$0xf]
      %v257 = vld [vmem:[%s212 + $0xb4] sm:$0xff]
      %v258 = vld [vmem:[%s212 + $0xbc] sm:$0xf]
      %v259 = vld [vmem:[%s212 + $0xc0] sm:$0xff]
      %v260 = vld [vmem:[%s212 + $0xc8] sm:$0xf]
      %v261 = vld [vmem:[%s212 + $0xcc] sm:$0xff]
      %v262 = vld [vmem:[%s212 + $0xd4] sm:$0xf]
      %v263 = vld [vmem:[%s212 + $0xd8] sm:$0xff]
      %v264 = vld [vmem:[%s212 + $0xe0] sm:$0xf]
      %v265 = vld [vmem:[%s212 + $0xe4] sm:$0xff]
      %v266 = vld [vmem:[%s212 + $0xec] sm:$0xf]
      %v267 = vld [vmem:[%s212 + $0xf0] sm:$0xff]
      %v268 = vld [vmem:[%s212 + $0xf8] sm:$0xf]
      %v269 = vld [vmem:[%s212 + $0xfc] sm:$0xff]
      %v270 = vld [vmem:[%s212 + $0x104] sm:$0xf]
      %v271 = vld [vmem:[%s212 + $0x108] sm:$0xff]
      %v272 = vld [vmem:[%s212 + $0x110] sm:$0xf]
      %v273 = vld [vmem:[%s212 + $0x114] sm:$0xff]
      %v274 = vld [vmem:[%s212 + $0x11c] sm:$0xf]
      %v275 = vld [vmem:[%s212 + $0x120] sm:$0xff]
      %v276 = vld [vmem:[%s212 + $0x128] sm:$0xf]
      %v277 = vld [vmem:[%s212 + $0x12c] sm:$0xff]
      %v278 = vld [vmem:[%s212 + $0x134] sm:$0xf]
      %v279 = vld [vmem:[%s212 + $0x138] sm:$0xff]
      %v280 = vld [vmem:[%s212 + $0x140] sm:$0xf]
      %v281 = vld [vmem:[%s212 + $0x144] sm:$0xff]
      %v282 = vld [vmem:[%s212 + $0x14c] sm:$0xf]
      %v283 = vld [vmem:[%s212 + $0x150] sm:$0xff]
      %v284 = vld [vmem:[%s212 + $0x158] sm:$0xf]
      %v285 = vld [vmem:[%s212 + $0x15c] sm:$0xff]
      %v286 = vld [vmem:[%s212 + $0x164] sm:$0xf]
      %v287 = vld [vmem:[%s212 + $0x168] sm:$0xff]
      %v288 = vld [vmem:[%s212 + $0x170] sm:$0xf]
      %v289 = vld [vmem:[%s212 + $0x174] sm:$0xff]
      %v290 = vld [vmem:[%s212 + $0x17c] sm:$0xf]
      %v291 = vld [vmem:[%s1] sm:$0xf]
      %v292 = vld [vmem:[%s1 + $0x4] sm:$0xf]
      %v293 = vld [vmem:[%s1 + $0x8] sm:$0xf]
      %v294 = vld [vmem:[%s1 + $0xc] sm:$0xf]
      %v295 = vld [vmem:[%s1 + $0x10] sm:$0xf]
      %v296 = vld [vmem:[%s1 + $0x14] sm:$0xf]
      %v297 = vld [vmem:[%s1 + $0x18] sm:$0xf]
      %v298 = vld [vmem:[%s1 + $0x1c] sm:$0xf]
      %v299 = vld [vmem:[%s1 + $0x20] sm:$0xf]
      %v300 = vld [vmem:[%s1 + $0x24] sm:$0xf]
      %v301 = vld [vmem:[%s1 + $0x28] sm:$0xf]
      %v302 = vld [vmem:[%s1 + $0x2c] sm:$0xf]
      %v303 = vld [vmem:[%s1 + $0x30] sm:$0xf]
      %v304 = vld [vmem:[%s1 + $0x34] sm:$0xf]
      %v305 = vld [vmem:[%s1 + $0x38] sm:$0xf]
      %v306 = vld [vmem:[%s1 + $0x3c] sm:$0xf]
      %v307 = vld [vmem:[%s1 + $0x40] sm:$0xf]
      %v308 = vld [vmem:[%s1 + $0x44] sm:$0xf]
      %v309 = vld [vmem:[%s1 + $0x48] sm:$0xf]
      %v310 = vld [vmem:[%s1 + $0x4c] sm:$0xf]
      %v311 = vld [vmem:[%s1 + $0x50] sm:$0xf]
      %v312 = vld [vmem:[%s1 + $0x54] sm:$0xf]
      %v313 = vld [vmem:[%s1 + $0x58] sm:$0xf]
      %v314 = vld [vmem:[%s1 + $0x5c] sm:$0xf]
      %v315 = vld [vmem:[%s1 + $0x60] sm:$0xf]
      %v316 = vld [vmem:[%s1 + $0x64] sm:$0xf]
      %v317 = vld [vmem:[%s1 + $0x68] sm:$0xf]
      %v318 = vld [vmem:[%s1 + $0x6c] sm:$0xf]
      %v319 = vld [vmem:[%s1 + $0x70] sm:$0xf]
      %v320 = vld [vmem:[%s1 + $0x74] sm:$0xf]
      %v321 = vld [vmem:[%s1 + $0x78] sm:$0xf]
      %v322 = vld [vmem:[%s1 + $0x7c] sm:$0xf]
      %v323 = vld [vmem:[%s1 + $0x80] sm:$0xf]
      %v324 = vld [vmem:[%s1 + $0x84] sm:$0xf]
      %v325 = vld [vmem:[%s1 + $0x88] sm:$0xf]
      %v326 = vld [vmem:[%s1 + $0x8c] sm:$0xf]
      %v327 = vld [vmem:[%s1 + $0x90] sm:$0xf]
      %v328 = vld [vmem:[%s1 + $0x94] sm:$0xf]
      %v329 = vld [vmem:[%s1 + $0x98] sm:$0xf]
      %v330 = vld [vmem:[%s1 + $0x9c] sm:$0xf]
      %v331 = vld [vmem:[%s1 + $0xa0] sm:$0xf]
      %v332 = vld [vmem:[%s1 + $0xa4] sm:$0xf]
      %v333 = vld [vmem:[%s1 + $0xa8] sm:$0xf]
      %v334 = vld [vmem:[%s1 + $0xac] sm:$0xf]
      %v335 = vld [vmem:[%s1 + $0xb0] sm:$0xf]
      %v336 = vld [vmem:[%s1 + $0xb4] sm:$0x3]
      %v337 = vld [vmem:[%s2] sm:$0x1]
      %v339 = vlaneseq
      %v340 = vshrl.u32 %v339, 7
      %v341 = vsub.s32 0, %v340
      %v342 = vrot.slane %v337, %v341
      %v408 = vunpack.c.l.b16 %v227
      %v409 = vunpack.c.h.b16 %v227
      %v410 = vunpack.c.l.b16 %v228
      %v411 = vunpack.c.l.b16 %v229
      %v412 = vunpack.c.h.b16 %v229
      %v413 = vunpack.c.l.b16 %v230
      %v414 = vunpack.c.l.b16 %v231
      %v415 = vunpack.c.h.b16 %v231
      %v416 = vunpack.c.l.b16 %v232
      %v417 = vunpack.c.l.b16 %v233
      %v418 = vunpack.c.h.b16 %v233
      %v419 = vunpack.c.l.b16 %v234
      %v420 = vunpack.c.l.b16 %v235
      %v421 = vunpack.c.h.b16 %v235
      %v422 = vunpack.c.l.b16 %v236
      %v423 = vunpack.c.l.b16 %v237
      %v424 = vunpack.c.h.b16 %v237
      %v425 = vunpack.c.l.b16 %v238
      %v426 = vunpack.c.l.b16 %v239
      %v427 = vunpack.c.h.b16 %v239
      %v428 = vunpack.c.l.b16 %v240
      %v429 = vunpack.c.l.b16 %v241
      %v430 = vunpack.c.h.b16 %v241
      %v431 = vunpack.c.l.b16 %v242
      %v432 = vunpack.c.l.b16 %v243
      %v433 = vunpack.c.h.b16 %v243
      %v434 = vunpack.c.l.b16 %v244
      %v435 = vunpack.c.l.b16 %v245
      %v436 = vunpack.c.h.b16 %v245
      %v437 = vunpack.c.l.b16 %v246
      %v438 = vunpack.c.l.b16 %v247
      %v439 = vunpack.c.h.b16 %v247
      %v440 = vunpack.c.l.b16 %v248
      %v441 = vunpack.c.l.b16 %v249
      %v442 = vunpack.c.h.b16 %v249
      %v443 = vunpack.c.l.b16 %v250
      %v444 = vunpack.c.l.b16 %v251
      %v445 = vunpack.c.h.b16 %v251
      %v446 = vunpack.c.l.b16 %v252
      %v447 = vunpack.c.l.b16 %v253
      %v448 = vunpack.c.h.b16 %v253
      %v449 = vunpack.c.l.b16 %v254
      %v450 = vunpack.c.l.b16 %v255
      %v451 = vunpack.c.h.b16 %v255
      %v452 = vunpack.c.l.b16 %v256
      %v453 = vunpack.c.l.b16 %v257
      %v454 = vunpack.c.h.b16 %v257
      %v455 = vunpack.c.l.b16 %v258
      %v456 = vunpack.c.l.b16 %v259
      %v457 = vunpack.c.h.b16 %v259
      %v458 = vunpack.c.l.b16 %v260
      %v459 = vunpack.c.l.b16 %v261
      %v460 = vunpack.c.h.b16 %v261
      %v461 = vunpack.c.l.b16 %v262
      %v462 = vunpack.c.l.b16 %v263
      %v463 = vunpack.c.h.b16 %v263
      %v464 = vunpack.c.l.b16 %v264
      %v465 = vunpack.c.l.b16 %v265
      %v466 = vunpack.c.h.b16 %v265
      %v467 = vunpack.c.l.b16 %v266
      %v468 = vunpack.c.l.b16 %v267
      %v469 = vunpack.c.h.b16 %v267
      %v470 = vunpack.c.l.b16 %v268
      %v471 = vunpack.c.l.b16 %v269
      %v472 = vunpack.c.h.b16 %v269
      %v473 = vunpack.c.l.b16 %v270
      %v474 = vunpack.c.l.b16 %v271
      %v475 = vunpack.c.h.b16 %v271
      %v476 = vunpack.c.l.b16 %v272
      %v477 = vunpack.c.l.b16 %v273
      %v478 = vunpack.c.h.b16 %v273
      %v479 = vunpack.c.l.b16 %v274
      %v480 = vunpack.c.l.b16 %v275
      %v481 = vunpack.c.h.b16 %v275
      %v482 = vunpack.c.l.b16 %v276
      %v483 = vunpack.c.l.b16 %v277
      %v484 = vunpack.c.h.b16 %v277
      %v485 = vunpack.c.l.b16 %v278
      %v486 = vunpack.c.l.b16 %v279
      %v487 = vunpack.c.h.b16 %v279
      %v488 = vunpack.c.l.b16 %v280
      %v489 = vunpack.c.l.b16 %v281
      %v490 = vunpack.c.h.b16 %v281
      %v491 = vunpack.c.l.b16 %v282
      %v492 = vunpack.c.l.b16 %v283
      %v493 = vunpack.c.h.b16 %v283
      %v494 = vunpack.c.l.b16 %v284
      %v495 = vunpack.c.l.b16 %v285
      %v496 = vunpack.c.h.b16 %v285
      %v497 = vunpack.c.l.b16 %v286
      %v498 = vunpack.c.l.b16 %v287
      %v499 = vunpack.c.h.b16 %v287
      %v500 = vunpack.c.l.b16 %v288
      %v501 = vunpack.c.l.b16 %v289
      %v502 = vunpack.c.h.b16 %v289
      %v503 = vunpack.c.l.b16 %v290
      %v504 = vpack.c.b16 %v411, %v408
      %v505 = vpack.c.b16 %v412, %v409
      %v506 = vpack.c.b16 %v413, %v410
      %v507 = vpack.c.b16 %v417, %v414
      %v508 = vpack.c.b16 %v418, %v415
      %v509 = vpack.c.b16 %v419, %v416
      %v510 = vpack.c.b16 %v423, %v420
      %v511 = vpack.c.b16 %v424, %v421
      %v512 = vpack.c.b16 %v425, %v422
      %v513 = vpack.c.b16 %v429, %v426
      %v514 = vpack.c.b16 %v430, %v427
      %v515 = vpack.c.b16 %v431, %v428
      %v516 = vpack.c.b16 %v435, %v432
      %v517 = vpack.c.b16 %v436, %v433
      %v518 = vpack.c.b16 %v437, %v434
      %v519 = vpack.c.b16 %v441, %v438
      %v520 = vpack.c.b16 %v442, %v439
      %v521 = vpack.c.b16 %v443, %v440
      %v522 = vpack.c.b16 %v447, %v444
      %v523 = vpack.c.b16 %v448, %v445
      %v524 = vpack.c.b16 %v449, %v446
      %v525 = vpack.c.b16 %v453, %v450
      %v526 = vpack.c.b16 %v454, %v451
      %v527 = vpack.c.b16 %v455, %v452
      %v528 = vpack.c.b16 %v459, %v456
      %v529 = vpack.c.b16 %v460, %v457
      %v530 = vpack.c.b16 %v461, %v458
      %v531 = vpack.c.b16 %v465, %v462
      %v532 = vpack.c.b16 %v466, %v463
      %v533 = vpack.c.b16 %v467, %v464
      %v534 = vpack.c.b16 %v471, %v468
      %v535 = vpack.c.b16 %v472, %v469
      %v536 = vpack.c.b16 %v473, %v470
      %v537 = vpack.c.b16 %v477, %v474
      %v538 = vpack.c.b16 %v478, %v475
      %v539 = vpack.c.b16 %v479, %v476
      %v540 = vpack.c.b16 %v483, %v480
      %v541 = vpack.c.b16 %v484, %v481
      %v542 = vpack.c.b16 %v485, %v482
      %v543 = vpack.c.b16 %v489, %v486
      %v544 = vpack.c.b16 %v490, %v487
      %v545 = vpack.c.b16 %v491, %v488
      %v546 = vpack.c.b16 %v495, %v492
      %v547 = vpack.c.b16 %v496, %v493
      %v548 = vpack.c.b16 %v497, %v494
      %v549 = vpack.c.b16 %v501, %v498
      %v550 = vpack.c.b16 %v502, %v499
      %v551 = vpack.c.b16 %v503, %v500
      %v630 = vunpack.c.l.b16 %v291
      %v631 = vunpack.c.l.b16 %v292
      %v632 = vunpack.c.l.b16 %v293
      %v633 = vunpack.c.l.b16 %v294
      %v634 = vunpack.c.l.b16 %v295
      %v635 = vunpack.c.l.b16 %v296
      %v636 = vunpack.c.l.b16 %v297
      %v637 = vunpack.c.l.b16 %v298
      %v638 = vunpack.c.l.b16 %v299
      %v639 = vunpack.c.l.b16 %v300
      %v640 = vunpack.c.l.b16 %v301
      %v641 = vunpack.c.l.b16 %v302
      %v642 = vunpack.c.l.b16 %v303
      %v643 = vunpack.c.l.b16 %v304
      %v644 = vunpack.c.l.b16 %v305
      %v645 = vunpack.c.l.b16 %v306
      %v646 = vunpack.c.l.b16 %v307
      %v647 = vunpack.c.l.b16 %v308
      %v648 = vunpack.c.l.b16 %v309
      %v649 = vunpack.c.l.b16 %v310
      %v650 = vunpack.c.l.b16 %v311
      %v651 = vunpack.c.l.b16 %v312
      %v652 = vunpack.c.l.b16 %v313
      %v653 = vunpack.c.l.b16 %v314
      %v654 = vunpack.c.l.b16 %v315
      %v655 = vunpack.c.l.b16 %v316
      %v656 = vunpack.c.l.b16 %v317
      %v657 = vunpack.c.l.b16 %v318
      %v658 = vunpack.c.l.b16 %v319
      %v659 = vunpack.c.l.b16 %v320
      %v660 = vunpack.c.l.b16 %v321
      %v661 = vunpack.c.l.b16 %v322
      %v662 = vunpack.c.l.b16 %v323
      %v663 = vunpack.c.l.b16 %v324
      %v664 = vunpack.c.l.b16 %v325
      %v665 = vunpack.c.l.b16 %v326
      %v666 = vunpack.c.l.b16 %v327
      %v667 = vunpack.c.l.b16 %v328
      %v668 = vunpack.c.l.b16 %v329
      %v669 = vunpack.c.l.b16 %v330
      %v670 = vunpack.c.l.b16 %v331
      %v671 = vunpack.c.l.b16 %v332
      %v672 = vunpack.c.l.b16 %v333
      %v673 = vunpack.c.l.b16 %v334
      %v674 = vunpack.c.l.b16 %v335
      %v675 = vunpack.c.l.b16 %v336
      %v676 = vpack.c.b16 %v631, %v630
      %v677 = vpack.c.b16 %v633, %v632
      %v678 = vpack.c.b16 %v635, %v634
      %v679 = vpack.c.b16 %v637, %v636
      %v680 = vpack.c.b16 %v639, %v638
      %v681 = vpack.c.b16 %v641, %v640
      %v682 = vpack.c.b16 %v643, %v642
      %v683 = vpack.c.b16 %v645, %v644
      %v684 = vpack.c.b16 %v647, %v646
      %v685 = vpack.c.b16 %v649, %v648
      %v686 = vpack.c.b16 %v651, %v650
      %v687 = vpack.c.b16 %v653, %v652
      %v688 = vpack.c.b16 %v655, %v654
      %v689 = vpack.c.b16 %v657, %v656
      %v690 = vpack.c.b16 %v659, %v658
      %v691 = vpack.c.b16 %v661, %v660
      %v692 = vpack.c.b16 %v663, %v662
      %v693 = vpack.c.b16 %v665, %v664
      %v694 = vpack.c.b16 %v667, %v666
      %v695 = vpack.c.b16 %v669, %v668
      %v696 = vpack.c.b16 %v671, %v670
      %v697 = vpack.c.b16 %v673, %v672
      %v698 = vpack.c.b16 %v675, %v674
      %vm721 = vcmask 875520
      %v723 = vsel %vm721, %v506, 0
      %v726 = vsel %vm721, %v509, 0
      %v729 = vsel %vm721, %v512, 0
      %v732 = vsel %vm721, %v515, 0
      %v735 = vsel %vm721, %v518, 0
      %v738 = vsel %vm721, %v521, 0
      %v741 = vsel %vm721, %v524, 0
      %v744 = vsel %vm721, %v527, 0
      %v747 = vsel %vm721, %v530, 0
      %v750 = vsel %vm721, %v533, 0
      %v753 = vsel %vm721, %v536, 0
      %v756 = vsel %vm721, %v539, 0
      %v759 = vsel %vm721, %v542, 0
      %v762 = vsel %vm721, %v545, 0
      %v765 = vsel %vm721, %v548, 0
      %v768 = vsel %vm721, %v551, 0
      %vm770 = vcmask 1044480
      %vm771 = vcmask 1045504
      %v772 = vsel %vm770, 4294967295, 65535
      %v773 = vsel %vm771, %v772, 0
      %v775 = vand.u32 %v698, %v773
      %777 = vmatprep.subr.bf16.mxu0 0
      %778 = vmatpush1.bf16.msra.mxu0 %v676
      %779 = vmatprep.subr.bf16.mxu0 0
      %780 = vmatpush1.bf16.msra.mxu0 %v677
      %781 = vmatprep.subr.bf16.mxu0 0
      %782 = vmatpush1.bf16.msra.mxu0 %v678
      %783 = vmatprep.subr.bf16.mxu0 0
      %784 = vmatpush1.bf16.msra.mxu0 %v679
      %785 = vmatprep.subr.bf16.mxu0 0
      %786 = vmatpush1.bf16.msra.mxu0 %v680
      %787 = vmatprep.subr.bf16.mxu0 0
      %788 = vmatpush1.bf16.msra.mxu0 %v681
      %789 = vmatprep.subr.bf16.mxu0 0
      %790 = vmatpush1.bf16.msra.mxu0 %v682
      %791 = vmatprep.subr.bf16.mxu0 0
      %792 = vmatpush1.bf16.msra.mxu0 %v683
      %793 = vmatprep.subr.bf16.mxu0 0
      %794 = vmatpush1.bf16.msra.mxu0 %v684
      %795 = vmatprep.subr.bf16.mxu0 0
      %796 = vmatpush1.bf16.msra.mxu0 %v685
      %797 = vmatprep.subr.bf16.mxu0 0
      %798 = vmatpush1.bf16.msra.mxu0 %v686
      %799 = vmatprep.subr.bf16.mxu0 0
      %800 = vmatpush1.bf16.msra.mxu0 %v687
      %801 = vmatprep.subr.bf16.mxu0 0
      %802 = vmatpush1.bf16.msra.mxu0 %v688
      %803 = vmatprep.subr.bf16.mxu0 0
      %804 = vmatpush1.bf16.msra.mxu0 %v689
      %805 = vmatprep.subr.bf16.mxu0 0
      %806 = vmatpush1.bf16.msra.mxu0 %v690
      %807 = vmatprep.subr.bf16.mxu0 0
      %808 = vmatpush1.bf16.msra.mxu0 %v691
      %809 = vmatprep.mubr.bf16.mxu0 %v505
      %810 = vmatmul.mubr.bf16.gmra.mrb[0].mxu0 %v504
      %v811 = vpop.f32.mrb[0].mxu0
      %v812 = vadd.f32 %v342, %v811
      %v813 = vpop.f32.mrb[0].mxu0
      %v814 = vpop.f32.mrb[0].mxu0
      %v815 = vadd.f32 %v342, %v814
      %v816 = vpop.f32.mrb[0].mxu0
      %817 = vmatprep.mubr.bf16.mxu0 %v508
      %818 = vmatmul.mubr.bf16.gmra.mrb[0].mxu0 %v507
      %v819 = vpop.f32.mrb[0].mxu0
      %v820 = vadd.f32 %v342, %v819
      %v821 = vpop.f32.mrb[0].mxu0
      %v822 = vpop.f32.mrb[0].mxu0
      %v823 = vadd.f32 %v342, %v822
      %v824 = vpop.f32.mrb[0].mxu0
      %825 = vmatprep.mubr.bf16.mxu0 %v511
      %826 = vmatmul.mubr.bf16.gmra.mrb[0].mxu0 %v510
      %v827 = vpop.f32.mrb[0].mxu0
      %v828 = vadd.f32 %v342, %v827
      %v829 = vpop.f32.mrb[0].mxu0
      %v830 = vpop.f32.mrb[0].mxu0
      %v831 = vadd.f32 %v342, %v830
      %v832 = vpop.f32.mrb[0].mxu0
      %833 = vmatprep.mubr.bf16.mxu0 %v514
      %834 = vmatmul.mubr.bf16.gmra.mrb[0].mxu0 %v513
      %v835 = vpop.f32.mrb[0].mxu0
      %v836 = vadd.f32 %v342, %v835
      %v837 = vpop.f32.mrb[0].mxu0
      %v838 = vpop.f32.mrb[0].mxu0
      %v839 = vadd.f32 %v342, %v838
      %v840 = vpop.f32.mrb[0].mxu0
      %841 = vmatprep.mubr.bf16.mxu0 %v517
      %842 = vmatmul.mubr.bf16.gmra.mrb[0].mxu0 %v516
      %v843 = vpop.f32.mrb[0].mxu0
      %v844 = vadd.f32 %v342, %v843
      %v845 = vpop.f32.mrb[0].mxu0
      %v846 = vpop.f32.mrb[0].mxu0
      %v847 = vadd.f32 %v342, %v846
      %v848 = vpop.f32.mrb[0].mxu0
      %849 = vmatprep.mubr.bf16.mxu0 %v520
      %850 = vmatmul.mubr.bf16.gmra.mrb[0].mxu0 %v519
      %v851 = vpop.f32.mrb[0].mxu0
      %v852 = vadd.f32 %v342, %v851
      %v853 = vpop.f32.mrb[0].mxu0
      %v854 = vpop.f32.mrb[0].mxu0
      %v855 = vadd.f32 %v342, %v854
      %v856 = vpop.f32.mrb[0].mxu0
      %857 = vmatprep.mubr.bf16.mxu0 %v523
      %858 = vmatmul.mubr.bf16.gmra.mrb[0].mxu0 %v522
      %v859 = vpop.f32.mrb[0].mxu0
      %v860 = vadd.f32 %v342, %v859
      %v861 = vpop.f32.mrb[0].mxu0
      %v862 = vpop.f32.mrb[0].mxu0
      %v863 = vadd.f32 %v342, %v862
      %v864 = vpop.f32.mrb[0].mxu0
      %865 = vmatprep.mubr.bf16.mxu0 %v526
      %866 = vmatmul.mubr.bf16.gmra.mrb[0].mxu0 %v525
      %v867 = vpop.f32.mrb[0].mxu0
      %v868 = vadd.f32 %v342, %v867
      %v869 = vpop.f32.mrb[0].mxu0
      %v870 = vpop.f32.mrb[0].mxu0
      %v871 = vadd.f32 %v342, %v870
      %v872 = vpop.f32.mrb[0].mxu0
      %873 = vmatprep.mubr.bf16.mxu0 %v529
      %874 = vmatmul.mubr.bf16.gmra.mrb[0].mxu0 %v528
      %v875 = vpop.f32.mrb[0].mxu0
      %v876 = vadd.f32 %v342, %v875
      %v877 = vpop.f32.mrb[0].mxu0
      %v878 = vpop.f32.mrb[0].mxu0
      %v879 = vadd.f32 %v342, %v878
      %v880 = vpop.f32.mrb[0].mxu0
      %881 = vmatprep.mubr.bf16.mxu0 %v532
      %882 = vmatmul.mubr.bf16.gmra.mrb[0].mxu0 %v531
      %v883 = vpop.f32.mrb[0].mxu0
      %v884 = vadd.f32 %v342, %v883
      %v885 = vpop.f32.mrb[0].mxu0
      %v886 = vpop.f32.mrb[0].mxu0
      %v887 = vadd.f32 %v342, %v886
      %v888 = vpop.f32.mrb[0].mxu0
      %889 = vmatprep.mubr.bf16.mxu0 %v535
      %890 = vmatmul.mubr.bf16.gmra.mrb[0].mxu0 %v534
      %v891 = vpop.f32.mrb[0].mxu0
      %v892 = vadd.f32 %v342, %v891
      %v893 = vpop.f32.mrb[0].mxu0
      %v894 = vpop.f32.mrb[0].mxu0
      %v895 = vadd.f32 %v342, %v894
      %v896 = vpop.f32.mrb[0].mxu0
      %897 = vmatprep.mubr.bf16.mxu0 %v538
      %898 = vmatmul.mubr.bf16.gmra.mrb[0].mxu0 %v537
      %v899 = vpop.f32.mrb[0].mxu0
      %v900 = vadd.f32 %v342, %v899
      %v901 = vpop.f32.mrb[0].mxu0
      %v902 = vpop.f32.mrb[0].mxu0
      %v903 = vadd.f32 %v342, %v902
      %v904 = vpop.f32.mrb[0].mxu0
      %905 = vmatprep.mubr.bf16.mxu0 %v541
      %906 = vmatmul.mubr.bf16.gmra.mrb[0].mxu0 %v540
      %v907 = vpop.f32.mrb[0].mxu0
      %v908 = vadd.f32 %v342, %v907
      %v909 = vpop.f32.mrb[0].mxu0
      %v910 = vpop.f32.mrb[0].mxu0
      %v911 = vadd.f32 %v342, %v910
      %v912 = vpop.f32.mrb[0].mxu0
      %913 = vmatprep.mubr.bf16.mxu0 %v544
      %914 = vmatmul.mubr.bf16.gmra.mrb[0].mxu0 %v543
      %v915 = vpop.f32.mrb[0].mxu0
      %v916 = vadd.f32 %v342, %v915
      %v917 = vpop.f32.mrb[0].mxu0
      %v918 = vpop.f32.mrb[0].mxu0
      %v919 = vadd.f32 %v342, %v918
      %v920 = vpop.f32.mrb[0].mxu0
      %921 = vmatprep.mubr.bf16.mxu0 %v547
      %922 = vmatmul.mubr.bf16.gmra.mrb[0].mxu0 %v546
      %v923 = vpop.f32.mrb[0].mxu0
      %v924 = vadd.f32 %v342, %v923
      %v925 = vpop.f32.mrb[0].mxu0
      %v926 = vpop.f32.mrb[0].mxu0
      %v927 = vadd.f32 %v342, %v926
      %v928 = vpop.f32.mrb[0].mxu0
      %929 = vmatprep.mubr.bf16.mxu0 %v550
      %930 = vmatmul.mubr.bf16.gmra.mrb[0].mxu0 %v549
      %v931 = vpop.f32.mrb[0].mxu0
      %v932 = vadd.f32 %v342, %v931
      %v933 = vpop.f32.mrb[0].mxu0
      %v934 = vpop.f32.mrb[0].mxu0
      %v935 = vadd.f32 %v342, %v934
      %v936 = vpop.f32.mrb[0].mxu0
      %937 = vdwg.mxu0
      %938 = vmatprep.subr.bf16.mxu0 0
      %939 = vmatpush1.bf16.msra.mxu0 %v692
      %940 = vmatprep.subr.bf16.mxu0 0
      %941 = vmatpush1.bf16.msra.mxu0 %v693
      %942 = vmatprep.subr.bf16.mxu0 0
      %943 = vmatpush1.bf16.msra.mxu0 %v694
      %944 = vmatprep.subr.bf16.mxu0 0
      %945 = vmatpush1.bf16.msra.mxu0 %v695
      %946 = vmatprep.subr.bf16.mxu0 0
      %947 = vmatpush1.bf16.msra.mxu0 %v696
      %948 = vmatprep.subr.bf16.mxu0 0
      %949 = vmatpush1.bf16.msra.mxu0 %v697
      %950 = vmatprep.subr.bf16.mxu0 0
      %951 = vmatpush1.bf16.msra.mxu0 %v775
      %952 = vmatprep.subr.bf16.mxu0 0
      %953 = vmatpush1.bf16.msra.mxu0 0
      %954 = vmatprep.subr.bf16.mxu0 0
      %955 = vmatpush1.bf16.msra.mxu0 0
      %956 = vmatprep.subr.bf16.mxu0 0
      %957 = vmatpush1.bf16.msra.mxu0 0
      %958 = vmatprep.subr.bf16.mxu0 0
      %959 = vmatpush1.bf16.msra.mxu0 0
      %960 = vmatprep.subr.bf16.mxu0 0
      %961 = vmatpush1.bf16.msra.mxu0 0
      %962 = vmatprep.subr.bf16.mxu0 0
      %963 = vmatpush1.bf16.msra.mxu0 0
      %964 = vmatprep.subr.bf16.mxu0 0
      %965 = vmatpush1.bf16.msra.mxu0 0
      %966 = vmatprep.subr.bf16.mxu0 0
      %967 = vmatpush1.bf16.msra.mxu0 0
      %968 = vmatprep.subr.bf16.mxu0 0
      %969 = vmatpush1.bf16.msra.mxu0 0
      %970 = vmatprep.mubr.bf16.mxu0 0
      %971 = vmatmul.mubr.bf16.gmra.mrb[0].mxu0 %v723
      %v972 = vpop.f32.mrb[0].mxu0
      %v973 = vadd.f32 %v812, %v972
      %v974 = vpop.f32.mrb[0].mxu0
      %v975 = vpop.f32.mrb[0].mxu0
      %v976 = vadd.f32 %v815, %v975
      %v977 = vpop.f32.mrb[0].mxu0
      %978 = vmatprep.mubr.bf16.mxu0 0
      %979 = vmatmul.mubr.bf16.gmra.mrb[0].mxu0 %v726
      %v980 = vpop.f32.mrb[0].mxu0
      %v981 = vadd.f32 %v820, %v980
      %v982 = vpop.f32.mrb[0].mxu0
      %v983 = vpop.f32.mrb[0].mxu0
      %v984 = vadd.f32 %v823, %v983
      %v985 = vpop.f32.mrb[0].mxu0
      %986 = vmatprep.mubr.bf16.mxu0 0
      %987 = vmatmul.mubr.bf16.gmra.mrb[0].mxu0 %v729
      %v988 = vpop.f32.mrb[0].mxu0
      %v989 = vadd.f32 %v828, %v988
      %v990 = vpop.f32.mrb[0].mxu0
      %v991 = vpop.f32.mrb[0].mxu0
      %v992 = vadd.f32 %v831, %v991
      %v993 = vpop.f32.mrb[0].mxu0
      %994 = vmatprep.mubr.bf16.mxu0 0
      %995 = vmatmul.mubr.bf16.gmra.mrb[0].mxu0 %v732
      %v996 = vpop.f32.mrb[0].mxu0
      %v997 = vadd.f32 %v836, %v996
      %v998 = vpop.f32.mrb[0].mxu0
      %v999 = vpop.f32.mrb[0].mxu0
      %v1000 = vadd.f32 %v839, %v999
      %v1001 = vpop.f32.mrb[0].mxu0
      %1002 = vmatprep.mubr.bf16.mxu0 0
      %1003 = vmatmul.mubr.bf16.gmra.mrb[0].mxu0 %v735
      %v1004 = vpop.f32.mrb[0].mxu0
      %v1005 = vadd.f32 %v844, %v1004
      %v1006 = vpop.f32.mrb[0].mxu0
      %v1007 = vpop.f32.mrb[0].mxu0
      %v1008 = vadd.f32 %v847, %v1007
      %v1009 = vpop.f32.mrb[0].mxu0
      %1010 = vmatprep.mubr.bf16.mxu0 0
      %1011 = vmatmul.mubr.bf16.gmra.mrb[0].mxu0 %v738
      %v1012 = vpop.f32.mrb[0].mxu0
      %v1013 = vadd.f32 %v852, %v1012
      %v1014 = vpop.f32.mrb[0].mxu0
      %v1015 = vpop.f32.mrb[0].mxu0
      %v1016 = vadd.f32 %v855, %v1015
      %v1017 = vpop.f32.mrb[0].mxu0
      %1018 = vmatprep.mubr.bf16.mxu0 0
      %1019 = vmatmul.mubr.bf16.gmra.mrb[0].mxu0 %v741
      %v1020 = vpop.f32.mrb[0].mxu0
      %v1021 = vadd.f32 %v860, %v1020
      %v1022 = vpop.f32.mrb[0].mxu0
      %v1023 = vpop.f32.mrb[0].mxu0
      %v1024 = vadd.f32 %v863, %v1023
      %v1025 = vpop.f32.mrb[0].mxu0
      %1026 = vmatprep.mubr.bf16.mxu0 0
      %1027 = vmatmul.mubr.bf16.gmra.mrb[0].mxu0 %v744
      %v1028 = vpop.f32.mrb[0].mxu0
      %v1029 = vadd.f32 %v868, %v1028
      %v1030 = vpop.f32.mrb[0].mxu0
      %v1031 = vpop.f32.mrb[0].mxu0
      %v1032 = vadd.f32 %v871, %v1031
      %v1033 = vpop.f32.mrb[0].mxu0
      %1034 = vmatprep.mubr.bf16.mxu0 0
      %1035 = vmatmul.mubr.bf16.gmra.mrb[0].mxu0 %v747
      %v1036 = vpop.f32.mrb[0].mxu0
      %v1037 = vadd.f32 %v876, %v1036
      %v1038 = vpop.f32.mrb[0].mxu0
      %v1039 = vpop.f32.mrb[0].mxu0
      %v1040 = vadd.f32 %v879, %v1039
      %v1041 = vpop.f32.mrb[0].mxu0
      %1042 = vmatprep.mubr.bf16.mxu0 0
      %1043 = vmatmul.mubr.bf16.gmra.mrb[0].mxu0 %v750
      %v1044 = vpop.f32.mrb[0].mxu0
      %v1045 = vadd.f32 %v884, %v1044
      %v1046 = vpop.f32.mrb[0].mxu0
      %v1047 = vpop.f32.mrb[0].mxu0
      %v1048 = vadd.f32 %v887, %v1047
      %v1049 = vpop.f32.mrb[0].mxu0
      %1050 = vmatprep.mubr.bf16.mxu0 0
      %1051 = vmatmul.mubr.bf16.gmra.mrb[0].mxu0 %v753
      %v1052 = vpop.f32.mrb[0].mxu0
      %v1053 = vadd.f32 %v892, %v1052
      %v1054 = vpop.f32.mrb[0].mxu0
      %v1055 = vpop.f32.mrb[0].mxu0
      %v1056 = vadd.f32 %v895, %v1055
      %v1057 = vpop.f32.mrb[0].mxu0
      %1058 = vmatprep.mubr.bf16.mxu0 0
      %1059 = vmatmul.mubr.bf16.gmra.mrb[0].mxu0 %v756
      %v1060 = vpop.f32.mrb[0].mxu0
      %v1061 = vadd.f32 %v900, %v1060
      %v1062 = vpop.f32.mrb[0].mxu0
      %v1063 = vpop.f32.mrb[0].mxu0
      %v1064 = vadd.f32 %v903, %v1063
      %v1065 = vpop.f32.mrb[0].mxu0
      %1066 = vmatprep.mubr.bf16.mxu0 0
      %1067 = vmatmul.mubr.bf16.gmra.mrb[0].mxu0 %v759
      %v1068 = vpop.f32.mrb[0].mxu0
      %v1069 = vadd.f32 %v908, %v1068
      %v1070 = vpop.f32.mrb[0].mxu0
      %v1071 = vpop.f32.mrb[0].mxu0
      %v1072 = vadd.f32 %v911, %v1071
      %v1073 = vpop.f32.mrb[0].mxu0
      %1074 = vmatprep.mubr.bf16.mxu0 0
      %1075 = vmatmul.mubr.bf16.gmra.mrb[0].mxu0 %v762
      %v1076 = vpop.f32.mrb[0].mxu0
      %v1077 = vadd.f32 %v916, %v1076
      %v1078 = vpop.f32.mrb[0].mxu0
      %v1079 = vpop.f32.mrb[0].mxu0
      %v1080 = vadd.f32 %v919, %v1079
      %v1081 = vpop.f32.mrb[0].mxu0
      %1082 = vmatprep.mubr.bf16.mxu0 0
      %1083 = vmatmul.mubr.bf16.gmra.mrb[0].mxu0 %v765
      %v1084 = vpop.f32.mrb[0].mxu0
      %v1085 = vadd.f32 %v924, %v1084
      %v1086 = vpop.f32.mrb[0].mxu0
      %v1087 = vpop.f32.mrb[0].mxu0
      %v1088 = vadd.f32 %v927, %v1087
      %v1089 = vpop.f32.mrb[0].mxu0
      %1090 = vmatprep.mubr.bf16.mxu0 0
      %1091 = vmatmul.mubr.bf16.gmra.mrb[0].mxu0 %v768
      %v1092 = vpop.f32.mrb[0].mxu0
      %v1093 = vadd.f32 %v932, %v1092
      %v1094 = vpop.f32.mrb[0].mxu0
      %v1095 = vpop.f32.mrb[0].mxu0
      %v1096 = vadd.f32 %v935, %v1095
      %v1097 = vpop.f32.mrb[0].mxu0
      %1098 = vdwg.mxu0
      %v1099 = vmax.f32 %v973, 0.0
      %v1100 = vmax.f32 %v976, 0.0
      %v1101 = vmax.f32 %v981, 0.0
      %v1102 = vmax.f32 %v984, 0.0
      %v1103 = vmax.f32 %v989, 0.0
      %v1104 = vmax.f32 %v992, 0.0
      %v1105 = vmax.f32 %v997, 0.0
      %v1106 = vmax.f32 %v1000, 0.0
      %v1107 = vmax.f32 %v1005, 0.0
      %v1108 = vmax.f32 %v1008, 0.0
      %v1109 = vmax.f32 %v1013, 0.0
      %v1110 = vmax.f32 %v1016, 0.0
      %v1111 = vmax.f32 %v1021, 0.0
      %v1112 = vmax.f32 %v1024, 0.0
      %v1113 = vmax.f32 %v1029, 0.0
      %v1114 = vmax.f32 %v1032, 0.0
      %v1115 = vmax.f32 %v1037, 0.0
      %v1116 = vmax.f32 %v1040, 0.0
      %v1117 = vmax.f32 %v1045, 0.0
      %v1118 = vmax.f32 %v1048, 0.0
      %v1119 = vmax.f32 %v1053, 0.0
      %v1120 = vmax.f32 %v1056, 0.0
      %v1121 = vmax.f32 %v1061, 0.0
      %v1122 = vmax.f32 %v1064, 0.0
      %v1123 = vmax.f32 %v1069, 0.0
      %v1124 = vmax.f32 %v1072, 0.0
      %v1125 = vmax.f32 %v1077, 0.0
      %v1126 = vmax.f32 %v1080, 0.0
      %v1127 = vmax.f32 %v1085, 0.0
      %v1128 = vmax.f32 %v1088, 0.0
      %v1129 = vmax.f32 %v1093, 0.0
      %v1130 = vmax.f32 %v1096, 0.0
      %v1131 = vld [vmem:[%s218] sm:$0xff]
      %v1132 = vld [vmem:[%s218 + $0x8] sm:$0xff]
      %v1133 = vld [vmem:[%s218 + $0x10] sm:$0xff]
      %v1134 = vld [vmem:[%s218 + $0x18] sm:$0xff]
      %v1135 = vld [vmem:[%s218 + $0x20] sm:$0xff]
      %v1136 = vld [vmem:[%s218 + $0x28] sm:$0xff]
      %v1137 = vld [vmem:[%s218 + $0x30] sm:$0xff]
      %v1138 = vld [vmem:[%s218 + $0x38] sm:$0xff]
      %v1139 = vld [vmem:[%s218 + $0x40] sm:$0xff]
      %v1140 = vld [vmem:[%s218 + $0x48] sm:$0xff]
      %v1141 = vld [vmem:[%s218 + $0x50] sm:$0xff]
      %v1142 = vld [vmem:[%s218 + $0x58] sm:$0xff]
      %v1143 = vld [vmem:[%s218 + $0x60] sm:$0xff]
      %v1144 = vld [vmem:[%s218 + $0x68] sm:$0xff]
      %v1145 = vld [vmem:[%s218 + $0x70] sm:$0xff]
      %v1146 = vld [vmem:[%s218 + $0x78] sm:$0xff]
      %v1147 = vld [vmem:[%s218 + $0x80] sm:$0xff]
      %v1148 = vld [vmem:[%s218 + $0x88] sm:$0xff]
      %v1149 = vld [vmem:[%s218 + $0x90] sm:$0xff]
      %v1150 = vld [vmem:[%s218 + $0x98] sm:$0xff]
      %v1151 = vld [vmem:[%s218 + $0xa0] sm:$0xff]
      %v1152 = vld [vmem:[%s218 + $0xa8] sm:$0xff]
      %v1153 = vld [vmem:[%s218 + $0xb0] sm:$0xff]
      %v1154 = vld [vmem:[%s218 + $0xb8] sm:$0xff]
      %v1155 = vld [vmem:[%s218 + $0xc0] sm:$0xff]
      %v1156 = vld [vmem:[%s218 + $0xc8] sm:$0xff]
      %v1157 = vld [vmem:[%s218 + $0xd0] sm:$0xff]
      %v1158 = vld [vmem:[%s218 + $0xd8] sm:$0xff]
      %v1159 = vld [vmem:[%s218 + $0xe0] sm:$0xff]
      %v1160 = vld [vmem:[%s218 + $0xe8] sm:$0xff]
      %v1161 = vld [vmem:[%s218 + $0xf0] sm:$0xff]
      %v1162 = vld [vmem:[%s218 + $0xf8] sm:$0xff]
      %vm1163 = vcmp.ge.u32.totalorder %v1131, 2147483648
      %vm1164 = vcmp.ge.u32.totalorder %v1132, 2147483648
      %vm1165 = vcmp.ge.u32.totalorder %v1133, 2147483648
      %vm1166 = vcmp.ge.u32.totalorder %v1134, 2147483648
      %vm1167 = vcmp.ge.u32.totalorder %v1135, 2147483648
      %vm1168 = vcmp.ge.u32.totalorder %v1136, 2147483648
      %vm1169 = vcmp.ge.u32.totalorder %v1137, 2147483648
      %vm1170 = vcmp.ge.u32.totalorder %v1138, 2147483648
      %vm1171 = vcmp.ge.u32.totalorder %v1139, 2147483648
      %vm1172 = vcmp.ge.u32.totalorder %v1140, 2147483648
      %vm1173 = vcmp.ge.u32.totalorder %v1141, 2147483648
      %vm1174 = vcmp.ge.u32.totalorder %v1142, 2147483648
      %vm1175 = vcmp.ge.u32.totalorder %v1143, 2147483648
      %vm1176 = vcmp.ge.u32.totalorder %v1144, 2147483648
      %vm1177 = vcmp.ge.u32.totalorder %v1145, 2147483648
      %vm1178 = vcmp.ge.u32.totalorder %v1146, 2147483648
      %vm1179 = vcmp.ge.u32.totalorder %v1147, 2147483648
      %vm1180 = vcmp.ge.u32.totalorder %v1148, 2147483648
      %vm1181 = vcmp.ge.u32.totalorder %v1149, 2147483648
      %vm1182 = vcmp.ge.u32.totalorder %v1150, 2147483648
      %vm1183 = vcmp.ge.u32.totalorder %v1151, 2147483648
      %vm1184 = vcmp.ge.u32.totalorder %v1152, 2147483648
      %vm1185 = vcmp.ge.u32.totalorder %v1153, 2147483648
      %vm1186 = vcmp.ge.u32.totalorder %v1154, 2147483648
      %vm1187 = vcmp.ge.u32.totalorder %v1155, 2147483648
      %vm1188 = vcmp.ge.u32.totalorder %v1156, 2147483648
      %vm1189 = vcmp.ge.u32.totalorder %v1157, 2147483648
      %vm1190 = vcmp.ge.u32.totalorder %v1158, 2147483648
      %vm1191 = vcmp.ge.u32.totalorder %v1159, 2147483648
      %vm1192 = vcmp.ge.u32.totalorder %v1160, 2147483648
      %vm1193 = vcmp.ge.u32.totalorder %v1161, 2147483648
      %vm1194 = vcmp.ge.u32.totalorder %v1162, 2147483648
      %v1195 = vmul.f32 %v1099, 2.0
      %v1196 = vmul.f32 %v1100, 2.0
      %v1197 = vmul.f32 %v1101, 2.0
      %v1198 = vmul.f32 %v1102, 2.0
      %v1199 = vmul.f32 %v1103, 2.0
      %v1200 = vmul.f32 %v1104, 2.0
      %v1201 = vmul.f32 %v1105, 2.0
      %v1202 = vmul.f32 %v1106, 2.0
      %v1203 = vmul.f32 %v1107, 2.0
      %v1204 = vmul.f32 %v1108, 2.0
      %v1205 = vmul.f32 %v1109, 2.0
      %v1206 = vmul.f32 %v1110, 2.0
      %v1207 = vmul.f32 %v1111, 2.0
      %v1208 = vmul.f32 %v1112, 2.0
      %v1209 = vmul.f32 %v1113, 2.0
      %v1210 = vmul.f32 %v1114, 2.0
      %v1211 = vmul.f32 %v1115, 2.0
      %v1212 = vmul.f32 %v1116, 2.0
      %v1213 = vmul.f32 %v1117, 2.0
      %v1214 = vmul.f32 %v1118, 2.0
      %v1215 = vmul.f32 %v1119, 2.0
      %v1216 = vmul.f32 %v1120, 2.0
      %v1217 = vmul.f32 %v1121, 2.0
      %v1218 = vmul.f32 %v1122, 2.0
      %v1219 = vmul.f32 %v1123, 2.0
      %v1220 = vmul.f32 %v1124, 2.0
      %v1221 = vmul.f32 %v1125, 2.0
      %v1222 = vmul.f32 %v1126, 2.0
      %v1223 = vmul.f32 %v1127, 2.0
      %v1224 = vmul.f32 %v1128, 2.0
      %v1225 = vmul.f32 %v1129, 2.0
      %v1226 = vmul.f32 %v1130, 2.0
      %v1227 = vsel %vm1163, %v1195, 0.0
      %v1228 = vsel %vm1164, %v1196, 0.0
      %v1229 = vsel %vm1165, %v1197, 0.0
      %v1230 = vsel %vm1166, %v1198, 0.0
      %v1231 = vsel %vm1167, %v1199, 0.0
      %v1232 = vsel %vm1168, %v1200, 0.0
      %v1233 = vsel %vm1169, %v1201, 0.0
      %v1234 = vsel %vm1170, %v1202, 0.0
      %v1235 = vsel %vm1171, %v1203, 0.0
      %v1236 = vsel %vm1172, %v1204, 0.0
      %v1237 = vsel %vm1173, %v1205, 0.0
      %v1238 = vsel %vm1174, %v1206, 0.0
      %v1239 = vsel %vm1175, %v1207, 0.0
      %v1240 = vsel %vm1176, %v1208, 0.0
      %v1241 = vsel %vm1177, %v1209, 0.0
      %v1242 = vsel %vm1178, %v1210, 0.0
      %v1243 = vsel %vm1179, %v1211, 0.0
      %v1244 = vsel %vm1180, %v1212, 0.0
      %v1245 = vsel %vm1181, %v1213, 0.0
      %v1246 = vsel %vm1182, %v1214, 0.0
      %v1247 = vsel %vm1183, %v1215, 0.0
      %v1248 = vsel %vm1184, %v1216, 0.0
      %v1249 = vsel %vm1185, %v1217, 0.0
      %v1250 = vsel %vm1186, %v1218, 0.0
      %v1251 = vsel %vm1187, %v1219, 0.0
      %v1252 = vsel %vm1188, %v1220, 0.0
      %v1253 = vsel %vm1189, %v1221, 0.0
      %v1254 = vsel %vm1190, %v1222, 0.0
      %v1255 = vsel %vm1191, %v1223, 0.0
      %v1256 = vsel %vm1192, %v1224, 0.0
      %v1257 = vsel %vm1193, %v1225, 0.0
      %v1258 = vsel %vm1194, %v1226, 0.0
      %1259 = vst [vmem:[%s224] sm:$0xff] %v1227
      %1260 = vst [vmem:[%s224 + $0x8] sm:$0xff] %v1228
      %1261 = vst [vmem:[%s224 + $0x10] sm:$0xff] %v1229
      %1262 = vst [vmem:[%s224 + $0x18] sm:$0xff] %v1230
      %1263 = vst [vmem:[%s224 + $0x20] sm:$0xff] %v1231
      %1264 = vst [vmem:[%s224 + $0x28] sm:$0xff] %v1232
      %1265 = vst [vmem:[%s224 + $0x30] sm:$0xff] %v1233
      %1266 = vst [vmem:[%s224 + $0x38] sm:$0xff] %v1234
      %1267 = vst [vmem:[%s224 + $0x40] sm:$0xff] %v1235
      %1268 = vst [vmem:[%s224 + $0x48] sm:$0xff] %v1236
      %1269 = vst [vmem:[%s224 + $0x50] sm:$0xff] %v1237
      %1270 = vst [vmem:[%s224 + $0x58] sm:$0xff] %v1238
      %1271 = vst [vmem:[%s224 + $0x60] sm:$0xff] %v1239
      %1272 = vst [vmem:[%s224 + $0x68] sm:$0xff] %v1240
      %1273 = vst [vmem:[%s224 + $0x70] sm:$0xff] %v1241
      %1274 = vst [vmem:[%s224 + $0x78] sm:$0xff] %v1242
      %1275 = vst [vmem:[%s224 + $0x80] sm:$0xff] %v1243
      %1276 = vst [vmem:[%s224 + $0x88] sm:$0xff] %v1244
      %1277 = vst [vmem:[%s224 + $0x90] sm:$0xff] %v1245
      %1278 = vst [vmem:[%s224 + $0x98] sm:$0xff] %v1246
      %1279 = vst [vmem:[%s224 + $0xa0] sm:$0xff] %v1247
      %1280 = vst [vmem:[%s224 + $0xa8] sm:$0xff] %v1248
      %1281 = vst [vmem:[%s224 + $0xb0] sm:$0xff] %v1249
      %1282 = vst [vmem:[%s224 + $0xb8] sm:$0xff] %v1250
      %1283 = vst [vmem:[%s224 + $0xc0] sm:$0xff] %v1251
      %1284 = vst [vmem:[%s224 + $0xc8] sm:$0xff] %v1252
      %1285 = vst [vmem:[%s224 + $0xd0] sm:$0xff] %v1253
      %1286 = vst [vmem:[%s224 + $0xd8] sm:$0xff] %v1254
      %1287 = vst [vmem:[%s224 + $0xe0] sm:$0xff] %v1255
      %1288 = vst [vmem:[%s224 + $0xe8] sm:$0xff] %v1256
      %1289 = vst [vmem:[%s224 + $0xf0] sm:$0xff] %v1257
      %1290 = vst [vmem:[%s224 + $0xf8] sm:$0xff] %v1258
      %s1291 = smul.u32 32, %s15
      %p1292 = scmp.lt.s32.totalorder %s1291, 127
      %s1293 = scalar_select %p1292, %s1291, 127
      %s1294 = smul.addr %s1293, 8
      %s1295 = scalar_lea.vmem %s4, %s1294
      // Predicated region
      $region37: #{probabilistic_alexnet_forward.13} parent=35 // pred_check
        %p1296 = pneg %p127
      $region38: #{probabilistic_alexnet_forward.13} parent=35 // pred_check_branch
        %1298 = sbr.rel (%p1296) target = $region40
      $region39: #{probabilistic_alexnet_forward.13} parent=35 // pred_region
        %s1299 = smul.u32 32, %s15
      $region40: #{probabilistic_alexnet_forward.13} parent=35 // pred_fallthru
        _
    $region36: #{probabilistic_alexnet_forward.13} parent=5 // pred_fallthru
      _
    %p1300 = scmp.le.s32.totalorder 2, %s10
    // Predicated region
    $region41: #{probabilistic_alexnet_forward.13} parent=5 // pred_check
      %p1301 = pneg %p1300
    $region42: #{probabilistic_alexnet_forward.13} parent=5 // pred_check_branch
      %1303 = sbr.rel (%p1301) target = $region44
    $region43: #{probabilistic_alexnet_forward.13} parent=5 // pred_region
      %s1304 = ssub.s32 %s10, 2
      // Predicated region
      $region45: #{probabilistic_alexnet_forward.13} parent=43 // pred_check
        %p1305 = pneg %p133
      $region46: #{probabilistic_alexnet_forward.13} parent=43 // pred_check_branch
        %1307 = sbr.rel (%p1305) target = $region48
      $region47: #{probabilistic_alexnet_forward.13} parent=43 // pred_region
        %s1308 = smul.u32 32, %s16
        %p1309 = scmp.lt.s32.totalorder %s1308, 127
        %s1310 = scalar_select %p1309, %s1308, 127
        %s1311 = smul.addr %s1310, 8
        %s1312 = scalar_lea.vmem %s4, %s1311
      $region48: #{probabilistic_alexnet_forward.13} parent=43 // pred_fallthru
        _
    $region44: #{probabilistic_alexnet_forward.13} parent=5 // pred_fallthru
      _
  $region6: #{probabilistic_alexnet_forward.13} parent=0 // loop_footer
    %s14 = sadd.s32 1, %s10
  $region7: #{probabilistic_alexnet_forward.13} parent=0 // loop_footer_branch
    %9 = sbr.rel target = $region3
  $region8: #{probabilistic_alexnet_forward.13} parent=0 // loop_exit
    _

// kernel: probabilistic_alexnet_forward.14
$region0: #{probabilistic_alexnet_forward.14}
  #allocation0 [shape = 'u32[]', space=smem, size = 0x4, offset = 0x4, fixed_abs, tag = 'smem constant byte address 0x4 - core index']
  #allocation1 [shape = 'u32[144,128]{1,0:T(1,128)}', space=vmem, size = 0x12000, scoped, tag = 'internal scratch']
  %s0 = inlined_call_operand.vmem [shape: f32[216,16], index: 0, kind: input, shape index: {}]
  %s1 = inlined_call_operand.vmem [shape: f32[216,16], index: 1, kind: input, shape index: {}]
  %s2 = inlined_call_operand.vmem [shape: f32[216,16], index: 2, kind: input, shape index: {}]
  %s3 = inlined_call_operand.vmem [shape: f32[216,16], index: 3, kind: input, shape index: {}]
  %s4 = inlined_call_operand.vmem [shape: f32[216,16], index: 4, kind: input, shape index: {}]
  %s5 = inlined_call_operand.vmem [shape: f32[216,16], index: 5, kind: input, shape index: {}]
  %s6 = inlined_call_operand.vmem [shape: f32[216,16], index: 6, kind: input, shape index: {}]
  %s7 = inlined_call_operand.vmem [shape: f32[216,16], index: 7, kind: input, shape index: {}]
  %s8 = inlined_call_operand.vmem [shape: f32[216,16], index: 8, kind: input, shape index: {}]
  %s9 = inlined_call_operand.vmem [shape: f32[216,16], index: 9, kind: output, shape index: {}]
  %s10 = sld [smem:[#allocation0]]
  $region46: #{probabilistic_alexnet_forward.14} parent=0
    _
  %s12 = ssub.s32 1, %s10
  %s13 = scalar_select 0, %s12, %s10
  // Predicated region
  $region2: #{probabilistic_alexnet_forward.14} parent=0 // pred_check
    _
  $region3: #{probabilistic_alexnet_forward.14} parent=0 // pred_check_branch
    %15 = sbr.rel (0) target = $region5
  $region4: #{probabilistic_alexnet_forward.14} parent=0 // pred_region
    _
  $region5: #{probabilistic_alexnet_forward.14} parent=0 // pred_fallthru
    _
  // Predicated region
  $region6: #{probabilistic_alexnet_forward.14} parent=0 // pred_check
    _
  $region7: #{probabilistic_alexnet_forward.14} parent=0 // pred_check_branch
    %17 = sbr.rel (0) target = $region9
  $region8: #{probabilistic_alexnet_forward.14} parent=0 // pred_region
    _
  $region9: #{probabilistic_alexnet_forward.14} parent=0 // pred_fallthru
    _
  // Predicated region
  $region10: #{probabilistic_alexnet_forward.14} parent=0 // pred_check
    _
  $region11: #{probabilistic_alexnet_forward.14} parent=0 // pred_check_branch
    %19 = sbr.rel (0) target = $region13
  $region12: #{probabilistic_alexnet_forward.14} parent=0 // pred_region
    _
  $region13: #{probabilistic_alexnet_forward.14} parent=0 // pred_fallthru
    _
  // Predicated region
  $region14: #{probabilistic_alexnet_forward.14} parent=0 // pred_check
    _
  $region15: #{probabilistic_alexnet_forward.14} parent=0 // pred_check_branch
    %21 = sbr.rel (0) target = $region17
  $region16: #{probabilistic_alexnet_forward.14} parent=0 // pred_region
    _
  $region17: #{probabilistic_alexnet_forward.14} parent=0 // pred_fallthru
    _
  // Predicated region
  $region18: #{probabilistic_alexnet_forward.14} parent=0 // pred_check
    _
  $region19: #{probabilistic_alexnet_forward.14} parent=0 // pred_check_branch
    %23 = sbr.rel (0) target = $region21
  $region20: #{probabilistic_alexnet_forward.14} parent=0 // pred_region
    _
  $region21: #{probabilistic_alexnet_forward.14} parent=0 // pred_fallthru
    _
  // Predicated region
  $region22: #{probabilistic_alexnet_forward.14} parent=0 // pred_check
    _
  $region23: #{probabilistic_alexnet_forward.14} parent=0 // pred_check_branch
    %25 = sbr.rel (0) target = $region25
  $region24: #{probabilistic_alexnet_forward.14} parent=0 // pred_region
    _
  $region25: #{probabilistic_alexnet_forward.14} parent=0 // pred_fallthru
    _
  // Predicated region
  $region26: #{probabilistic_alexnet_forward.14} parent=0 // pred_check
    _
  $region27: #{probabilistic_alexnet_forward.14} parent=0 // pred_check_branch
    %27 = sbr.rel (0) target = $region29
  $region28: #{probabilistic_alexnet_forward.14} parent=0 // pred_region
    _
  $region29: #{probabilistic_alexnet_forward.14} parent=0 // pred_fallthru
    _
  // Predicated region
  $region30: #{probabilistic_alexnet_forward.14} parent=0 // pred_check
    _
  $region31: #{probabilistic_alexnet_forward.14} parent=0 // pred_check_branch
    %29 = sbr.rel (0) target = $region33
  $region32: #{probabilistic_alexnet_forward.14} parent=0 // pred_region
    _
  $region33: #{probabilistic_alexnet_forward.14} parent=0 // pred_fallthru
    _
  // Predicated region
  $region34: #{probabilistic_alexnet_forward.14} parent=0 // pred_check
    _
  $region35: #{probabilistic_alexnet_forward.14} parent=0 // pred_check_branch
    %31 = sbr.rel (0) target = $region37
  $region36: #{probabilistic_alexnet_forward.14} parent=0 // pred_region
    _
  $region37: #{probabilistic_alexnet_forward.14} parent=0 // pred_fallthru
    _
  %v32 = vld [vmem:[%s0] sm:$0xff]
  %v33 = vld [vmem:[%s0 + $0x8] sm:$0xff]
  %v34 = vld [vmem:[%s0 + $0x10] sm:$0xff]
  %v35 = vld [vmem:[%s0 + $0x18] sm:$0xff]
  %v36 = vld [vmem:[%s0 + $0x20] sm:$0xff]
  %v37 = vld [vmem:[%s0 + $0x28] sm:$0xff]
  %v38 = vld [vmem:[%s0 + $0x30] sm:$0xff]
  %v39 = vld [vmem:[%s0 + $0x38] sm:$0xff]
  %v40 = vld [vmem:[%s0 + $0x40] sm:$0xff]
  %v41 = vld [vmem:[%s0 + $0x48] sm:$0xff]
  %v42 = vld [vmem:[%s0 + $0x50] sm:$0xff]
  %v43 = vld [vmem:[%s0 + $0x58] sm:$0xff]
  %v44 = vld [vmem:[%s0 + $0x60] sm:$0xff]
  %v45 = vld [vmem:[%s0 + $0x68] sm:$0xff]
  %v46 = vld [vmem:[%s0 + $0x70] sm:$0xff]
  %v47 = vld [vmem:[%s0 + $0x78] sm:$0xff]
  %v48 = vld [vmem:[%s0 + $0x80] sm:$0xff]
  %v49 = vld [vmem:[%s0 + $0x88] sm:$0xff]
  %v50 = vld [vmem:[%s0 + $0x90] sm:$0xff]
  %v51 = vld [vmem:[%s0 + $0x98] sm:$0xff]
  %v52 = vld [vmem:[%s0 + $0xa0] sm:$0xff]
  %v53 = vld [vmem:[%s0 + $0xa8] sm:$0xff]
  %v54 = vld [vmem:[%s0 + $0xb0] sm:$0xff]
  %v55 = vld [vmem:[%s0 + $0xb8] sm:$0xff]
  %v56 = vld [vmem:[%s0 + $0xc0] sm:$0xff]
  %v57 = vld [vmem:[%s0 + $0xc8] sm:$0xff]
  %v58 = vld [vmem:[%s0 + $0xd0] sm:$0xff]
  %v59 = vld [vmem:[%s1] sm:$0xff]
  %v60 = vld [vmem:[%s1 + $0x8] sm:$0xff]
  %v61 = vld [vmem:[%s1 + $0x10] sm:$0xff]
  %v62 = vld [vmem:[%s1 + $0x18] sm:$0xff]
  %v63 = vld [vmem:[%s1 + $0x20] sm:$0xff]
  %v64 = vld [vmem:[%s1 + $0x28] sm:$0xff]
  %v65 = vld [vmem:[%s1 + $0x30] sm:$0xff]
  %v66 = vld [vmem:[%s1 + $0x38] sm:$0xff]
  %v67 = vld [vmem:[%s1 + $0x40] sm:$0xff]
  %v68 = vld [vmem:[%s1 + $0x48] sm:$0xff]
  %v69 = vld [vmem:[%s1 + $0x50] sm:$0xff]
  %v70 = vld [vmem:[%s1 + $0x58] sm:$0xff]
  %v71 = vld [vmem:[%s1 + $0x60] sm:$0xff]
  %v72 = vld [vmem:[%s1 + $0x68] sm:$0xff]
  %v73 = vld [vmem:[%s1 + $0x70] sm:$0xff]
  %v74 = vld [vmem:[%s1 + $0x78] sm:$0xff]
  %v75 = vld [vmem:[%s1 + $0x80] sm:$0xff]
  %v76 = vld [vmem:[%s1 + $0x88] sm:$0xff]
  %v77 = vld [vmem:[%s1 + $0x90] sm:$0xff]
  %v78 = vld [vmem:[%s1 + $0x98] sm:$0xff]
  %v79 = vld [vmem:[%s1 + $0xa0] sm:$0xff]
  %v80 = vld [vmem:[%s1 + $0xa8] sm:$0xff]
  %v81 = vld [vmem:[%s1 + $0xb0] sm:$0xff]
  %v82 = vld [vmem:[%s1 + $0xb8] sm:$0xff]
  %v83 = vld [vmem:[%s1 + $0xc0] sm:$0xff]
  %v84 = vld [vmem:[%s1 + $0xc8] sm:$0xff]
  %v85 = vld [vmem:[%s1 + $0xd0] sm:$0xff]
  %v86 = vld [vmem:[%s2] sm:$0xff]
  %v87 = vld [vmem:[%s2 + $0x8] sm:$0xff]
  %v88 = vld [vmem:[%s2 + $0x10] sm:$0xff]
  %v89 = vld [vmem:[%s2 + $0x18] sm:$0xff]
  %v90 = vld [vmem:[%s2 + $0x20] sm:$0xff]
  %v91 = vld [vmem:[%s2 + $0x28] sm:$0xff]
  %v92 = vld [vmem:[%s2 + $0x30] sm:$0xff]
  %v93 = vld [vmem:[%s2 + $0x38] sm:$0xff]
  %v94 = vld [vmem:[%s2 + $0x40] sm:$0xff]
  %v95 = vld [vmem:[%s2 + $0x48] sm:$0xff]
  %v96 = vld [vmem:[%s2 + $0x50] sm:$0xff]
  %v97 = vld [vmem:[%s2 + $0x58] sm:$0xff]
  %v98 = vld [vmem:[%s2 + $0x60] sm:$0xff]
  %v99 = vld [vmem:[%s2 + $0x68] sm:$0xff]
  %v100 = vld [vmem:[%s2 + $0x70] sm:$0xff]
  %v101 = vld [vmem:[%s2 + $0x78] sm:$0xff]
  %v102 = vld [vmem:[%s2 + $0x80] sm:$0xff]
  %v103 = vld [vmem:[%s2 + $0x88] sm:$0xff]
  %v104 = vld [vmem:[%s2 + $0x90] sm:$0xff]
  %v105 = vld [vmem:[%s2 + $0x98] sm:$0xff]
  %v106 = vld [vmem:[%s2 + $0xa0] sm:$0xff]
  %v107 = vld [vmem:[%s2 + $0xa8] sm:$0xff]
  %v108 = vld [vmem:[%s2 + $0xb0] sm:$0xff]
  %v109 = vld [vmem:[%s2 + $0xb8] sm:$0xff]
  %v110 = vld [vmem:[%s2 + $0xc0] sm:$0xff]
  %v111 = vld [vmem:[%s2 + $0xc8] sm:$0xff]
  %v112 = vld [vmem:[%s2 + $0xd0] sm:$0xff]
  %v113 = vld [vmem:[%s3] sm:$0xff]
  %v114 = vld [vmem:[%s3 + $0x8] sm:$0xff]
  %v115 = vld [vmem:[%s3 + $0x10] sm:$0xff]
  %v116 = vld [vmem:[%s3 + $0x18] sm:$0xff]
  %v117 = vld [vmem:[%s3 + $0x20] sm:$0xff]
  %v118 = vld [vmem:[%s3 + $0x28] sm:$0xff]
  %v119 = vld [vmem:[%s3 + $0x30] sm:$0xff]
  %v120 = vld [vmem:[%s3 + $0x38] sm:$0xff]
  %v121 = vld [vmem:[%s3 + $0x40] sm:$0xff]
  %v122 = vld [vmem:[%s3 + $0x48] sm:$0xff]
  %v123 = vld [vmem:[%s3 + $0x50] sm:$0xff]
  %v124 = vld [vmem:[%s3 + $0x58] sm:$0xff]
  %v125 = vld [vmem:[%s3 + $0x60] sm:$0xff]
  %v126 = vld [vmem:[%s3 + $0x68] sm:$0xff]
  %v127 = vld [vmem:[%s3 + $0x70] sm:$0xff]
  %v128 = vld [vmem:[%s3 + $0x78] sm:$0xff]
  %v129 = vld [vmem:[%s3 + $0x80] sm:$0xff]
  %v130 = vld [vmem:[%s3 + $0x88] sm:$0xff]
  %v131 = vld [vmem:[%s3 + $0x90] sm:$0xff]
  %v132 = vld [vmem:[%s3 + $0x98] sm:$0xff]
  %v133 = vld [vmem:[%s3 + $0xa0] sm:$0xff]
  %v134 = vld [vmem:[%s3 + $0xa8] sm:$0xff]
  %v135 = vld [vmem:[%s3 + $0xb0] sm:$0xff]
  %v136 = vld [vmem:[%s3 + $0xb8] sm:$0xff]
  %v137 = vld [vmem:[%s3 + $0xc0] sm:$0xff]
  %v138 = vld [vmem:[%s3 + $0xc8] sm:$0xff]
  %v139 = vld [vmem:[%s3 + $0xd0] sm:$0xff]
  %v140 = vld [vmem:[%s4] sm:$0xff]
  %v141 = vld [vmem:[%s4 + $0x8] sm:$0xff]
  %v142 = vld [vmem:[%s4 + $0x10] sm:$0xff]
  %v143 = vld [vmem:[%s4 + $0x18] sm:$0xff]
  %v144 = vld [vmem:[%s4 + $0x20] sm:$0xff]
  %v145 = vld [vmem:[%s4 + $0x28] sm:$0xff]
  %v146 = vld [vmem:[%s4 + $0x30] sm:$0xff]
  %v147 = vld [vmem:[%s4 + $0x38] sm:$0xff]
  %v148 = vld [vmem:[%s4 + $0x40] sm:$0xff]
  %v149 = vld [vmem:[%s4 + $0x48] sm:$0xff]
  %v150 = vld [vmem:[%s4 + $0x50] sm:$0xff]
  %v151 = vld [vmem:[%s4 + $0x58] sm:$0xff]
  %v152 = vld [vmem:[%s4 + $0x60] sm:$0xff]
  %v153 = vld [vmem:[%s4 + $0x68] sm:$0xff]
  %v154 = vld [vmem:[%s4 + $0x70] sm:$0xff]
  %v155 = vld [vmem:[%s4 + $0x78] sm:$0xff]
  %v156 = vld [vmem:[%s4 + $0x80] sm:$0xff]
  %v157 = vld [vmem:[%s4 + $0x88] sm:$0xff]
  %v158 = vld [vmem:[%s4 + $0x90] sm:$0xff]
  %v159 = vld [vmem:[%s4 + $0x98] sm:$0xff]
  %v160 = vld [vmem:[%s4 + $0xa0] sm:$0xff]
  %v161 = vld [vmem:[%s4 + $0xa8] sm:$0xff]
  %v162 = vld [vmem:[%s4 + $0xb0] sm:$0xff]
  %v163 = vld [vmem:[%s4 + $0xb8] sm:$0xff]
  %v164 = vld [vmem:[%s4 + $0xc0] sm:$0xff]
  %v165 = vld [vmem:[%s4 + $0xc8] sm:$0xff]
  %v166 = vld [vmem:[%s4 + $0xd0] sm:$0xff]
  %v167 = vld [vmem:[%s5] sm:$0xff]
  %v168 = vld [vmem:[%s5 + $0x8] sm:$0xff]
  %v169 = vld [vmem:[%s5 + $0x10] sm:$0xff]
  %v170 = vld [vmem:[%s5 + $0x18] sm:$0xff]
  %v171 = vld [vmem:[%s5 + $0x20] sm:$0xff]
  %v172 = vld [vmem:[%s5 + $0x28] sm:$0xff]
  %v173 = vld [vmem:[%s5 + $0x30] sm:$0xff]
  %v174 = vld [vmem:[%s5 + $0x38] sm:$0xff]
  %v175 = vld [vmem:[%s5 + $0x40] sm:$0xff]
  %v176 = vld [vmem:[%s5 + $0x48] sm:$0xff]
  %v177 = vld [vmem:[%s5 + $0x50] sm:$0xff]
  %v178 = vld [vmem:[%s5 + $0x58] sm:$0xff]
  %v179 = vld [vmem:[%s5 + $0x60] sm:$0xff]
  %v180 = vld [vmem:[%s5 + $0x68] sm:$0xff]
  %v181 = vld [vmem:[%s5 + $0x70] sm:$0xff]
  %v182 = vld [vmem:[%s5 + $0x78] sm:$0xff]
  %v183 = vld [vmem:[%s5 + $0x80] sm:$0xff]
  %v184 = vld [vmem:[%s5 + $0x88] sm:$0xff]
  %v185 = vld [vmem:[%s5 + $0x90] sm:$0xff]
  %v186 = vld [vmem:[%s5 + $0x98] sm:$0xff]
  %v187 = vld [vmem:[%s5 + $0xa0] sm:$0xff]
  %v188 = vld [vmem:[%s5 + $0xa8] sm:$0xff]
  %v189 = vld [vmem:[%s5 + $0xb0] sm:$0xff]
  %v190 = vld [vmem:[%s5 + $0xb8] sm:$0xff]
  %v191 = vld [vmem:[%s5 + $0xc0] sm:$0xff]
  %v192 = vld [vmem:[%s5 + $0xc8] sm:$0xff]
  %v193 = vld [vmem:[%s5 + $0xd0] sm:$0xff]
  %v194 = vld [vmem:[%s6] sm:$0xff]
  %v195 = vld [vmem:[%s6 + $0x8] sm:$0xff]
  %v196 = vld [vmem:[%s6 + $0x10] sm:$0xff]
  %v197 = vld [vmem:[%s6 + $0x18] sm:$0xff]
  %v198 = vld [vmem:[%s6 + $0x20] sm:$0xff]
  %v199 = vld [vmem:[%s6 + $0x28] sm:$0xff]
  %v200 = vld [vmem:[%s6 + $0x30] sm:$0xff]
  %v201 = vld [vmem:[%s6 + $0x38] sm:$0xff]
  %v202 = vld [vmem:[%s6 + $0x40] sm:$0xff]
  %v203 = vld [vmem:[%s6 + $0x48] sm:$0xff]
  %v204 = vld [vmem:[%s6 + $0x50] sm:$0xff]
  %v205 = vld [vmem:[%s6 + $0x58] sm:$0xff]
  %v206 = vld [vmem:[%s6 + $0x60] sm:$0xff]
  %v207 = vld [vmem:[%s6 + $0x68] sm:$0xff]
  %v208 = vld [vmem:[%s6 + $0x70] sm:$0xff]
  %v209 = vld [vmem:[%s6 + $0x78] sm:$0xff]
  %v210 = vld [vmem:[%s6 + $0x80] sm:$0xff]
  %v211 = vld [vmem:[%s6 + $0x88] sm:$0xff]
  %v212 = vld [vmem:[%s6 + $0x90] sm:$0xff]
  %v213 = vld [vmem:[%s6 + $0x98] sm:$0xff]
  %v214 = vld [vmem:[%s6 + $0xa0] sm:$0xff]
  %v215 = vld [vmem:[%s6 + $0xa8] sm:$0xff]
  %v216 = vld [vmem:[%s6 + $0xb0] sm:$0xff]
  %v217 = vld [vmem:[%s6 + $0xb8] sm:$0xff]
  %v218 = vld [vmem:[%s6 + $0xc0] sm:$0xff]
  %v219 = vld [vmem:[%s6 + $0xc8] sm:$0xff]
  %v220 = vld [vmem:[%s6 + $0xd0] sm:$0xff]
  %v221 = vld [vmem:[%s7] sm:$0xff]
  %v222 = vld [vmem:[%s7 + $0x8] sm:$0xff]
  %v223 = vld [vmem:[%s7 + $0x10] sm:$0xff]
  %v224 = vld [vmem:[%s7 + $0x18] sm:$0xff]
  %v225 = vld [vmem:[%s7 + $0x20] sm:$0xff]
  %v226 = vld [vmem:[%s7 + $0x28] sm:$0xff]
  %v227 = vld [vmem:[%s7 + $0x30] sm:$0xff]
  %v228 = vld [vmem:[%s7 + $0x38] sm:$0xff]
  %v229 = vld [vmem:[%s7 + $0x40] sm:$0xff]
  %v230 = vld [vmem:[%s7 + $0x48] sm:$0xff]
  %v231 = vld [vmem:[%s7 + $0x50] sm:$0xff]
  %v232 = vld [vmem:[%s7 + $0x58] sm:$0xff]
  %v233 = vld [vmem:[%s7 + $0x60] sm:$0xff]
  %v234 = vld [vmem:[%s7 + $0x68] sm:$0xff]
  %v235 = vld [vmem:[%s7 + $0x70] sm:$0xff]
  %v236 = vld [vmem:[%s7 + $0x78] sm:$0xff]
  %v237 = vld [vmem:[%s7 + $0x80] sm:$0xff]
  %v238 = vld [vmem:[%s7 + $0x88] sm:$0xff]
  %v239 = vld [vmem:[%s7 + $0x90] sm:$0xff]
  %v240 = vld [vmem:[%s7 + $0x98] sm:$0xff]
  %v241 = vld [vmem:[%s7 + $0xa0] sm:$0xff]
  %v242 = vld [vmem:[%s7 + $0xa8] sm:$0xff]
  %v243 = vld [vmem:[%s7 + $0xb0] sm:$0xff]
  %v244 = vld [vmem:[%s7 + $0xb8] sm:$0xff]
  %v245 = vld [vmem:[%s7 + $0xc0] sm:$0xff]
  %v246 = vld [vmem:[%s7 + $0xc8] sm:$0xff]
  %v247 = vld [vmem:[%s7 + $0xd0] sm:$0xff]
  %v248 = vld [vmem:[%s8] sm:$0xff]
  %v249 = vld [vmem:[%s8 + $0x8] sm:$0xff]
  %v250 = vld [vmem:[%s8 + $0x10] sm:$0xff]
  %v251 = vld [vmem:[%s8 + $0x18] sm:$0xff]
  %v252 = vld [vmem:[%s8 + $0x20] sm:$0xff]
  %v253 = vld [vmem:[%s8 + $0x28] sm:$0xff]
  %v254 = vld [vmem:[%s8 + $0x30] sm:$0xff]
  %v255 = vld [vmem:[%s8 + $0x38] sm:$0xff]
  %v256 = vld [vmem:[%s8 + $0x40] sm:$0xff]
  %v257 = vld [vmem:[%s8 + $0x48] sm:$0xff]
  %v258 = vld [vmem:[%s8 + $0x50] sm:$0xff]
  %v259 = vld [vmem:[%s8 + $0x58] sm:$0xff]
  %v260 = vld [vmem:[%s8 + $0x60] sm:$0xff]
  %v261 = vld [vmem:[%s8 + $0x68] sm:$0xff]
  %v262 = vld [vmem:[%s8 + $0x70] sm:$0xff]
  %v263 = vld [vmem:[%s8 + $0x78] sm:$0xff]
  %v264 = vld [vmem:[%s8 + $0x80] sm:$0xff]
  %v265 = vld [vmem:[%s8 + $0x88] sm:$0xff]
  %v266 = vld [vmem:[%s8 + $0x90] sm:$0xff]
  %v267 = vld [vmem:[%s8 + $0x98] sm:$0xff]
  %v268 = vld [vmem:[%s8 + $0xa0] sm:$0xff]
  %v269 = vld [vmem:[%s8 + $0xa8] sm:$0xff]
  %v270 = vld [vmem:[%s8 + $0xb0] sm:$0xff]
  %v271 = vld [vmem:[%s8 + $0xb8] sm:$0xff]
  %v272 = vld [vmem:[%s8 + $0xc0] sm:$0xff]
  %v273 = vld [vmem:[%s8 + $0xc8] sm:$0xff]
  %v274 = vld [vmem:[%s8 + $0xd0] sm:$0xff]
  %v275 = vmax.f32 %v32, %v59
  %v276 = vmax.f32 %v33, %v60
  %v277 = vmax.f32 %v34, %v61
  %v278 = vmax.f32 %v35, %v62
  %v279 = vmax.f32 %v36, %v63
  %v280 = vmax.f32 %v37, %v64
  %v281 = vmax.f32 %v38, %v65
  %v282 = vmax.f32 %v39, %v66
  %v283 = vmax.f32 %v40, %v67
  %v284 = vmax.f32 %v41, %v68
  %v285 = vmax.f32 %v42, %v69
  %v286 = vmax.f32 %v43, %v70
  %v287 = vmax.f32 %v44, %v71
  %v288 = vmax.f32 %v45, %v72
  %v289 = vmax.f32 %v46, %v73
  %v290 = vmax.f32 %v47, %v74
  %v291 = vmax.f32 %v48, %v75
  %v292 = vmax.f32 %v49, %v76
  %v293 = vmax.f32 %v50, %v77
  %v294 = vmax.f32 %v51, %v78
  %v295 = vmax.f32 %v52, %v79
  %v296 = vmax.f32 %v53, %v80
  %v297 = vmax.f32 %v54, %v81
  %v298 = vmax.f32 %v55, %v82
  %v299 = vmax.f32 %v56, %v83
  %v300 = vmax.f32 %v57, %v84
  %v301 = vmax.f32 %v58, %v85
  %v302 = vmax.f32 %v86, %v113
  %v303 = vmax.f32 %v87, %v114
  %v304 = vmax.f32 %v88, %v115
  %v305 = vmax.f32 %v89, %v116
  %v306 = vmax.f32 %v90, %v117
  %v307 = vmax.f32 %v91, %v118
  %v308 = vmax.f32 %v92, %v119
  %v309 = vmax.f32 %v93, %v120
  %v310 = vmax.f32 %v94, %v121
  %v311 = vmax.f32 %v95, %v122
  %v312 = vmax.f32 %v96, %v123
  %v313 = vmax.f32 %v97, %v124
  %v314 = vmax.f32 %v98, %v125
  %v315 = vmax.f32 %v99, %v126
  %v316 = vmax.f32 %v100, %v127
  %v317 = vmax.f32 %v101, %v128
  %v318 = vmax.f32 %v102, %v129
  %v319 = vmax.f32 %v103, %v130
  %v320 = vmax.f32 %v104, %v131
  %v321 = vmax.f32 %v105, %v132
  %v322 = vmax.f32 %v106, %v133
  %v323 = vmax.f32 %v107, %v134
  %v324 = vmax.f32 %v108, %v135
  %v325 = vmax.f32 %v109, %v136
  %v326 = vmax.f32 %v110, %v137
  %v327 = vmax.f32 %v111, %v138
  %v328 = vmax.f32 %v112, %v139
  %v329 = vmax.f32 %v140, %v167
  %v330 = vmax.f32 %v141, %v168
  %v331 = vmax.f32 %v142, %v169
  %v332 = vmax.f32 %v143, %v170
  %v333 = vmax.f32 %v144, %v171
  %v334 = vmax.f32 %v145, %v172
  %v335 = vmax.f32 %v146, %v173
  %v336 = vmax.f32 %v147, %v174
  %v337 = vmax.f32 %v148, %v175
  %v338 = vmax.f32 %v149, %v176
  %v339 = vmax.f32 %v150, %v177
  %v340 = vmax.f32 %v151, %v178
  %v341 = vmax.f32 %v152, %v179
  %v342 = vmax.f32 %v153, %v180
  %v343 = vmax.f32 %v154, %v181
  %v344 = vmax.f32 %v155, %v182
  %v345 = vmax.f32 %v156, %v183
  %v346 = vmax.f32 %v157, %v184
  %v347 = vmax.f32 %v158, %v185
  %v348 = vmax.f32 %v159, %v186
  %v349 = vmax.f32 %v160, %v187
  %v350 = vmax.f32 %v161, %v188
  %v351 = vmax.f32 %v162, %v189
  %v352 = vmax.f32 %v163, %v190
  %v353 = vmax.f32 %v164, %v191
  %v354 = vmax.f32 %v165, %v192
  %v355 = vmax.f32 %v166, %v193
  %v356 = vmax.f32 %v194, %v221
  %v357 = vmax.f32 %v195, %v222
  %v358 = vmax.f32 %v196, %v223
  %v359 = vmax.f32 %v197, %v224
  %v360 = vmax.f32 %v198, %v225
  %v361 = vmax.f32 %v199, %v226
  %v362 = vmax.f32 %v200, %v227
  %v363 = vmax.f32 %v201, %v228
  %v364 = vmax.f32 %v202, %v229
  %v365 = vmax.f32 %v203, %v230
  %v366 = vmax.f32 %v204, %v231
  %v367 = vmax.f32 %v205, %v232
  %v368 = vmax.f32 %v206, %v233
  %v369 = vmax.f32 %v207, %v234
  %v370 = vmax.f32 %v208, %v235
  %v371 = vmax.f32 %v209, %v236
  %v372 = vmax.f32 %v210, %v237
  %v373 = vmax.f32 %v211, %v238
  %v374 = vmax.f32 %v212, %v239
  %v375 = vmax.f32 %v213, %v240
  %v376 = vmax.f32 %v214, %v241
  %v377 = vmax.f32 %v215, %v242
  %v378 = vmax.f32 %v216, %v243
  %v379 = vmax.f32 %v217, %v244
  %v380 = vmax.f32 %v218, %v245
  %v381 = vmax.f32 %v219, %v246
  %v382 = vmax.f32 %v220, %v247
  %v383 = vmax.f32 %v275, %v302
  %v384 = vmax.f32 %v276, %v303
  %v385 = vmax.f32 %v277, %v304
  %v386 = vmax.f32 %v278, %v305
  %v387 = vmax.f32 %v279, %v306
  %v388 = vmax.f32 %v280, %v307
  %v389 = vmax.f32 %v281, %v308
  %v390 = vmax.f32 %v282, %v309
  %v391 = vmax.f32 %v283, %v310
  %v392 = vmax.f32 %v284, %v311
  %v393 = vmax.f32 %v285, %v312
  %v394 = vmax.f32 %v286, %v313
  %v395 = vmax.f32 %v287, %v314
  %v396 = vmax.f32 %v288, %v315
  %v397 = vmax.f32 %v289, %v316
  %v398 = vmax.f32 %v290, %v317
  %v399 = vmax.f32 %v291, %v318
  %v400 = vmax.f32 %v292, %v319
  %v401 = vmax.f32 %v293, %v320
  %v402 = vmax.f32 %v294, %v321
  %v403 = vmax.f32 %v295, %v322
  %v404 = vmax.f32 %v296, %v323
  %v405 = vmax.f32 %v297, %v324
  %v406 = vmax.f32 %v298, %v325
  %v407 = vmax.f32 %v299, %v326
  %v408 = vmax.f32 %v300, %v327
  %v409 = vmax.f32 %v301, %v328
  %v410 = vmax.f32 %v329, %v356
  %v411 = vmax.f32 %v330, %v357
  %v412 = vmax.f32 %v331, %v358
  %v413 = vmax.f32 %v332, %v359
  %v414 = vmax.f32 %v333, %v360
  %v415 = vmax.f32 %v334, %v361
  %v416 = vmax.f32 %v335, %v362
  %v417 = vmax.f32 %v336, %v363
  %v418 = vmax.f32 %v337, %v364
  %v419 = vmax.f32 %v338, %v365
  %v420 = vmax.f32 %v339, %v366
  %v421 = vmax.f32 %v340, %v367
  %v422 = vmax.f32 %v341, %v368
  %v423 = vmax.f32 %v342, %v369
  %v424 = vmax.f32 %v343, %v370
  %v425 = vmax.f32 %v344, %v371
  %v426 = vmax.f32 %v345, %v372
  %v427 = vmax.f32 %v346, %v373
  %v428 = vmax.f32 %v347, %v374
  %v429 = vmax.f32 %v348, %v375
  %v430 = vmax.f32 %v349, %v376
  %v431 = vmax.f32 %v350, %v377
  %v432 = vmax.f32 %v351, %v378
  %v433 = vmax.f32 %v352, %v379
  %v434 = vmax.f32 %v353, %v380
  %v435 = vmax.f32 %v354, %v381
  %v436 = vmax.f32 %v355, %v382
  %v437 = vmax.f32 %v383, %v410
  %v438 = vmax.f32 %v384, %v411
  %v439 = vmax.f32 %v385, %v412
  %v440 = vmax.f32 %v386, %v413
  %v441 = vmax.f32 %v387, %v414
  %v442 = vmax.f32 %v388, %v415
  %v443 = vmax.f32 %v389, %v416
  %v444 = vmax.f32 %v390, %v417
  %v445 = vmax.f32 %v391, %v418
  %v446 = vmax.f32 %v392, %v419
  %v447 = vmax.f32 %v393, %v420
  %v448 = vmax.f32 %v394, %v421
  %v449 = vmax.f32 %v395, %v422
  %v450 = vmax.f32 %v396, %v423
  %v451 = vmax.f32 %v397, %v424
  %v452 = vmax.f32 %v398, %v425
  %v453 = vmax.f32 %v399, %v426
  %v454 = vmax.f32 %v400, %v427
  %v455 = vmax.f32 %v401, %v428
  %v456 = vmax.f32 %v402, %v429
  %v457 = vmax.f32 %v403, %v430
  %v458 = vmax.f32 %v404, %v431
  %v459 = vmax.f32 %v405, %v432
  %v460 = vmax.f32 %v406, %v433
  %v461 = vmax.f32 %v407, %v434
  %v462 = vmax.f32 %v408, %v435
  %v463 = vmax.f32 %v409, %v436
  %v464 = vmax.f32 %v437, %v248
  %v465 = vmax.f32 %v438, %v249
  %v466 = vmax.f32 %v439, %v250
  %v467 = vmax.f32 %v440, %v251
  %v468 = vmax.f32 %v441, %v252
  %v469 = vmax.f32 %v442, %v253
  %v470 = vmax.f32 %v443, %v254
  %v471 = vmax.f32 %v444, %v255
  %v472 = vmax.f32 %v445, %v256
  %v473 = vmax.f32 %v446, %v257
  %v474 = vmax.f32 %v447, %v258
  %v475 = vmax.f32 %v448, %v259
  %v476 = vmax.f32 %v449, %v260
  %v477 = vmax.f32 %v450, %v261
  %v478 = vmax.f32 %v451, %v262
  %v479 = vmax.f32 %v452, %v263
  %v480 = vmax.f32 %v453, %v264
  %v481 = vmax.f32 %v454, %v265
  %v482 = vmax.f32 %v455, %v266
  %v483 = vmax.f32 %v456, %v267
  %v484 = vmax.f32 %v457, %v268
  %v485 = vmax.f32 %v458, %v269
  %v486 = vmax.f32 %v459, %v270
  %v487 = vmax.f32 %v460, %v271
  %v488 = vmax.f32 %v461, %v272
  %v489 = vmax.f32 %v462, %v273
  %v490 = vmax.f32 %v463, %v274
  %vm491 = vcmask 130048
  %492 = vst.msk [vmem:[%s9] sm:$0xff] %vm491, %v464
  %493 = vst.msk [vmem:[%s9 + $0x8] sm:$0xff] %vm491, %v465
  %494 = vst.msk [vmem:[%s9 + $0x10] sm:$0xff] %vm491, %v466
  %495 = vst.msk [vmem:[%s9 + $0x18] sm:$0xff] %vm491, %v467
  %496 = vst.msk [vmem:[%s9 + $0x20] sm:$0xff] %vm491, %v468
  %497 = vst.msk [vmem:[%s9 + $0x28] sm:$0xff] %vm491, %v469
  %498 = vst.msk [vmem:[%s9 + $0x30] sm:$0xff] %vm491, %v470
  %499 = vst.msk [vmem:[%s9 + $0x38] sm:$0xff] %vm491, %v471
  %500 = vst.msk [vmem:[%s9 + $0x40] sm:$0xff] %vm491, %v472
  %501 = vst.msk [vmem:[%s9 + $0x48] sm:$0xff] %vm491, %v473
  %502 = vst.msk [vmem:[%s9 + $0x50] sm:$0xff] %vm491, %v474
  %503 = vst.msk [vmem:[%s9 + $0x58] sm:$0xff] %vm491, %v475
  %504 = vst.msk [vmem:[%s9 + $0x60] sm:$0xff] %vm491, %v476
  %505 = vst.msk [vmem:[%s9 + $0x68] sm:$0xff] %vm491, %v477
  %506 = vst.msk [vmem:[%s9 + $0x70] sm:$0xff] %vm491, %v478
  %507 = vst.msk [vmem:[%s9 + $0x78] sm:$0xff] %vm491, %v479
  %508 = vst.msk [vmem:[%s9 + $0x80] sm:$0xff] %vm491, %v480
  %509 = vst.msk [vmem:[%s9 + $0x88] sm:$0xff] %vm491, %v481
  %510 = vst.msk [vmem:[%s9 + $0x90] sm:$0xff] %vm491, %v482
  %511 = vst.msk [vmem:[%s9 + $0x98] sm:$0xff] %vm491, %v483
  %512 = vst.msk [vmem:[%s9 + $0xa0] sm:$0xff] %vm491, %v484
  %513 = vst.msk [vmem:[%s9 + $0xa8] sm:$0xff] %vm491, %v485
  %514 = vst.msk [vmem:[%s9 + $0xb0] sm:$0xff] %vm491, %v486
  %515 = vst.msk [vmem:[%s9 + $0xb8] sm:$0xff] %vm491, %v487
  %516 = vst.msk [vmem:[%s9 + $0xc0] sm:$0xff] %vm491, %v488
  %517 = vst.msk [vmem:[%s9 + $0xc8] sm:$0xff] %vm491, %v489
  %518 = vst.msk [vmem:[%s9 + $0xd0] sm:$0xff] %vm491, %v490
  // Predicated region
  $region38: #{probabilistic_alexnet_forward.14} parent=0 // pred_check
    _
  $region39: #{probabilistic_alexnet_forward.14} parent=0 // pred_check_branch
    %520 = sbr.rel (0) target = $region41
  $region40: #{probabilistic_alexnet_forward.14} parent=0 // pred_region
    _
  $region41: #{probabilistic_alexnet_forward.14} parent=0 // pred_fallthru
    _
  // Predicated region
  $region42: #{probabilistic_alexnet_forward.14} parent=0 // pred_check
    _
  $region43: #{probabilistic_alexnet_forward.14} parent=0 // pred_check_branch
    %522 = sbr.rel (0) target = $region45
  $region44: #{probabilistic_alexnet_forward.14} parent=0 // pred_region
    _
  $region45: #{probabilistic_alexnet_forward.14} parent=0 // pred_fallthru
    _

// kernel: probabilistic_alexnet_forward.15
$region0: #{probabilistic_alexnet_forward.15}
  #allocation0 [shape = 'u32[]', space=smem, size = 0x4, offset = 0x4, fixed_abs, tag = 'smem constant byte address 0x4 - core index']
  #allocation1 [shape = 'u32[144,128]{1,0:T(1,128)}', space=vmem, size = 0x12000, scoped, tag = 'internal scratch']
  %s0 = inlined_call_operand.vmem [shape: bf16[224,400], index: 0, kind: input, shape index: {}]
  %s1 = inlined_call_operand.vmem [shape: bf16[400,128], index: 1, kind: input, shape index: {}]
  %s2 = inlined_call_operand.vmem [shape: f32[1,128], index: 2, kind: input, shape index: {}]
  %s3 = inlined_call_operand.vmem [shape: u32[224,128], index: 3, kind: input, shape index: {}]
  %s4 = inlined_call_operand.vmem [shape: f32[224,128], index: 4, kind: output, shape index: {}]
  %s5 = sld [smem:[#allocation0]]
  $region26: #{probabilistic_alexnet_forward.15} parent=0
    _
  %s7 = ssub.s32 1, %s5
  %s8 = scalar_select 0, %s7, %s5
  // Predicated region
  $region2: #{probabilistic_alexnet_forward.15} parent=0 // pred_check
    _
  $region3: #{probabilistic_alexnet_forward.15} parent=0 // pred_check_branch
    %10 = sbr.rel (0) target = $region5
  $region4: #{probabilistic_alexnet_forward.15} parent=0 // pred_region
    _
  $region5: #{probabilistic_alexnet_forward.15} parent=0 // pred_fallthru
    _
  // Predicated region
  $region6: #{probabilistic_alexnet_forward.15} parent=0 // pred_check
    _
  $region7: #{probabilistic_alexnet_forward.15} parent=0 // pred_check_branch
    %12 = sbr.rel (0) target = $region9
  $region8: #{probabilistic_alexnet_forward.15} parent=0 // pred_region
    _
  $region9: #{probabilistic_alexnet_forward.15} parent=0 // pred_fallthru
    _
  // Predicated region
  $region10: #{probabilistic_alexnet_forward.15} parent=0 // pred_check
    _
  $region11: #{probabilistic_alexnet_forward.15} parent=0 // pred_check_branch
    %14 = sbr.rel (0) target = $region13
  $region12: #{probabilistic_alexnet_forward.15} parent=0 // pred_region
    _
  $region13: #{probabilistic_alexnet_forward.15} parent=0 // pred_fallthru
    _
  // Predicated region
  $region14: #{probabilistic_alexnet_forward.15} parent=0 // pred_check
    _
  $region15: #{probabilistic_alexnet_forward.15} parent=0 // pred_check_branch
    %16 = sbr.rel (0) target = $region17
  $region16: #{probabilistic_alexnet_forward.15} parent=0 // pred_region
    _
  $region17: #{probabilistic_alexnet_forward.15} parent=0 // pred_fallthru
    _
  %v18 = vld [vmem:[%s0] sm:$0xff]
  %v19 = vld [vmem:[%s0 + $0x8] sm:$0xff]
  %v20 = vld [vmem:[%s0 + $0x10] sm:$0xff]
  %v21 = vld [vmem:[%s0 + $0x18] sm:$0xff]
  %v22 = vld [vmem:[%s0 + $0x20] sm:$0xff]
  %v23 = vld [vmem:[%s0 + $0x28] sm:$0xff]
  %v24 = vld [vmem:[%s0 + $0x30] sm:$0xff]
  %v25 = vld [vmem:[%s0 + $0x38] sm:$0xff]
  %v26 = vld [vmem:[%s0 + $0x40] sm:$0xff]
  %v27 = vld [vmem:[%s0 + $0x48] sm:$0xff]
  %v28 = vld [vmem:[%s0 + $0x50] sm:$0xff]
  %v29 = vld [vmem:[%s0 + $0x58] sm:$0xff]
  %v30 = vld [vmem:[%s0 + $0x60] sm:$0xff]
  %v31 = vld [vmem:[%s0 + $0x68] sm:$0xff]
  %v32 = vld [vmem:[%s0 + $0x70] sm:$0xff]
  %v33 = vld [vmem:[%s0 + $0x78] sm:$0xff]
  %v34 = vld [vmem:[%s0 + $0x80] sm:$0xff]
  %v35 = vld [vmem:[%s0 + $0x88] sm:$0xff]
  %v36 = vld [vmem:[%s0 + $0x90] sm:$0xff]
  %v37 = vld [vmem:[%s0 + $0x98] sm:$0xff]
  %v38 = vld [vmem:[%s0 + $0xa0] sm:$0xff]
  %v39 = vld [vmem:[%s0 + $0xa8] sm:$0xff]
  %v40 = vld [vmem:[%s0 + $0xb0] sm:$0xff]
  %v41 = vld [vmem:[%s0 + $0xb8] sm:$0xff]
  %v42 = vld [vmem:[%s0 + $0xc0] sm:$0xff]
  %v43 = vld [vmem:[%s0 + $0xc8] sm:$0xff]
  %v44 = vld [vmem:[%s0 + $0xd0] sm:$0xff]
  %v45 = vld [vmem:[%s0 + $0xd8] sm:$0xff]
  %v46 = vld [vmem:[%s0 + $0xe0] sm:$0xff]
  %v47 = vld [vmem:[%s0 + $0xe8] sm:$0xff]
  %v48 = vld [vmem:[%s0 + $0xf0] sm:$0xff]
  %v49 = vld [vmem:[%s0 + $0xf8] sm:$0xff]
  %v50 = vld [vmem:[%s0 + $0x100] sm:$0xff]
  %v51 = vld [vmem:[%s0 + $0x108] sm:$0xff]
  %v52 = vld [vmem:[%s0 + $0x110] sm:$0xff]
  %v53 = vld [vmem:[%s0 + $0x118] sm:$0xff]
  %v54 = vld [vmem:[%s0 + $0x120] sm:$0xff]
  %v55 = vld [vmem:[%s0 + $0x128] sm:$0xff]
  %v56 = vld [vmem:[%s0 + $0x130] sm:$0xff]
  %v57 = vld [vmem:[%s0 + $0x138] sm:$0xff]
  %v58 = vld [vmem:[%s0 + $0x140] sm:$0xff]
  %v59 = vld [vmem:[%s0 + $0x148] sm:$0xff]
  %v60 = vld [vmem:[%s0 + $0x150] sm:$0xff]
  %v61 = vld [vmem:[%s0 + $0x158] sm:$0xff]
  %v62 = vld [vmem:[%s0 + $0x160] sm:$0xff]
  %v63 = vld [vmem:[%s0 + $0x168] sm:$0xff]
  %v64 = vld [vmem:[%s0 + $0x170] sm:$0xff]
  %v65 = vld [vmem:[%s0 + $0x178] sm:$0xff]
  %v66 = vld [vmem:[%s0 + $0x180] sm:$0xff]
  %v67 = vld [vmem:[%s0 + $0x188] sm:$0xff]
  %v68 = vld [vmem:[%s0 + $0x190] sm:$0xff]
  %v69 = vld [vmem:[%s0 + $0x198] sm:$0xff]
  %v70 = vld [vmem:[%s0 + $0x1a0] sm:$0xff]
  %v71 = vld [vmem:[%s0 + $0x1a8] sm:$0xff]
  %v72 = vld [vmem:[%s0 + $0x1b0] sm:$0xff]
  %v73 = vld [vmem:[%s0 + $0x1b8] sm:$0xff]
  %v74 = vld [vmem:[%s1] sm:$0xf]
  %v75 = vld [vmem:[%s1 + $0x4] sm:$0xf]
  %v76 = vld [vmem:[%s1 + $0x8] sm:$0xf]
  %v77 = vld [vmem:[%s1 + $0xc] sm:$0xf]
  %v78 = vld [vmem:[%s1 + $0x10] sm:$0xf]
  %v79 = vld [vmem:[%s1 + $0x14] sm:$0xf]
  %v80 = vld [vmem:[%s1 + $0x18] sm:$0xf]
  %v81 = vld [vmem:[%s1 + $0x1c] sm:$0xf]
  %v82 = vld [vmem:[%s1 + $0x20] sm:$0xf]
  %v83 = vld [vmem:[%s1 + $0x24] sm:$0xf]
  %v84 = vld [vmem:[%s1 + $0x28] sm:$0xf]
  %v85 = vld [vmem:[%s1 + $0x2c] sm:$0xf]
  %v86 = vld [vmem:[%s1 + $0x30] sm:$0xf]
  %v87 = vld [vmem:[%s1 + $0x34] sm:$0xf]
  %v88 = vld [vmem:[%s1 + $0x38] sm:$0xf]
  %v89 = vld [vmem:[%s1 + $0x3c] sm:$0xf]
  %v90 = vld [vmem:[%s1 + $0x40] sm:$0xf]
  %v91 = vld [vmem:[%s1 + $0x44] sm:$0xf]
  %v92 = vld [vmem:[%s1 + $0x48] sm:$0xf]
  %v93 = vld [vmem:[%s1 + $0x4c] sm:$0xf]
  %v94 = vld [vmem:[%s1 + $0x50] sm:$0xf]
  %v95 = vld [vmem:[%s1 + $0x54] sm:$0xf]
  %v96 = vld [vmem:[%s1 + $0x58] sm:$0xf]
  %v97 = vld [vmem:[%s1 + $0x5c] sm:$0xf]
  %v98 = vld [vmem:[%s1 + $0x60] sm:$0xf]
  %v99 = vld [vmem:[%s1 + $0x64] sm:$0xf]
  %v100 = vld [vmem:[%s1 + $0x68] sm:$0xf]
  %v101 = vld [vmem:[%s1 + $0x6c] sm:$0xf]
  %v102 = vld [vmem:[%s1 + $0x70] sm:$0xf]
  %v103 = vld [vmem:[%s1 + $0x74] sm:$0xf]
  %v104 = vld [vmem:[%s1 + $0x78] sm:$0xf]
  %v105 = vld [vmem:[%s1 + $0x7c] sm:$0xf]
  %v106 = vld [vmem:[%s1 + $0x80] sm:$0xf]
  %v107 = vld [vmem:[%s1 + $0x84] sm:$0xf]
  %v108 = vld [vmem:[%s1 + $0x88] sm:$0xf]
  %v109 = vld [vmem:[%s1 + $0x8c] sm:$0xf]
  %v110 = vld [vmem:[%s1 + $0x90] sm:$0xf]
  %v111 = vld [vmem:[%s1 + $0x94] sm:$0xf]
  %v112 = vld [vmem:[%s1 + $0x98] sm:$0xf]
  %v113 = vld [vmem:[%s1 + $0x9c] sm:$0xf]
  %v114 = vld [vmem:[%s1 + $0xa0] sm:$0xf]
  %v115 = vld [vmem:[%s1 + $0xa4] sm:$0xf]
  %v116 = vld [vmem:[%s1 + $0xa8] sm:$0xf]
  %v117 = vld [vmem:[%s1 + $0xac] sm:$0xf]
  %v118 = vld [vmem:[%s1 + $0xb0] sm:$0xf]
  %v119 = vld [vmem:[%s1 + $0xb4] sm:$0xf]
  %v120 = vld [vmem:[%s1 + $0xb8] sm:$0xf]
  %v121 = vld [vmem:[%s1 + $0xbc] sm:$0xf]
  %v122 = vld [vmem:[%s1 + $0xc0] sm:$0xf]
  %v123 = vld [vmem:[%s1 + $0xc4] sm:$0xf]
  %v124 = vld [vmem:[%s2] sm:$0x1]
  %v126 = vlaneseq
  %v127 = vshrl.u32 %v126, 7
  %v128 = vsub.s32 0, %v127
  %v129 = vrot.slane %v124, %v128
  %v187 = vunpack.c.l.b16 %v18
  %v188 = vunpack.c.h.b16 %v18
  %v189 = vunpack.c.l.b16 %v19
  %v190 = vunpack.c.h.b16 %v19
  %v191 = vunpack.c.l.b16 %v20
  %v192 = vunpack.c.h.b16 %v20
  %v193 = vunpack.c.l.b16 %v21
  %v194 = vunpack.c.h.b16 %v21
  %v195 = vunpack.c.l.b16 %v22
  %v196 = vunpack.c.h.b16 %v22
  %v197 = vunpack.c.l.b16 %v23
  %v198 = vunpack.c.h.b16 %v23
  %v199 = vunpack.c.l.b16 %v24
  %v200 = vunpack.c.h.b16 %v24
  %v201 = vunpack.c.l.b16 %v25
  %v202 = vunpack.c.h.b16 %v25
  %v203 = vunpack.c.l.b16 %v26
  %v204 = vunpack.c.h.b16 %v26
  %v205 = vunpack.c.l.b16 %v27
  %v206 = vunpack.c.h.b16 %v27
  %v207 = vunpack.c.l.b16 %v28
  %v208 = vunpack.c.h.b16 %v28
  %v209 = vunpack.c.l.b16 %v29
  %v210 = vunpack.c.h.b16 %v29
  %v211 = vunpack.c.l.b16 %v30
  %v212 = vunpack.c.h.b16 %v30
  %v213 = vunpack.c.l.b16 %v31
  %v214 = vunpack.c.h.b16 %v31
  %v215 = vunpack.c.l.b16 %v32
  %v216 = vunpack.c.h.b16 %v32
  %v217 = vunpack.c.l.b16 %v33
  %v218 = vunpack.c.h.b16 %v33
  %v219 = vunpack.c.l.b16 %v34
  %v220 = vunpack.c.h.b16 %v34
  %v221 = vunpack.c.l.b16 %v35
  %v222 = vunpack.c.h.b16 %v35
  %v223 = vunpack.c.l.b16 %v36
  %v224 = vunpack.c.h.b16 %v36
  %v225 = vunpack.c.l.b16 %v37
  %v226 = vunpack.c.h.b16 %v37
  %v227 = vunpack.c.l.b16 %v38
  %v228 = vunpack.c.h.b16 %v38
  %v229 = vunpack.c.l.b16 %v39
  %v230 = vunpack.c.h.b16 %v39
  %v231 = vunpack.c.l.b16 %v40
  %v232 = vunpack.c.h.b16 %v40
  %v233 = vunpack.c.l.b16 %v41
  %v234 = vunpack.c.h.b16 %v41
  %v235 = vunpack.c.l.b16 %v42
  %v236 = vunpack.c.h.b16 %v42
  %v237 = vunpack.c.l.b16 %v43
  %v238 = vunpack.c.h.b16 %v43
  %v239 = vunpack.c.l.b16 %v44
  %v240 = vunpack.c.h.b16 %v44
  %v241 = vunpack.c.l.b16 %v45
  %v242 = vunpack.c.h.b16 %v45
  %v243 = vunpack.c.l.b16 %v46
  %v244 = vunpack.c.h.b16 %v46
  %v245 = vunpack.c.l.b16 %v47
  %v246 = vunpack.c.h.b16 %v47
  %v247 = vunpack.c.l.b16 %v48
  %v248 = vunpack.c.h.b16 %v48
  %v249 = vunpack.c.l.b16 %v49
  %v250 = vunpack.c.h.b16 %v49
  %v251 = vunpack.c.l.b16 %v50
  %v252 = vunpack.c.h.b16 %v50
  %v253 = vunpack.c.l.b16 %v51
  %v254 = vunpack.c.h.b16 %v51
  %v255 = vunpack.c.l.b16 %v52
  %v256 = vunpack.c.h.b16 %v52
  %v257 = vunpack.c.l.b16 %v53
  %v258 = vunpack.c.h.b16 %v53
  %v259 = vunpack.c.l.b16 %v54
  %v260 = vunpack.c.h.b16 %v54
  %v261 = vunpack.c.l.b16 %v55
  %v262 = vunpack.c.h.b16 %v55
  %v263 = vunpack.c.l.b16 %v56
  %v264 = vunpack.c.h.b16 %v56
  %v265 = vunpack.c.l.b16 %v57
  %v266 = vunpack.c.h.b16 %v57
  %v267 = vunpack.c.l.b16 %v58
  %v268 = vunpack.c.h.b16 %v58
  %v269 = vunpack.c.l.b16 %v59
  %v270 = vunpack.c.h.b16 %v59
  %v271 = vunpack.c.l.b16 %v60
  %v272 = vunpack.c.h.b16 %v60
  %v273 = vunpack.c.l.b16 %v61
  %v274 = vunpack.c.h.b16 %v61
  %v275 = vunpack.c.l.b16 %v62
  %v276 = vunpack.c.h.b16 %v62
  %v277 = vunpack.c.l.b16 %v63
  %v278 = vunpack.c.h.b16 %v63
  %v279 = vunpack.c.l.b16 %v64
  %v280 = vunpack.c.h.b16 %v64
  %v281 = vunpack.c.l.b16 %v65
  %v282 = vunpack.c.h.b16 %v65
  %v283 = vunpack.c.l.b16 %v66
  %v284 = vunpack.c.h.b16 %v66
  %v285 = vunpack.c.l.b16 %v67
  %v286 = vunpack.c.h.b16 %v67
  %v287 = vunpack.c.l.b16 %v68
  %v288 = vunpack.c.h.b16 %v68
  %v289 = vunpack.c.l.b16 %v69
  %v290 = vunpack.c.h.b16 %v69
  %v291 = vunpack.c.l.b16 %v70
  %v292 = vunpack.c.h.b16 %v70
  %v293 = vunpack.c.l.b16 %v71
  %v294 = vunpack.c.h.b16 %v71
  %v295 = vunpack.c.l.b16 %v72
  %v296 = vunpack.c.h.b16 %v72
  %v297 = vunpack.c.l.b16 %v73
  %v298 = vunpack.c.h.b16 %v73
  %v299 = vpack.c.b16 %v191, %v187
  %v300 = vpack.c.b16 %v192, %v188
  %v301 = vpack.c.b16 %v193, %v189
  %v302 = vpack.c.b16 %v194, %v190
  %v303 = vpack.c.b16 %v199, %v195
  %v304 = vpack.c.b16 %v200, %v196
  %v305 = vpack.c.b16 %v201, %v197
  %v306 = vpack.c.b16 %v202, %v198
  %v307 = vpack.c.b16 %v207, %v203
  %v308 = vpack.c.b16 %v208, %v204
  %v309 = vpack.c.b16 %v209, %v205
  %v310 = vpack.c.b16 %v210, %v206
  %v311 = vpack.c.b16 %v215, %v211
  %v312 = vpack.c.b16 %v216, %v212
  %v313 = vpack.c.b16 %v217, %v213
  %v314 = vpack.c.b16 %v218, %v214
  %v315 = vpack.c.b16 %v223, %v219
  %v316 = vpack.c.b16 %v224, %v220
  %v317 = vpack.c.b16 %v225, %v221
  %v318 = vpack.c.b16 %v226, %v222
  %v319 = vpack.c.b16 %v231, %v227
  %v320 = vpack.c.b16 %v232, %v228
  %v321 = vpack.c.b16 %v233, %v229
  %v322 = vpack.c.b16 %v234, %v230
  %v323 = vpack.c.b16 %v239, %v235
  %v324 = vpack.c.b16 %v240, %v236
  %v325 = vpack.c.b16 %v241, %v237
  %v326 = vpack.c.b16 %v242, %v238
  %v327 = vpack.c.b16 %v247, %v243
  %v328 = vpack.c.b16 %v248, %v244
  %v329 = vpack.c.b16 %v249, %v245
  %v330 = vpack.c.b16 %v250, %v246
  %v331 = vpack.c.b16 %v255, %v251
  %v332 = vpack.c.b16 %v256, %v252
  %v333 = vpack.c.b16 %v257, %v253
  %v334 = vpack.c.b16 %v258, %v254
  %v335 = vpack.c.b16 %v263, %v259
  %v336 = vpack.c.b16 %v264, %v260
  %v337 = vpack.c.b16 %v265, %v261
  %v338 = vpack.c.b16 %v266, %v262
  %v339 = vpack.c.b16 %v271, %v267
  %v340 = vpack.c.b16 %v272, %v268
  %v341 = vpack.c.b16 %v273, %v269
  %v342 = vpack.c.b16 %v274, %v270
  %v343 = vpack.c.b16 %v279, %v275
  %v344 = vpack.c.b16 %v280, %v276
  %v345 = vpack.c.b16 %v281, %v277
  %v346 = vpack.c.b16 %v282, %v278
  %v347 = vpack.c.b16 %v287, %v283
  %v348 = vpack.c.b16 %v288, %v284
  %v349 = vpack.c.b16 %v289, %v285
  %v350 = vpack.c.b16 %v290, %v286
  %v351 = vpack.c.b16 %v295, %v291
  %v352 = vpack.c.b16 %v296, %v292
  %v353 = vpack.c.b16 %v297, %v293
  %v354 = vpack.c.b16 %v298, %v294
  %v447 = vunpack.c.l.b16 %v74
  %v448 = vunpack.c.l.b16 %v75
  %v449 = vunpack.c.l.b16 %v76
  %v450 = vunpack.c.l.b16 %v77
  %v451 = vunpack.c.l.b16 %v78
  %v452 = vunpack.c.l.b16 %v79
  %v453 = vunpack.c.l.b16 %v80
  %v454 = vunpack.c.l.b16 %v81
  %v455 = vunpack.c.l.b16 %v82
  %v456 = vunpack.c.l.b16 %v83
  %v457 = vunpack.c.l.b16 %v84
  %v458 = vunpack.c.l.b16 %v85
  %v459 = vunpack.c.l.b16 %v86
  %v460 = vunpack.c.l.b16 %v87
  %v461 = vunpack.c.l.b16 %v88
  %v462 = vunpack.c.l.b16 %v89
  %v463 = vunpack.c.l.b16 %v90
  %v464 = vunpack.c.l.b16 %v91
  %v465 = vunpack.c.l.b16 %v92
  %v466 = vunpack.c.l.b16 %v93
  %v467 = vunpack.c.l.b16 %v94
  %v468 = vunpack.c.l.b16 %v95
  %v469 = vunpack.c.l.b16 %v96
  %v470 = vunpack.c.l.b16 %v97
  %v471 = vunpack.c.l.b16 %v98
  %v472 = vunpack.c.l.b16 %v99
  %v473 = vunpack.c.l.b16 %v100
  %v474 = vunpack.c.l.b16 %v101
  %v475 = vunpack.c.l.b16 %v102
  %v476 = vunpack.c.l.b16 %v103
  %v477 = vunpack.c.l.b16 %v104
  %v478 = vunpack.c.l.b16 %v105
  %v479 = vunpack.c.l.b16 %v106
  %v480 = vunpack.c.l.b16 %v107
  %v481 = vunpack.c.l.b16 %v108
  %v482 = vunpack.c.l.b16 %v109
  %v483 = vunpack.c.l.b16 %v110
  %v484 = vunpack.c.l.b16 %v111
  %v485 = vunpack.c.l.b16 %v112
  %v486 = vunpack.c.l.b16 %v113
  %v487 = vunpack.c.l.b16 %v114
  %v488 = vunpack.c.l.b16 %v115
  %v489 = vunpack.c.l.b16 %v116
  %v490 = vunpack.c.l.b16 %v117
  %v491 = vunpack.c.l.b16 %v118
  %v492 = vunpack.c.l.b16 %v119
  %v493 = vunpack.c.l.b16 %v120
  %v494 = vunpack.c.l.b16 %v121
  %v495 = vunpack.c.l.b16 %v122
  %v496 = vunpack.c.l.b16 %v123
  %v497 = vpack.c.b16 %v448, %v447
  %v498 = vpack.c.b16 %v450, %v449
  %v499 = vpack.c.b16 %v452, %v451
  %v500 = vpack.c.b16 %v454, %v453
  %v501 = vpack.c.b16 %v456, %v455
  %v502 = vpack.c.b16 %v458, %v457
  %v503 = vpack.c.b16 %v460, %v459
  %v504 = vpack.c.b16 %v462, %v461
  %v505 = vpack.c.b16 %v464, %v463
  %v506 = vpack.c.b16 %v466, %v465
  %v507 = vpack.c.b16 %v468, %v467
  %v508 = vpack.c.b16 %v470, %v469
  %v509 = vpack.c.b16 %v472, %v471
  %v510 = vpack.c.b16 %v474, %v473
  %v511 = vpack.c.b16 %v476, %v475
  %v512 = vpack.c.b16 %v478, %v477
  %v513 = vpack.c.b16 %v480, %v479
  %v514 = vpack.c.b16 %v482, %v481
  %v515 = vpack.c.b16 %v484, %v483
  %v516 = vpack.c.b16 %v486, %v485
  %v517 = vpack.c.b16 %v488, %v487
  %v518 = vpack.c.b16 %v490, %v489
  %v519 = vpack.c.b16 %v492, %v491
  %v520 = vpack.c.b16 %v494, %v493
  %v521 = vpack.c.b16 %v496, %v495
  %vm547 = vcmask 130048
  %v549 = vsel %vm547, %v302, 0
  %v552 = vsel %vm547, %v306, 0
  %v555 = vsel %vm547, %v310, 0
  %v558 = vsel %vm547, %v314, 0
  %v561 = vsel %vm547, %v318, 0
  %v564 = vsel %vm547, %v322, 0
  %v567 = vsel %vm547, %v326, 0
  %v570 = vsel %vm547, %v330, 0
  %v573 = vsel %vm547, %v334, 0
  %v576 = vsel %vm547, %v338, 0
  %v579 = vsel %vm547, %v342, 0
  %v582 = vsel %vm547, %v346, 0
  %v585 = vsel %vm547, %v350, 0
  %v588 = vsel %vm547, %v354, 0
  %590 = vmatprep.subr.bf16.mxu0 0
  %591 = vmatpush1.bf16.msra.mxu0 %v497
  %592 = vmatprep.subr.bf16.mxu0 0
  %593 = vmatpush1.bf16.msra.mxu0 %v498
  %594 = vmatprep.subr.bf16.mxu0 0
  %595 = vmatpush1.bf16.msra.mxu0 %v499
  %596 = vmatprep.subr.bf16.mxu0 0
  %597 = vmatpush1.bf16.msra.mxu0 %v500
  %598 = vmatprep.subr.bf16.mxu0 0
  %599 = vmatpush1.bf16.msra.mxu0 %v501
  %600 = vmatprep.subr.bf16.mxu0 0
  %601 = vmatpush1.bf16.msra.mxu0 %v502
  %602 = vmatprep.subr.bf16.mxu0 0
  %603 = vmatpush1.bf16.msra.mxu0 %v503
  %604 = vmatprep.subr.bf16.mxu0 0
  %605 = vmatpush1.bf16.msra.mxu0 %v504
  %606 = vmatprep.subr.bf16.mxu0 0
  %607 = vmatpush1.bf16.msra.mxu0 %v505
  %608 = vmatprep.subr.bf16.mxu0 0
  %609 = vmatpush1.bf16.msra.mxu0 %v506
  %610 = vmatprep.subr.bf16.mxu0 0
  %611 = vmatpush1.bf16.msra.mxu0 %v507
  %612 = vmatprep.subr.bf16.mxu0 0
  %613 = vmatpush1.bf16.msra.mxu0 %v508
  %614 = vmatprep.subr.bf16.mxu0 0
  %615 = vmatpush1.bf16.msra.mxu0 %v509
  %616 = vmatprep.subr.bf16.mxu0 0
  %617 = vmatpush1.bf16.msra.mxu0 %v510
  %618 = vmatprep.subr.bf16.mxu0 0
  %619 = vmatpush1.bf16.msra.mxu0 %v511
  %620 = vmatprep.subr.bf16.mxu0 0
  %621 = vmatpush1.bf16.msra.mxu0 %v512
  %622 = vmatprep.mubr.bf16.mxu0 %v300
  %623 = vmatmul.mubr.bf16.gmra.mrb[0].mxu0 %v299
  %v624 = vpop.f32.mrb[0].mxu0
  %v625 = vadd.f32 %v129, %v624
  %v626 = vpop.f32.mrb[0].mxu0
  %v627 = vpop.f32.mrb[0].mxu0
  %v628 = vadd.f32 %v129, %v627
  %v629 = vpop.f32.mrb[0].mxu0
  %630 = vmatprep.mubr.bf16.mxu0 %v304
  %631 = vmatmul.mubr.bf16.gmra.mrb[0].mxu0 %v303
  %v632 = vpop.f32.mrb[0].mxu0
  %v633 = vadd.f32 %v129, %v632
  %v634 = vpop.f32.mrb[0].mxu0
  %v635 = vpop.f32.mrb[0].mxu0
  %v636 = vadd.f32 %v129, %v635
  %v637 = vpop.f32.mrb[0].mxu0
  %638 = vmatprep.mubr.bf16.mxu0 %v308
  %639 = vmatmul.mubr.bf16.gmra.mrb[0].mxu0 %v307
  %v640 = vpop.f32.mrb[0].mxu0
  %v641 = vadd.f32 %v129, %v640
  %v642 = vpop.f32.mrb[0].mxu0
  %v643 = vpop.f32.mrb[0].mxu0
  %v644 = vadd.f32 %v129, %v643
  %v645 = vpop.f32.mrb[0].mxu0
  %646 = vmatprep.mubr.bf16.mxu0 %v312
  %647 = vmatmul.mubr.bf16.gmra.mrb[0].mxu0 %v311
  %v648 = vpop.f32.mrb[0].mxu0
  %v649 = vadd.f32 %v129, %v648
  %v650 = vpop.f32.mrb[0].mxu0
  %v651 = vpop.f32.mrb[0].mxu0
  %v652 = vadd.f32 %v129, %v651
  %v653 = vpop.f32.mrb[0].mxu0
  %654 = vmatprep.mubr.bf16.mxu0 %v316
  %655 = vmatmul.mubr.bf16.gmra.mrb[0].mxu0 %v315
  %v656 = vpop.f32.mrb[0].mxu0
  %v657 = vadd.f32 %v129, %v656
  %v658 = vpop.f32.mrb[0].mxu0
  %v659 = vpop.f32.mrb[0].mxu0
  %v660 = vadd.f32 %v129, %v659
  %v661 = vpop.f32.mrb[0].mxu0
  %662 = vmatprep.mubr.bf16.mxu0 %v320
  %663 = vmatmul.mubr.bf16.gmra.mrb[0].mxu0 %v319
  %v664 = vpop.f32.mrb[0].mxu0
  %v665 = vadd.f32 %v129, %v664
  %v666 = vpop.f32.mrb[0].mxu0
  %v667 = vpop.f32.mrb[0].mxu0
  %v668 = vadd.f32 %v129, %v667
  %v669 = vpop.f32.mrb[0].mxu0
  %670 = vmatprep.mubr.bf16.mxu0 %v324
  %671 = vmatmul.mubr.bf16.gmra.mrb[0].mxu0 %v323
  %v672 = vpop.f32.mrb[0].mxu0
  %v673 = vadd.f32 %v129, %v672
  %v674 = vpop.f32.mrb[0].mxu0
  %v675 = vpop.f32.mrb[0].mxu0
  %v676 = vadd.f32 %v129, %v675
  %v677 = vpop.f32.mrb[0].mxu0
  %678 = vmatprep.mubr.bf16.mxu0 %v328
  %679 = vmatmul.mubr.bf16.gmra.mrb[0].mxu0 %v327
  %v680 = vpop.f32.mrb[0].mxu0
  %v681 = vadd.f32 %v129, %v680
  %v682 = vpop.f32.mrb[0].mxu0
  %v683 = vpop.f32.mrb[0].mxu0
  %v684 = vadd.f32 %v129, %v683
  %v685 = vpop.f32.mrb[0].mxu0
  %686 = vmatprep.mubr.bf16.mxu0 %v332
  %687 = vmatmul.mubr.bf16.gmra.mrb[0].mxu0 %v331
  %v688 = vpop.f32.mrb[0].mxu0
  %v689 = vadd.f32 %v129, %v688
  %v690 = vpop.f32.mrb[0].mxu0
  %v691 = vpop.f32.mrb[0].mxu0
  %v692 = vadd.f32 %v129, %v691
  %v693 = vpop.f32.mrb[0].mxu0
  %694 = vmatprep.mubr.bf16.mxu0 %v336
  %695 = vmatmul.mubr.bf16.gmra.mrb[0].mxu0 %v335
  %v696 = vpop.f32.mrb[0].mxu0
  %v697 = vadd.f32 %v129, %v696
  %v698 = vpop.f32.mrb[0].mxu0
  %v699 = vpop.f32.mrb[0].mxu0
  %v700 = vadd.f32 %v129, %v699
  %v701 = vpop.f32.mrb[0].mxu0
  %702 = vmatprep.mubr.bf16.mxu0 %v340
  %703 = vmatmul.mubr.bf16.gmra.mrb[0].mxu0 %v339
  %v704 = vpop.f32.mrb[0].mxu0
  %v705 = vadd.f32 %v129, %v704
  %v706 = vpop.f32.mrb[0].mxu0
  %v707 = vpop.f32.mrb[0].mxu0
  %v708 = vadd.f32 %v129, %v707
  %v709 = vpop.f32.mrb[0].mxu0
  %710 = vmatprep.mubr.bf16.mxu0 %v344
  %711 = vmatmul.mubr.bf16.gmra.mrb[0].mxu0 %v343
  %v712 = vpop.f32.mrb[0].mxu0
  %v713 = vadd.f32 %v129, %v712
  %v714 = vpop.f32.mrb[0].mxu0
  %v715 = vpop.f32.mrb[0].mxu0
  %v716 = vadd.f32 %v129, %v715
  %v717 = vpop.f32.mrb[0].mxu0
  %718 = vmatprep.mubr.bf16.mxu0 %v348
  %719 = vmatmul.mubr.bf16.gmra.mrb[0].mxu0 %v347
  %v720 = vpop.f32.mrb[0].mxu0
  %v721 = vadd.f32 %v129, %v720
  %v722 = vpop.f32.mrb[0].mxu0
  %v723 = vpop.f32.mrb[0].mxu0
  %v724 = vadd.f32 %v129, %v723
  %v725 = vpop.f32.mrb[0].mxu0
  %726 = vmatprep.mubr.bf16.mxu0 %v352
  %727 = vmatmul.mubr.bf16.gmra.mrb[0].mxu0 %v351
  %v728 = vpop.f32.mrb[0].mxu0
  %v729 = vadd.f32 %v129, %v728
  %v730 = vpop.f32.mrb[0].mxu0
  %v731 = vpop.f32.mrb[0].mxu0
  %v732 = vadd.f32 %v129, %v731
  %v733 = vpop.f32.mrb[0].mxu0
  %734 = vdwg.mxu0
  %735 = vmatprep.subr.bf16.mxu0 0
  %736 = vmatpush1.bf16.msra.mxu0 %v513
  %737 = vmatprep.subr.bf16.mxu0 0
  %738 = vmatpush1.bf16.msra.mxu0 %v514
  %739 = vmatprep.subr.bf16.mxu0 0
  %740 = vmatpush1.bf16.msra.mxu0 %v515
  %741 = vmatprep.subr.bf16.mxu0 0
  %742 = vmatpush1.bf16.msra.mxu0 %v516
  %743 = vmatprep.subr.bf16.mxu0 0
  %744 = vmatpush1.bf16.msra.mxu0 %v517
  %745 = vmatprep.subr.bf16.mxu0 0
  %746 = vmatpush1.bf16.msra.mxu0 %v518
  %747 = vmatprep.subr.bf16.mxu0 0
  %748 = vmatpush1.bf16.msra.mxu0 %v519
  %749 = vmatprep.subr.bf16.mxu0 0
  %750 = vmatpush1.bf16.msra.mxu0 %v520
  %751 = vmatprep.subr.bf16.mxu0 0
  %752 = vmatpush1.bf16.msra.mxu0 %v521
  %753 = vmatprep.subr.bf16.mxu0 0
  %754 = vmatpush1.bf16.msra.mxu0 0
  %755 = vmatprep.subr.bf16.mxu0 0
  %756 = vmatpush1.bf16.msra.mxu0 0
  %757 = vmatprep.subr.bf16.mxu0 0
  %758 = vmatpush1.bf16.msra.mxu0 0
  %759 = vmatprep.subr.bf16.mxu0 0
  %760 = vmatpush1.bf16.msra.mxu0 0
  %761 = vmatprep.subr.bf16.mxu0 0
  %762 = vmatpush1.bf16.msra.mxu0 0
  %763 = vmatprep.subr.bf16.mxu0 0
  %764 = vmatpush1.bf16.msra.mxu0 0
  %765 = vmatprep.subr.bf16.mxu0 0
  %766 = vmatpush1.bf16.msra.mxu0 0
  %767 = vmatprep.mubr.bf16.mxu0 %v549
  %768 = vmatmul.mubr.bf16.gmra.mrb[0].mxu0 %v301
  %v769 = vpop.f32.mrb[0].mxu0
  %v770 = vadd.f32 %v625, %v769
  %v771 = vpop.f32.mrb[0].mxu0
  %v772 = vpop.f32.mrb[0].mxu0
  %v773 = vadd.f32 %v628, %v772
  %v774 = vpop.f32.mrb[0].mxu0
  %775 = vmatprep.mubr.bf16.mxu0 %v552
  %776 = vmatmul.mubr.bf16.gmra.mrb[0].mxu0 %v305
  %v777 = vpop.f32.mrb[0].mxu0
  %v778 = vadd.f32 %v633, %v777
  %v779 = vpop.f32.mrb[0].mxu0
  %v780 = vpop.f32.mrb[0].mxu0
  %v781 = vadd.f32 %v636, %v780
  %v782 = vpop.f32.mrb[0].mxu0
  %783 = vmatprep.mubr.bf16.mxu0 %v555
  %784 = vmatmul.mubr.bf16.gmra.mrb[0].mxu0 %v309
  %v785 = vpop.f32.mrb[0].mxu0
  %v786 = vadd.f32 %v641, %v785
  %v787 = vpop.f32.mrb[0].mxu0
  %v788 = vpop.f32.mrb[0].mxu0
  %v789 = vadd.f32 %v644, %v788
  %v790 = vpop.f32.mrb[0].mxu0
  %791 = vmatprep.mubr.bf16.mxu0 %v558
  %792 = vmatmul.mubr.bf16.gmra.mrb[0].mxu0 %v313
  %v793 = vpop.f32.mrb[0].mxu0
  %v794 = vadd.f32 %v649, %v793
  %v795 = vpop.f32.mrb[0].mxu0
  %v796 = vpop.f32.mrb[0].mxu0
  %v797 = vadd.f32 %v652, %v796
  %v798 = vpop.f32.mrb[0].mxu0
  %799 = vmatprep.mubr.bf16.mxu0 %v561
  %800 = vmatmul.mubr.bf16.gmra.mrb[0].mxu0 %v317
  %v801 = vpop.f32.mrb[0].mxu0
  %v802 = vadd.f32 %v657, %v801
  %v803 = vpop.f32.mrb[0].mxu0
  %v804 = vpop.f32.mrb[0].mxu0
  %v805 = vadd.f32 %v660, %v804
  %v806 = vpop.f32.mrb[0].mxu0
  %807 = vmatprep.mubr.bf16.mxu0 %v564
  %808 = vmatmul.mubr.bf16.gmra.mrb[0].mxu0 %v321
  %v809 = vpop.f32.mrb[0].mxu0
  %v810 = vadd.f32 %v665, %v809
  %v811 = vpop.f32.mrb[0].mxu0
  %v812 = vpop.f32.mrb[0].mxu0
  %v813 = vadd.f32 %v668, %v812
  %v814 = vpop.f32.mrb[0].mxu0
  %815 = vmatprep.mubr.bf16.mxu0 %v567
  %816 = vmatmul.mubr.bf16.gmra.mrb[0].mxu0 %v325
  %v817 = vpop.f32.mrb[0].mxu0
  %v818 = vadd.f32 %v673, %v817
  %v819 = vpop.f32.mrb[0].mxu0
  %v820 = vpop.f32.mrb[0].mxu0
  %v821 = vadd.f32 %v676, %v820
  %v822 = vpop.f32.mrb[0].mxu0
  %823 = vmatprep.mubr.bf16.mxu0 %v570
  %824 = vmatmul.mubr.bf16.gmra.mrb[0].mxu0 %v329
  %v825 = vpop.f32.mrb[0].mxu0
  %v826 = vadd.f32 %v681, %v825
  %v827 = vpop.f32.mrb[0].mxu0
  %v828 = vpop.f32.mrb[0].mxu0
  %v829 = vadd.f32 %v684, %v828
  %v830 = vpop.f32.mrb[0].mxu0
  %831 = vmatprep.mubr.bf16.mxu0 %v573
  %832 = vmatmul.mubr.bf16.gmra.mrb[0].mxu0 %v333
  %v833 = vpop.f32.mrb[0].mxu0
  %v834 = vadd.f32 %v689, %v833
  %v835 = vpop.f32.mrb[0].mxu0
  %v836 = vpop.f32.mrb[0].mxu0
  %v837 = vadd.f32 %v692, %v836
  %v838 = vpop.f32.mrb[0].mxu0
  %839 = vmatprep.mubr.bf16.mxu0 %v576
  %840 = vmatmul.mubr.bf16.gmra.mrb[0].mxu0 %v337
  %v841 = vpop.f32.mrb[0].mxu0
  %v842 = vadd.f32 %v697, %v841
  %v843 = vpop.f32.mrb[0].mxu0
  %v844 = vpop.f32.mrb[0].mxu0
  %v845 = vadd.f32 %v700, %v844
  %v846 = vpop.f32.mrb[0].mxu0
  %847 = vmatprep.mubr.bf16.mxu0 %v579
  %848 = vmatmul.mubr.bf16.gmra.mrb[0].mxu0 %v341
  %v849 = vpop.f32.mrb[0].mxu0
  %v850 = vadd.f32 %v705, %v849
  %v851 = vpop.f32.mrb[0].mxu0
  %v852 = vpop.f32.mrb[0].mxu0
  %v853 = vadd.f32 %v708, %v852
  %v854 = vpop.f32.mrb[0].mxu0
  %855 = vmatprep.mubr.bf16.mxu0 %v582
  %856 = vmatmul.mubr.bf16.gmra.mrb[0].mxu0 %v345
  %v857 = vpop.f32.mrb[0].mxu0
  %v858 = vadd.f32 %v713, %v857
  %v859 = vpop.f32.mrb[0].mxu0
  %v860 = vpop.f32.mrb[0].mxu0
  %v861 = vadd.f32 %v716, %v860
  %v862 = vpop.f32.mrb[0].mxu0
  %863 = vmatprep.mubr.bf16.mxu0 %v585
  %864 = vmatmul.mubr.bf16.gmra.mrb[0].mxu0 %v349
  %v865 = vpop.f32.mrb[0].mxu0
  %v866 = vadd.f32 %v721, %v865
  %v867 = vpop.f32.mrb[0].mxu0
  %v868 = vpop.f32.mrb[0].mxu0
  %v869 = vadd.f32 %v724, %v868
  %v870 = vpop.f32.mrb[0].mxu0
  %871 = vmatprep.mubr.bf16.mxu0 %v588
  %872 = vmatmul.mubr.bf16.gmra.mrb[0].mxu0 %v353
  %v873 = vpop.f32.mrb[0].mxu0
  %v874 = vadd.f32 %v729, %v873
  %v875 = vpop.f32.mrb[0].mxu0
  %v876 = vpop.f32.mrb[0].mxu0
  %v877 = vadd.f32 %v732, %v876
  %v878 = vpop.f32.mrb[0].mxu0
  %879 = vdwg.mxu0
  %v880 = vmax.f32 %v770, 0.0
  %v881 = vmax.f32 %v773, 0.0
  %v882 = vmax.f32 %v778, 0.0
  %v883 = vmax.f32 %v781, 0.0
  %v884 = vmax.f32 %v786, 0.0
  %v885 = vmax.f32 %v789, 0.0
  %v886 = vmax.f32 %v794, 0.0
  %v887 = vmax.f32 %v797, 0.0
  %v888 = vmax.f32 %v802, 0.0
  %v889 = vmax.f32 %v805, 0.0
  %v890 = vmax.f32 %v810, 0.0
  %v891 = vmax.f32 %v813, 0.0
  %v892 = vmax.f32 %v818, 0.0
  %v893 = vmax.f32 %v821, 0.0
  %v894 = vmax.f32 %v826, 0.0
  %v895 = vmax.f32 %v829, 0.0
  %v896 = vmax.f32 %v834, 0.0
  %v897 = vmax.f32 %v837, 0.0
  %v898 = vmax.f32 %v842, 0.0
  %v899 = vmax.f32 %v845, 0.0
  %v900 = vmax.f32 %v850, 0.0
  %v901 = vmax.f32 %v853, 0.0
  %v902 = vmax.f32 %v858, 0.0
  %v903 = vmax.f32 %v861, 0.0
  %v904 = vmax.f32 %v866, 0.0
  %v905 = vmax.f32 %v869, 0.0
  %v906 = vmax.f32 %v874, 0.0
  %v907 = vmax.f32 %v877, 0.0
  %v908 = vld [vmem:[%s3] sm:$0xff]
  %v909 = vld [vmem:[%s3 + $0x8] sm:$0xff]
  %v910 = vld [vmem:[%s3 + $0x10] sm:$0xff]
  %v911 = vld [vmem:[%s3 + $0x18] sm:$0xff]
  %v912 = vld [vmem:[%s3 + $0x20] sm:$0xff]
  %v913 = vld [vmem:[%s3 + $0x28] sm:$0xff]
  %v914 = vld [vmem:[%s3 + $0x30] sm:$0xff]
  %v915 = vld [vmem:[%s3 + $0x38] sm:$0xff]
  %v916 = vld [vmem:[%s3 + $0x40] sm:$0xff]
  %v917 = vld [vmem:[%s3 + $0x48] sm:$0xff]
  %v918 = vld [vmem:[%s3 + $0x50] sm:$0xff]
  %v919 = vld [vmem:[%s3 + $0x58] sm:$0xff]
  %v920 = vld [vmem:[%s3 + $0x60] sm:$0xff]
  %v921 = vld [vmem:[%s3 + $0x68] sm:$0xff]
  %v922 = vld [vmem:[%s3 + $0x70] sm:$0xff]
  %v923 = vld [vmem:[%s3 + $0x78] sm:$0xff]
  %v924 = vld [vmem:[%s3 + $0x80] sm:$0xff]
  %v925 = vld [vmem:[%s3 + $0x88] sm:$0xff]
  %v926 = vld [vmem:[%s3 + $0x90] sm:$0xff]
  %v927 = vld [vmem:[%s3 + $0x98] sm:$0xff]
  %v928 = vld [vmem:[%s3 + $0xa0] sm:$0xff]
  %v929 = vld [vmem:[%s3 + $0xa8] sm:$0xff]
  %v930 = vld [vmem:[%s3 + $0xb0] sm:$0xff]
  %v931 = vld [vmem:[%s3 + $0xb8] sm:$0xff]
  %v932 = vld [vmem:[%s3 + $0xc0] sm:$0xff]
  %v933 = vld [vmem:[%s3 + $0xc8] sm:$0xff]
  %v934 = vld [vmem:[%s3 + $0xd0] sm:$0xff]
  %v935 = vld [vmem:[%s3 + $0xd8] sm:$0xff]
  %vm936 = vcmp.ge.u32.totalorder %v908, 2147483648
  %vm937 = vcmp.ge.u32.totalorder %v909, 2147483648
  %vm938 = vcmp.ge.u32.totalorder %v910, 2147483648
  %vm939 = vcmp.ge.u32.totalorder %v911, 2147483648
  %vm940 = vcmp.ge.u32.totalorder %v912, 2147483648
  %vm941 = vcmp.ge.u32.totalorder %v913, 2147483648
  %vm942 = vcmp.ge.u32.totalorder %v914, 2147483648
  %vm943 = vcmp.ge.u32.totalorder %v915, 2147483648
  %vm944 = vcmp.ge.u32.totalorder %v916, 2147483648
  %vm945 = vcmp.ge.u32.totalorder %v917, 2147483648
  %vm946 = vcmp.ge.u32.totalorder %v918, 2147483648
  %vm947 = vcmp.ge.u32.totalorder %v919, 2147483648
  %vm948 = vcmp.ge.u32.totalorder %v920, 2147483648
  %vm949 = vcmp.ge.u32.totalorder %v921, 2147483648
  %vm950 = vcmp.ge.u32.totalorder %v922, 2147483648
  %vm951 = vcmp.ge.u32.totalorder %v923, 2147483648
  %vm952 = vcmp.ge.u32.totalorder %v924, 2147483648
  %vm953 = vcmp.ge.u32.totalorder %v925, 2147483648
  %vm954 = vcmp.ge.u32.totalorder %v926, 2147483648
  %vm955 = vcmp.ge.u32.totalorder %v927, 2147483648
  %vm956 = vcmp.ge.u32.totalorder %v928, 2147483648
  %vm957 = vcmp.ge.u32.totalorder %v929, 2147483648
  %vm958 = vcmp.ge.u32.totalorder %v930, 2147483648
  %vm959 = vcmp.ge.u32.totalorder %v931, 2147483648
  %vm960 = vcmp.ge.u32.totalorder %v932, 2147483648
  %vm961 = vcmp.ge.u32.totalorder %v933, 2147483648
  %vm962 = vcmp.ge.u32.totalorder %v934, 2147483648
  %vm963 = vcmp.ge.u32.totalorder %v935, 2147483648
  %v964 = vmul.f32 %v880, 2.0
  %v965 = vmul.f32 %v881, 2.0
  %v966 = vmul.f32 %v882, 2.0
  %v967 = vmul.f32 %v883, 2.0
  %v968 = vmul.f32 %v884, 2.0
  %v969 = vmul.f32 %v885, 2.0
  %v970 = vmul.f32 %v886, 2.0
  %v971 = vmul.f32 %v887, 2.0
  %v972 = vmul.f32 %v888, 2.0
  %v973 = vmul.f32 %v889, 2.0
  %v974 = vmul.f32 %v890, 2.0
  %v975 = vmul.f32 %v891, 2.0
  %v976 = vmul.f32 %v892, 2.0
  %v977 = vmul.f32 %v893, 2.0
  %v978 = vmul.f32 %v894, 2.0
  %v979 = vmul.f32 %v895, 2.0
  %v980 = vmul.f32 %v896, 2.0
  %v981 = vmul.f32 %v897, 2.0
  %v982 = vmul.f32 %v898, 2.0
  %v983 = vmul.f32 %v899, 2.0
  %v984 = vmul.f32 %v900, 2.0
  %v985 = vmul.f32 %v901, 2.0
  %v986 = vmul.f32 %v902, 2.0
  %v987 = vmul.f32 %v903, 2.0
  %v988 = vmul.f32 %v904, 2.0
  %v989 = vmul.f32 %v905, 2.0
  %v990 = vmul.f32 %v906, 2.0
  %v991 = vmul.f32 %v907, 2.0
  %v992 = vsel %vm936, %v964, 0.0
  %v993 = vsel %vm937, %v965, 0.0
  %v994 = vsel %vm938, %v966, 0.0
  %v995 = vsel %vm939, %v967, 0.0
  %v996 = vsel %vm940, %v968, 0.0
  %v997 = vsel %vm941, %v969, 0.0
  %v998 = vsel %vm942, %v970, 0.0
  %v999 = vsel %vm943, %v971, 0.0
  %v1000 = vsel %vm944, %v972, 0.0
  %v1001 = vsel %vm945, %v973, 0.0
  %v1002 = vsel %vm946, %v974, 0.0
  %v1003 = vsel %vm947, %v975, 0.0
  %v1004 = vsel %vm948, %v976, 0.0
  %v1005 = vsel %vm949, %v977, 0.0
  %v1006 = vsel %vm950, %v978, 0.0
  %v1007 = vsel %vm951, %v979, 0.0
  %v1008 = vsel %vm952, %v980, 0.0
  %v1009 = vsel %vm953, %v981, 0.0
  %v1010 = vsel %vm954, %v982, 0.0
  %v1011 = vsel %vm955, %v983, 0.0
  %v1012 = vsel %vm956, %v984, 0.0
  %v1013 = vsel %vm957, %v985, 0.0
  %v1014 = vsel %vm958, %v986, 0.0
  %v1015 = vsel %vm959, %v987, 0.0
  %v1016 = vsel %vm960, %v988, 0.0
  %v1017 = vsel %vm961, %v989, 0.0
  %v1018 = vsel %vm962, %v990, 0.0
  %v1019 = vsel %vm963, %v991, 0.0
  %1020 = vst [vmem:[%s4] sm:$0xff] %v992
  %1021 = vst [vmem:[%s4 + $0x8] sm:$0xff] %v993
  %1022 = vst [vmem:[%s4 + $0x10] sm:$0xff] %v994
  %1023 = vst [vmem:[%s4 + $0x18] sm:$0xff] %v995
  %1024 = vst [vmem:[%s4 + $0x20] sm:$0xff] %v996
  %1025 = vst [vmem:[%s4 + $0x28] sm:$0xff] %v997
  %1026 = vst [vmem:[%s4 + $0x30] sm:$0xff] %v998
  %1027 = vst [vmem:[%s4 + $0x38] sm:$0xff] %v999
  %1028 = vst [vmem:[%s4 + $0x40] sm:$0xff] %v1000
  %1029 = vst [vmem:[%s4 + $0x48] sm:$0xff] %v1001
  %1030 = vst [vmem:[%s4 + $0x50] sm:$0xff] %v1002
  %1031 = vst [vmem:[%s4 + $0x58] sm:$0xff] %v1003
  %1032 = vst [vmem:[%s4 + $0x60] sm:$0xff] %v1004
  %1033 = vst [vmem:[%s4 + $0x68] sm:$0xff] %v1005
  %1034 = vst [vmem:[%s4 + $0x70] sm:$0xff] %v1006
  %1035 = vst [vmem:[%s4 + $0x78] sm:$0xff] %v1007
  %1036 = vst [vmem:[%s4 + $0x80] sm:$0xff] %v1008
  %1037 = vst [vmem:[%s4 + $0x88] sm:$0xff] %v1009
  %1038 = vst [vmem:[%s4 + $0x90] sm:$0xff] %v1010
  %1039 = vst [vmem:[%s4 + $0x98] sm:$0xff] %v1011
  %1040 = vst [vmem:[%s4 + $0xa0] sm:$0xff] %v1012
  %1041 = vst [vmem:[%s4 + $0xa8] sm:$0xff] %v1013
  %1042 = vst [vmem:[%s4 + $0xb0] sm:$0xff] %v1014
  %1043 = vst [vmem:[%s4 + $0xb8] sm:$0xff] %v1015
  %1044 = vst [vmem:[%s4 + $0xc0] sm:$0xff] %v1016
  %1045 = vst [vmem:[%s4 + $0xc8] sm:$0xff] %v1017
  %1046 = vst [vmem:[%s4 + $0xd0] sm:$0xff] %v1018
  %1047 = vst [vmem:[%s4 + $0xd8] sm:$0xff] %v1019
  // Predicated region
  $region18: #{probabilistic_alexnet_forward.15} parent=0 // pred_check
    _
  $region19: #{probabilistic_alexnet_forward.15} parent=0 // pred_check_branch
    %1049 = sbr.rel (0) target = $region21
  $region20: #{probabilistic_alexnet_forward.15} parent=0 // pred_region
    _
  $region21: #{probabilistic_alexnet_forward.15} parent=0 // pred_fallthru
    _
  // Predicated region
  $region22: #{probabilistic_alexnet_forward.15} parent=0 // pred_check
    _
  $region23: #{probabilistic_alexnet_forward.15} parent=0 // pred_check_branch
    %1051 = sbr.rel (0) target = $region25
  $region24: #{probabilistic_alexnet_forward.15} parent=0 // pred_region
    _
  $region25: #{probabilistic_alexnet_forward.15} parent=0 // pred_fallthru
    _

// kernel: probabilistic_alexnet_forward.16
$region0: #{probabilistic_alexnet_forward.16}
  #allocation0 [shape = 'u32[]', space=smem, size = 0x4, offset = 0x4, fixed_abs, tag = 'smem constant byte address 0x4 - core index']
  #allocation1 [shape = 'u32[144,128]{1,0:T(1,128)}', space=vmem, size = 0x12000, scoped, tag = 'internal scratch']
  %s0 = inlined_call_operand.vmem [shape: f32[48,24], index: 0, kind: input, shape index: {}]
  %s1 = inlined_call_operand.vmem [shape: f32[48,24], index: 1, kind: input, shape index: {}]
  %s2 = inlined_call_operand.vmem [shape: f32[48,24], index: 2, kind: input, shape index: {}]
  %s3 = inlined_call_operand.vmem [shape: f32[48,24], index: 3, kind: input, shape index: {}]
  %s4 = inlined_call_operand.vmem [shape: f32[48,24], index: 4, kind: input, shape index: {}]
  %s5 = inlined_call_operand.vmem [shape: f32[48,24], index: 5, kind: input, shape index: {}]
  %s6 = inlined_call_operand.vmem [shape: f32[48,24], index: 6, kind: input, shape index: {}]
  %s7 = inlined_call_operand.vmem [shape: f32[48,24], index: 7, kind: input, shape index: {}]
  %s8 = inlined_call_operand.vmem [shape: f32[48,24], index: 8, kind: input, shape index: {}]
  %s9 = inlined_call_operand.vmem [shape: f32[48,24], index: 9, kind: output, shape index: {}]
  %s10 = sld [smem:[#allocation0]]
  $region46: #{probabilistic_alexnet_forward.16} parent=0
    _
  %s12 = ssub.s32 1, %s10
  %s13 = scalar_select 0, %s12, %s10
  // Predicated region
  $region2: #{probabilistic_alexnet_forward.16} parent=0 // pred_check
    _
  $region3: #{probabilistic_alexnet_forward.16} parent=0 // pred_check_branch
    %15 = sbr.rel (0) target = $region5
  $region4: #{probabilistic_alexnet_forward.16} parent=0 // pred_region
    _
  $region5: #{probabilistic_alexnet_forward.16} parent=0 // pred_fallthru
    _
  // Predicated region
  $region6: #{probabilistic_alexnet_forward.16} parent=0 // pred_check
    _
  $region7: #{probabilistic_alexnet_forward.16} parent=0 // pred_check_branch
    %17 = sbr.rel (0) target = $region9
  $region8: #{probabilistic_alexnet_forward.16} parent=0 // pred_region
    _
  $region9: #{probabilistic_alexnet_forward.16} parent=0 // pred_fallthru
    _
  // Predicated region
  $region10: #{probabilistic_alexnet_forward.16} parent=0 // pred_check
    _
  $region11: #{probabilistic_alexnet_forward.16} parent=0 // pred_check_branch
    %19 = sbr.rel (0) target = $region13
  $region12: #{probabilistic_alexnet_forward.16} parent=0 // pred_region
    _
  $region13: #{probabilistic_alexnet_forward.16} parent=0 // pred_fallthru
    _
  // Predicated region
  $region14: #{probabilistic_alexnet_forward.16} parent=0 // pred_check
    _
  $region15: #{probabilistic_alexnet_forward.16} parent=0 // pred_check_branch
    %21 = sbr.rel (0) target = $region17
  $region16: #{probabilistic_alexnet_forward.16} parent=0 // pred_region
    _
  $region17: #{probabilistic_alexnet_forward.16} parent=0 // pred_fallthru
    _
  // Predicated region
  $region18: #{probabilistic_alexnet_forward.16} parent=0 // pred_check
    _
  $region19: #{probabilistic_alexnet_forward.16} parent=0 // pred_check_branch
    %23 = sbr.rel (0) target = $region21
  $region20: #{probabilistic_alexnet_forward.16} parent=0 // pred_region
    _
  $region21: #{probabilistic_alexnet_forward.16} parent=0 // pred_fallthru
    _
  // Predicated region
  $region22: #{probabilistic_alexnet_forward.16} parent=0 // pred_check
    _
  $region23: #{probabilistic_alexnet_forward.16} parent=0 // pred_check_branch
    %25 = sbr.rel (0) target = $region25
  $region24: #{probabilistic_alexnet_forward.16} parent=0 // pred_region
    _
  $region25: #{probabilistic_alexnet_forward.16} parent=0 // pred_fallthru
    _
  // Predicated region
  $region26: #{probabilistic_alexnet_forward.16} parent=0 // pred_check
    _
  $region27: #{probabilistic_alexnet_forward.16} parent=0 // pred_check_branch
    %27 = sbr.rel (0) target = $region29
  $region28: #{probabilistic_alexnet_forward.16} parent=0 // pred_region
    _
  $region29: #{probabilistic_alexnet_forward.16} parent=0 // pred_fallthru
    _
  // Predicated region
  $region30: #{probabilistic_alexnet_forward.16} parent=0 // pred_check
    _
  $region31: #{probabilistic_alexnet_forward.16} parent=0 // pred_check_branch
    %29 = sbr.rel (0) target = $region33
  $region32: #{probabilistic_alexnet_forward.16} parent=0 // pred_region
    _
  $region33: #{probabilistic_alexnet_forward.16} parent=0 // pred_fallthru
    _
  // Predicated region
  $region34: #{probabilistic_alexnet_forward.16} parent=0 // pred_check
    _
  $region35: #{probabilistic_alexnet_forward.16} parent=0 // pred_check_branch
    %31 = sbr.rel (0) target = $region37
  $region36: #{probabilistic_alexnet_forward.16} parent=0 // pred_region
    _
  $region37: #{probabilistic_alexnet_forward.16} parent=0 // pred_fallthru
    _
  %v32 = vld [vmem:[%s0] sm:$0xff]
  %v33 = vld [vmem:[%s0 + $0x8] sm:$0xff]
  %v34 = vld [vmem:[%s0 + $0x10] sm:$0xff]
  %v35 = vld [vmem:[%s0 + $0x18] sm:$0xff]
  %v36 = vld [vmem:[%s0 + $0x20] sm:$0xff]
  %v37 = vld [vmem:[%s0 + $0x28] sm:$0xff]
  %v38 = vld [vmem:[%s1] sm:$0xff]
  %v39 = vld [vmem:[%s1 + $0x8] sm:$0xff]
  %v40 = vld [vmem:[%s1 + $0x10] sm:$0xff]
  %v41 = vld [vmem:[%s1 + $0x18] sm:$0xff]
  %v42 = vld [vmem:[%s1 + $0x20] sm:$0xff]
  %v43 = vld [vmem:[%s1 + $0x28] sm:$0xff]
  %v44 = vld [vmem:[%s2] sm:$0xff]
  %v45 = vld [vmem:[%s2 + $0x8] sm:$0xff]
  %v46 = vld [vmem:[%s2 + $0x10] sm:$0xff]
  %v47 = vld [vmem:[%s2 + $0x18] sm:$0xff]
  %v48 = vld [vmem:[%s2 + $0x20] sm:$0xff]
  %v49 = vld [vmem:[%s2 + $0x28] sm:$0xff]
  %v50 = vld [vmem:[%s3] sm:$0xff]
  %v51 = vld [vmem:[%s3 + $0x8] sm:$0xff]
  %v52 = vld [vmem:[%s3 + $0x10] sm:$0xff]
  %v53 = vld [vmem:[%s3 + $0x18] sm:$0xff]
  %v54 = vld [vmem:[%s3 + $0x20] sm:$0xff]
  %v55 = vld [vmem:[%s3 + $0x28] sm:$0xff]
  %v56 = vld [vmem:[%s4] sm:$0xff]
  %v57 = vld [vmem:[%s4 + $0x8] sm:$0xff]
  %v58 = vld [vmem:[%s4 + $0x10] sm:$0xff]
  %v59 = vld [vmem:[%s4 + $0x18] sm:$0xff]
  %v60 = vld [vmem:[%s4 + $0x20] sm:$0xff]
  %v61 = vld [vmem:[%s4 + $0x28] sm:$0xff]
  %v62 = vld [vmem:[%s5] sm:$0xff]
  %v63 = vld [vmem:[%s5 + $0x8] sm:$0xff]
  %v64 = vld [vmem:[%s5 + $0x10] sm:$0xff]
  %v65 = vld [vmem:[%s5 + $0x18] sm:$0xff]
  %v66 = vld [vmem:[%s5 + $0x20] sm:$0xff]
  %v67 = vld [vmem:[%s5 + $0x28] sm:$0xff]
  %v68 = vld [vmem:[%s6] sm:$0xff]
  %v69 = vld [vmem:[%s6 + $0x8] sm:$0xff]
  %v70 = vld [vmem:[%s6 + $0x10] sm:$0xff]
  %v71 = vld [vmem:[%s6 + $0x18] sm:$0xff]
  %v72 = vld [vmem:[%s6 + $0x20] sm:$0xff]
  %v73 = vld [vmem:[%s6 + $0x28] sm:$0xff]
  %v74 = vld [vmem:[%s7] sm:$0xff]
  %v75 = vld [vmem:[%s7 + $0x8] sm:$0xff]
  %v76 = vld [vmem:[%s7 + $0x10] sm:$0xff]
  %v77 = vld [vmem:[%s7 + $0x18] sm:$0xff]
  %v78 = vld [vmem:[%s7 + $0x20] sm:$0xff]
  %v79 = vld [vmem:[%s7 + $0x28] sm:$0xff]
  %v80 = vld [vmem:[%s8] sm:$0xff]
  %v81 = vld [vmem:[%s8 + $0x8] sm:$0xff]
  %v82 = vld [vmem:[%s8 + $0x10] sm:$0xff]
  %v83 = vld [vmem:[%s8 + $0x18] sm:$0xff]
  %v84 = vld [vmem:[%s8 + $0x20] sm:$0xff]
  %v85 = vld [vmem:[%s8 + $0x28] sm:$0xff]
  %v86 = vmax.f32 %v32, %v38
  %v87 = vmax.f32 %v33, %v39
  %v88 = vmax.f32 %v34, %v40
  %v89 = vmax.f32 %v35, %v41
  %v90 = vmax.f32 %v36, %v42
  %v91 = vmax.f32 %v37, %v43
  %v92 = vmax.f32 %v44, %v50
  %v93 = vmax.f32 %v45, %v51
  %v94 = vmax.f32 %v46, %v52
  %v95 = vmax.f32 %v47, %v53
  %v96 = vmax.f32 %v48, %v54
  %v97 = vmax.f32 %v49, %v55
  %v98 = vmax.f32 %v56, %v62
  %v99 = vmax.f32 %v57, %v63
  %v100 = vmax.f32 %v58, %v64
  %v101 = vmax.f32 %v59, %v65
  %v102 = vmax.f32 %v60, %v66
  %v103 = vmax.f32 %v61, %v67
  %v104 = vmax.f32 %v68, %v74
  %v105 = vmax.f32 %v69, %v75
  %v106 = vmax.f32 %v70, %v76
  %v107 = vmax.f32 %v71, %v77
  %v108 = vmax.f32 %v72, %v78
  %v109 = vmax.f32 %v73, %v79
  %v110 = vmax.f32 %v86, %v92
  %v111 = vmax.f32 %v87, %v93
  %v112 = vmax.f32 %v88, %v94
  %v113 = vmax.f32 %v89, %v95
  %v114 = vmax.f32 %v90, %v96
  %v115 = vmax.f32 %v91, %v97
  %v116 = vmax.f32 %v98, %v104
  %v117 = vmax.f32 %v99, %v105
  %v118 = vmax.f32 %v100, %v106
  %v119 = vmax.f32 %v101, %v107
  %v120 = vmax.f32 %v102, %v108
  %v121 = vmax.f32 %v103, %v109
  %v122 = vmax.f32 %v110, %v116
  %v123 = vmax.f32 %v111, %v117
  %v124 = vmax.f32 %v112, %v118
  %v125 = vmax.f32 %v113, %v119
  %v126 = vmax.f32 %v114, %v120
  %v127 = vmax.f32 %v115, %v121
  %v128 = vmax.f32 %v122, %v80
  %v129 = vmax.f32 %v123, %v81
  %v130 = vmax.f32 %v124, %v82
  %v131 = vmax.f32 %v125, %v83
  %v132 = vmax.f32 %v126, %v84
  %v133 = vmax.f32 %v127, %v85
  %vm134 = vcmask 195584
  %135 = vst.msk [vmem:[%s9] sm:$0xff] %vm134, %v128
  %136 = vst.msk [vmem:[%s9 + $0x8] sm:$0xff] %vm134, %v129
  %137 = vst.msk [vmem:[%s9 + $0x10] sm:$0xff] %vm134, %v130
  %138 = vst.msk [vmem:[%s9 + $0x18] sm:$0xff] %vm134, %v131
  %139 = vst.msk [vmem:[%s9 + $0x20] sm:$0xff] %vm134, %v132
  %140 = vst.msk [vmem:[%s9 + $0x28] sm:$0xff] %vm134, %v133
  // Predicated region
  $region38: #{probabilistic_alexnet_forward.16} parent=0 // pred_check
    _
  $region39: #{probabilistic_alexnet_forward.16} parent=0 // pred_check_branch
    %142 = sbr.rel (0) target = $region41
  $region40: #{probabilistic_alexnet_forward.16} parent=0 // pred_region
    _
  $region41: #{probabilistic_alexnet_forward.16} parent=0 // pred_fallthru
    _
  // Predicated region
  $region42: #{probabilistic_alexnet_forward.16} parent=0 // pred_check
    _
  $region43: #{probabilistic_alexnet_forward.16} parent=0 // pred_check_branch
    %144 = sbr.rel (0) target = $region45
  $region44: #{probabilistic_alexnet_forward.16} parent=0 // pred_region
    _
  $region45: #{probabilistic_alexnet_forward.16} parent=0 // pred_fallthru
    _

// kernel: probabilistic_alexnet_forward.17
$region0: #{probabilistic_alexnet_forward.17}
  #allocation0 [shape = 'u32[]', space=smem, size = 0x4, offset = 0x4, fixed_abs, tag = 'smem constant byte address 0x4 - core index']
  #allocation1 [shape = 'u32[144,128]{1,0:T(1,128)}', space=vmem, size = 0x12000, scoped, tag = 'internal scratch']
  %s0 = inlined_call_operand.vmem [shape: bf16[48,216], index: 0, kind: input, shape index: {}]
  %s1 = inlined_call_operand.vmem [shape: bf16[216,128], index: 1, kind: input, shape index: {}]
  %s2 = inlined_call_operand.vmem [shape: f32[1,128], index: 2, kind: input, shape index: {}]
  %s3 = inlined_call_operand.vmem [shape: u32[48,128], index: 3, kind: input, shape index: {}]
  %s4 = inlined_call_operand.vmem [shape: f32[48,128], index: 4, kind: output, shape index: {}]
  %s5 = sld [smem:[#allocation0]]
  $region26: #{probabilistic_alexnet_forward.17} parent=0
    _
  %s7 = ssub.s32 1, %s5
  %s8 = scalar_select 0, %s7, %s5
  // Predicated region
  $region2: #{probabilistic_alexnet_forward.17} parent=0 // pred_check
    _
  $region3: #{probabilistic_alexnet_forward.17} parent=0 // pred_check_branch
    %10 = sbr.rel (0) target = $region5
  $region4: #{probabilistic_alexnet_forward.17} parent=0 // pred_region
    _
  $region5: #{probabilistic_alexnet_forward.17} parent=0 // pred_fallthru
    _
  // Predicated region
  $region6: #{probabilistic_alexnet_forward.17} parent=0 // pred_check
    _
  $region7: #{probabilistic_alexnet_forward.17} parent=0 // pred_check_branch
    %12 = sbr.rel (0) target = $region9
  $region8: #{probabilistic_alexnet_forward.17} parent=0 // pred_region
    _
  $region9: #{probabilistic_alexnet_forward.17} parent=0 // pred_fallthru
    _
  // Predicated region
  $region10: #{probabilistic_alexnet_forward.17} parent=0 // pred_check
    _
  $region11: #{probabilistic_alexnet_forward.17} parent=0 // pred_check_branch
    %14 = sbr.rel (0) target = $region13
  $region12: #{probabilistic_alexnet_forward.17} parent=0 // pred_region
    _
  $region13: #{probabilistic_alexnet_forward.17} parent=0 // pred_fallthru
    _
  // Predicated region
  $region14: #{probabilistic_alexnet_forward.17} parent=0 // pred_check
    _
  $region15: #{probabilistic_alexnet_forward.17} parent=0 // pred_check_branch
    %16 = sbr.rel (0) target = $region17
  $region16: #{probabilistic_alexnet_forward.17} parent=0 // pred_region
    _
  $region17: #{probabilistic_alexnet_forward.17} parent=0 // pred_fallthru
    _
  %v18 = vld [vmem:[%s0] sm:$0xff]
  %v19 = vld [vmem:[%s0 + $0x8] sm:$0xff]
  %v20 = vld [vmem:[%s0 + $0x10] sm:$0xff]
  %v21 = vld [vmem:[%s0 + $0x18] sm:$0xff]
  %v22 = vld [vmem:[%s0 + $0x20] sm:$0xff]
  %v23 = vld [vmem:[%s0 + $0x28] sm:$0xff]
  %v24 = vld [vmem:[%s1] sm:$0xf]
  %v25 = vld [vmem:[%s1 + $0x4] sm:$0xf]
  %v26 = vld [vmem:[%s1 + $0x8] sm:$0xf]
  %v27 = vld [vmem:[%s1 + $0xc] sm:$0xf]
  %v28 = vld [vmem:[%s1 + $0x10] sm:$0xf]
  %v29 = vld [vmem:[%s1 + $0x14] sm:$0xf]
  %v30 = vld [vmem:[%s1 + $0x18] sm:$0xf]
  %v31 = vld [vmem:[%s1 + $0x1c] sm:$0xf]
  %v32 = vld [vmem:[%s1 + $0x20] sm:$0xf]
  %v33 = vld [vmem:[%s1 + $0x24] sm:$0xf]
  %v34 = vld [vmem:[%s1 + $0x28] sm:$0xf]
  %v35 = vld [vmem:[%s1 + $0x2c] sm:$0xf]
  %v36 = vld [vmem:[%s1 + $0x30] sm:$0xf]
  %v37 = vld [vmem:[%s1 + $0x34] sm:$0xf]
  %v38 = vld [vmem:[%s1 + $0x38] sm:$0xf]
  %v39 = vld [vmem:[%s1 + $0x3c] sm:$0xf]
  %v40 = vld [vmem:[%s1 + $0x40] sm:$0xf]
  %v41 = vld [vmem:[%s1 + $0x44] sm:$0xf]
  %v42 = vld [vmem:[%s1 + $0x48] sm:$0xf]
  %v43 = vld [vmem:[%s1 + $0x4c] sm:$0xf]
  %v44 = vld [vmem:[%s1 + $0x50] sm:$0xf]
  %v45 = vld [vmem:[%s1 + $0x54] sm:$0xf]
  %v46 = vld [vmem:[%s1 + $0x58] sm:$0xf]
  %v47 = vld [vmem:[%s1 + $0x5c] sm:$0xf]
  %v48 = vld [vmem:[%s1 + $0x60] sm:$0xf]
  %v49 = vld [vmem:[%s1 + $0x64] sm:$0xf]
  %v50 = vld [vmem:[%s1 + $0x68] sm:$0xf]
  %v51 = vld [vmem:[%s2] sm:$0x1]
  %v53 = vlaneseq
  %v54 = vshrl.u32 %v53, 7
  %v55 = vsub.s32 0, %v54
  %v56 = vrot.slane %v51, %v55
  %v64 = vunpack.c.l.b16 %v18
  %v65 = vunpack.c.h.b16 %v18
  %v66 = vunpack.c.l.b16 %v19
  %v67 = vunpack.c.h.b16 %v19
  %v68 = vunpack.c.l.b16 %v20
  %v69 = vunpack.c.h.b16 %v20
  %v70 = vunpack.c.l.b16 %v21
  %v71 = vunpack.c.h.b16 %v21
  %v72 = vunpack.c.l.b16 %v22
  %v73 = vunpack.c.h.b16 %v22
  %v74 = vunpack.c.l.b16 %v23
  %v75 = vunpack.c.h.b16 %v23
  %v76 = vpack.c.b16 %v66, %v64
  %v77 = vpack.c.b16 %v67, %v65
  %v78 = vpack.c.b16 %v70, %v68
  %v79 = vpack.c.b16 %v71, %v69
  %v80 = vpack.c.b16 %v74, %v72
  %v81 = vpack.c.b16 %v75, %v73
  %v112 = vunpack.c.l.b16 %v24
  %v113 = vunpack.c.l.b16 %v25
  %v114 = vunpack.c.l.b16 %v26
  %v115 = vunpack.c.l.b16 %v27
  %v116 = vunpack.c.l.b16 %v28
  %v117 = vunpack.c.l.b16 %v29
  %v118 = vunpack.c.l.b16 %v30
  %v119 = vunpack.c.l.b16 %v31
  %v120 = vunpack.c.l.b16 %v32
  %v121 = vunpack.c.l.b16 %v33
  %v122 = vunpack.c.l.b16 %v34
  %v123 = vunpack.c.l.b16 %v35
  %v124 = vunpack.c.l.b16 %v36
  %v125 = vunpack.c.l.b16 %v37
  %v126 = vunpack.c.l.b16 %v38
  %v127 = vunpack.c.l.b16 %v39
  %v128 = vunpack.c.l.b16 %v40
  %v129 = vunpack.c.l.b16 %v41
  %v130 = vunpack.c.l.b16 %v42
  %v131 = vunpack.c.l.b16 %v43
  %v132 = vunpack.c.l.b16 %v44
  %v133 = vunpack.c.l.b16 %v45
  %v134 = vunpack.c.l.b16 %v46
  %v135 = vunpack.c.l.b16 %v47
  %v136 = vunpack.c.l.b16 %v48
  %v137 = vunpack.c.l.b16 %v49
  %v138 = vunpack.c.l.b16 %v50
  %v139 = vpack.c.b16 %v113, %v112
  %v140 = vpack.c.b16 %v115, %v114
  %v141 = vpack.c.b16 %v117, %v116
  %v142 = vpack.c.b16 %v119, %v118
  %v143 = vpack.c.b16 %v121, %v120
  %v144 = vpack.c.b16 %v123, %v122
  %v145 = vpack.c.b16 %v125, %v124
  %v146 = vpack.c.b16 %v127, %v126
  %v147 = vpack.c.b16 %v129, %v128
  %v148 = vpack.c.b16 %v131, %v130
  %v149 = vpack.c.b16 %v133, %v132
  %v150 = vpack.c.b16 %v135, %v134
  %v151 = vpack.c.b16 %v137, %v136
  %v152 = vpack.c.b16 %v138, %v138
  %vm166 = vcmask 719872
  %v168 = vsel %vm166, %v77, 0
  %v171 = vsel %vm166, %v79, 0
  %v174 = vsel %vm166, %v81, 0
  %vm176 = vcmask 1043456
  %v178 = vsel %vm176, %v152, 0
  %180 = vmatprep.subr.bf16.mxu0 0
  %181 = vmatpush1.bf16.msra.mxu0 %v139
  %182 = vmatprep.subr.bf16.mxu0 0
  %183 = vmatpush1.bf16.msra.mxu0 %v140
  %184 = vmatprep.subr.bf16.mxu0 0
  %185 = vmatpush1.bf16.msra.mxu0 %v141
  %186 = vmatprep.subr.bf16.mxu0 0
  %187 = vmatpush1.bf16.msra.mxu0 %v142
  %188 = vmatprep.subr.bf16.mxu0 0
  %189 = vmatpush1.bf16.msra.mxu0 %v143
  %190 = vmatprep.subr.bf16.mxu0 0
  %191 = vmatpush1.bf16.msra.mxu0 %v144
  %192 = vmatprep.subr.bf16.mxu0 0
  %193 = vmatpush1.bf16.msra.mxu0 %v145
  %194 = vmatprep.subr.bf16.mxu0 0
  %195 = vmatpush1.bf16.msra.mxu0 %v146
  %196 = vmatprep.subr.bf16.mxu0 0
  %197 = vmatpush1.bf16.msra.mxu0 %v147
  %198 = vmatprep.subr.bf16.mxu0 0
  %199 = vmatpush1.bf16.msra.mxu0 %v148
  %200 = vmatprep.subr.bf16.mxu0 0
  %201 = vmatpush1.bf16.msra.mxu0 %v149
  %202 = vmatprep.subr.bf16.mxu0 0
  %203 = vmatpush1.bf16.msra.mxu0 %v150
  %204 = vmatprep.subr.bf16.mxu0 0
  %205 = vmatpush1.bf16.msra.mxu0 %v151
  %206 = vmatprep.subr.bf16.mxu0 0
  %207 = vmatpush1.bf16.msra.mxu0 %v178
  %208 = vmatprep.subr.bf16.mxu0 0
  %209 = vmatpush1.bf16.msra.mxu0 0
  %210 = vmatprep.subr.bf16.mxu0 0
  %211 = vmatpush1.bf16.msra.mxu0 0
  %212 = vmatprep.mubr.bf16.mxu0 %v168
  %213 = vmatmul.mubr.bf16.gmra.mrb[0].mxu0 %v76
  %v214 = vpop.f32.mrb[0].mxu0
  %v215 = vadd.f32 %v56, %v214
  %v216 = vpop.f32.mrb[0].mxu0
  %v217 = vpop.f32.mrb[0].mxu0
  %v218 = vadd.f32 %v56, %v217
  %v219 = vpop.f32.mrb[0].mxu0
  %220 = vmatprep.mubr.bf16.mxu0 %v171
  %221 = vmatmul.mubr.bf16.gmra.mrb[0].mxu0 %v78
  %v222 = vpop.f32.mrb[0].mxu0
  %v223 = vadd.f32 %v56, %v222
  %v224 = vpop.f32.mrb[0].mxu0
  %v225 = vpop.f32.mrb[0].mxu0
  %v226 = vadd.f32 %v56, %v225
  %v227 = vpop.f32.mrb[0].mxu0
  %228 = vmatprep.mubr.bf16.mxu0 %v174
  %229 = vmatmul.mubr.bf16.gmra.mrb[0].mxu0 %v80
  %v230 = vpop.f32.mrb[0].mxu0
  %v231 = vadd.f32 %v56, %v230
  %v232 = vpop.f32.mrb[0].mxu0
  %v233 = vpop.f32.mrb[0].mxu0
  %v234 = vadd.f32 %v56, %v233
  %v235 = vpop.f32.mrb[0].mxu0
  %236 = vdwg.mxu0
  %v237 = vmax.f32 %v215, 0.0
  %v238 = vmax.f32 %v218, 0.0
  %v239 = vmax.f32 %v223, 0.0
  %v240 = vmax.f32 %v226, 0.0
  %v241 = vmax.f32 %v231, 0.0
  %v242 = vmax.f32 %v234, 0.0
  %v243 = vld [vmem:[%s3] sm:$0xff]
  %v244 = vld [vmem:[%s3 + $0x8] sm:$0xff]
  %v245 = vld [vmem:[%s3 + $0x10] sm:$0xff]
  %v246 = vld [vmem:[%s3 + $0x18] sm:$0xff]
  %v247 = vld [vmem:[%s3 + $0x20] sm:$0xff]
  %v248 = vld [vmem:[%s3 + $0x28] sm:$0xff]
  %vm249 = vcmp.ge.u32.totalorder %v243, 2147483648
  %vm250 = vcmp.ge.u32.totalorder %v244, 2147483648
  %vm251 = vcmp.ge.u32.totalorder %v245, 2147483648
  %vm252 = vcmp.ge.u32.totalorder %v246, 2147483648
  %vm253 = vcmp.ge.u32.totalorder %v247, 2147483648
  %vm254 = vcmp.ge.u32.totalorder %v248, 2147483648
  %v255 = vmul.f32 %v237, 2.0
  %v256 = vmul.f32 %v238, 2.0
  %v257 = vmul.f32 %v239, 2.0
  %v258 = vmul.f32 %v240, 2.0
  %v259 = vmul.f32 %v241, 2.0
  %v260 = vmul.f32 %v242, 2.0
  %v261 = vsel %vm249, %v255, 0.0
  %v262 = vsel %vm250, %v256, 0.0
  %v263 = vsel %vm251, %v257, 0.0
  %v264 = vsel %vm252, %v258, 0.0
  %v265 = vsel %vm253, %v259, 0.0
  %v266 = vsel %vm254, %v260, 0.0
  %267 = vst [vmem:[%s4] sm:$0xff] %v261
  %268 = vst [vmem:[%s4 + $0x8] sm:$0xff] %v262
  %269 = vst [vmem:[%s4 + $0x10] sm:$0xff] %v263
  %270 = vst [vmem:[%s4 + $0x18] sm:$0xff] %v264
  %271 = vst [vmem:[%s4 + $0x20] sm:$0xff] %v265
  %272 = vst [vmem:[%s4 + $0x28] sm:$0xff] %v266
  // Predicated region
  $region18: #{probabilistic_alexnet_forward.17} parent=0 // pred_check
    _
  $region19: #{probabilistic_alexnet_forward.17} parent=0 // pred_check_branch
    %274 = sbr.rel (0) target = $region21
  $region20: #{probabilistic_alexnet_forward.17} parent=0 // pred_region
    _
  $region21: #{probabilistic_alexnet_forward.17} parent=0 // pred_fallthru
    _
  // Predicated region
  $region22: #{probabilistic_alexnet_forward.17} parent=0 // pred_check
    _
  $region23: #{probabilistic_alexnet_forward.17} parent=0 // pred_check_branch
    %276 = sbr.rel (0) target = $region25
  $region24: #{probabilistic_alexnet_forward.17} parent=0 // pred_region
    _
  $region25: #{probabilistic_alexnet_forward.17} parent=0 // pred_fallthru
    _

// kernel: probabilistic_alexnet_forward.18
$region0: #{probabilistic_alexnet_forward.18}
  #allocation0 [shape = 'u32[]', space=smem, size = 0x4, offset = 0x4, fixed_abs, tag = 'smem constant byte address 0x4 - core index']
  #allocation1 [shape = 'u32[144,128]{1,0:T(1,128)}', space=vmem, size = 0x12000, scoped, tag = 'internal scratch']
  %s0 = inlined_call_operand.vmem [shape: bf16[48,288], index: 0, kind: input, shape index: {}]
  %s1 = inlined_call_operand.vmem [shape: bf16[288,128], index: 1, kind: input, shape index: {}]
  %s2 = inlined_call_operand.vmem [shape: f32[1,128], index: 2, kind: input, shape index: {}]
  %s3 = inlined_call_operand.vmem [shape: u32[48,128], index: 3, kind: input, shape index: {}]
  %s4 = inlined_call_operand.vmem [shape: f32[48,128], index: 4, kind: output, shape index: {}]
  %s5 = sld [smem:[#allocation0]]
  $region26: #{probabilistic_alexnet_forward.18} parent=0
    _
  %s7 = ssub.s32 1, %s5
  %s8 = scalar_select 0, %s7, %s5
  // Predicated region
  $region2: #{probabilistic_alexnet_forward.18} parent=0 // pred_check
    _
  $region3: #{probabilistic_alexnet_forward.18} parent=0 // pred_check_branch
    %10 = sbr.rel (0) target = $region5
  $region4: #{probabilistic_alexnet_forward.18} parent=0 // pred_region
    _
  $region5: #{probabilistic_alexnet_forward.18} parent=0 // pred_fallthru
    _
  // Predicated region
  $region6: #{probabilistic_alexnet_forward.18} parent=0 // pred_check
    _
  $region7: #{probabilistic_alexnet_forward.18} parent=0 // pred_check_branch
    %12 = sbr.rel (0) target = $region9
  $region8: #{probabilistic_alexnet_forward.18} parent=0 // pred_region
    _
  $region9: #{probabilistic_alexnet_forward.18} parent=0 // pred_fallthru
    _
  // Predicated region
  $region10: #{probabilistic_alexnet_forward.18} parent=0 // pred_check
    _
  $region11: #{probabilistic_alexnet_forward.18} parent=0 // pred_check_branch
    %14 = sbr.rel (0) target = $region13
  $region12: #{probabilistic_alexnet_forward.18} parent=0 // pred_region
    _
  $region13: #{probabilistic_alexnet_forward.18} parent=0 // pred_fallthru
    _
  // Predicated region
  $region14: #{probabilistic_alexnet_forward.18} parent=0 // pred_check
    _
  $region15: #{probabilistic_alexnet_forward.18} parent=0 // pred_check_branch
    %16 = sbr.rel (0) target = $region17
  $region16: #{probabilistic_alexnet_forward.18} parent=0 // pred_region
    _
  $region17: #{probabilistic_alexnet_forward.18} parent=0 // pred_fallthru
    _
  %v18 = vld [vmem:[%s0] sm:$0xff]
  %v19 = vld [vmem:[%s0 + $0x8] sm:$0xf]
  %v20 = vld [vmem:[%s0 + $0xc] sm:$0xff]
  %v21 = vld [vmem:[%s0 + $0x14] sm:$0xf]
  %v22 = vld [vmem:[%s0 + $0x18] sm:$0xff]
  %v23 = vld [vmem:[%s0 + $0x20] sm:$0xf]
  %v24 = vld [vmem:[%s0 + $0x24] sm:$0xff]
  %v25 = vld [vmem:[%s0 + $0x2c] sm:$0xf]
  %v26 = vld [vmem:[%s0 + $0x30] sm:$0xff]
  %v27 = vld [vmem:[%s0 + $0x38] sm:$0xf]
  %v28 = vld [vmem:[%s0 + $0x3c] sm:$0xff]
  %v29 = vld [vmem:[%s0 + $0x44] sm:$0xf]
  %v30 = vld [vmem:[%s1] sm:$0xf]
  %v31 = vld [vmem:[%s1 + $0x4] sm:$0xf]
  %v32 = vld [vmem:[%s1 + $0x8] sm:$0xf]
  %v33 = vld [vmem:[%s1 + $0xc] sm:$0xf]
  %v34 = vld [vmem:[%s1 + $0x10] sm:$0xf]
  %v35 = vld [vmem:[%s1 + $0x14] sm:$0xf]
  %v36 = vld [vmem:[%s1 + $0x18] sm:$0xf]
  %v37 = vld [vmem:[%s1 + $0x1c] sm:$0xf]
  %v38 = vld [vmem:[%s1 + $0x20] sm:$0xf]
  %v39 = vld [vmem:[%s1 + $0x24] sm:$0xf]
  %v40 = vld [vmem:[%s1 + $0x28] sm:$0xf]
  %v41 = vld [vmem:[%s1 + $0x2c] sm:$0xf]
  %v42 = vld [vmem:[%s1 + $0x30] sm:$0xf]
  %v43 = vld [vmem:[%s1 + $0x34] sm:$0xf]
  %v44 = vld [vmem:[%s1 + $0x38] sm:$0xf]
  %v45 = vld [vmem:[%s1 + $0x3c] sm:$0xf]
  %v46 = vld [vmem:[%s1 + $0x40] sm:$0xf]
  %v47 = vld [vmem:[%s1 + $0x44] sm:$0xf]
  %v48 = vld [vmem:[%s1 + $0x48] sm:$0xf]
  %v49 = vld [vmem:[%s1 + $0x4c] sm:$0xf]
  %v50 = vld [vmem:[%s1 + $0x50] sm:$0xf]
  %v51 = vld [vmem:[%s1 + $0x54] sm:$0xf]
  %v52 = vld [vmem:[%s1 + $0x58] sm:$0xf]
  %v53 = vld [vmem:[%s1 + $0x5c] sm:$0xf]
  %v54 = vld [vmem:[%s1 + $0x60] sm:$0xf]
  %v55 = vld [vmem:[%s1 + $0x64] sm:$0xf]
  %v56 = vld [vmem:[%s1 + $0x68] sm:$0xf]
  %v57 = vld [vmem:[%s1 + $0x6c] sm:$0xf]
  %v58 = vld [vmem:[%s1 + $0x70] sm:$0xf]
  %v59 = vld [vmem:[%s1 + $0x74] sm:$0xf]
  %v60 = vld [vmem:[%s1 + $0x78] sm:$0xf]
  %v61 = vld [vmem:[%s1 + $0x7c] sm:$0xf]
  %v62 = vld [vmem:[%s1 + $0x80] sm:$0xf]
  %v63 = vld [vmem:[%s1 + $0x84] sm:$0xf]
  %v64 = vld [vmem:[%s1 + $0x88] sm:$0xf]
  %v65 = vld [vmem:[%s1 + $0x8c] sm:$0xf]
  %v66 = vld [vmem:[%s2] sm:$0x1]
  %v68 = vlaneseq
  %v69 = vshrl.u32 %v68, 7
  %v70 = vsub.s32 0, %v69
  %v71 = vrot.slane %v66, %v70
  %v85 = vunpack.c.l.b16 %v18
  %v86 = vunpack.c.h.b16 %v18
  %v87 = vunpack.c.l.b16 %v19
  %v88 = vunpack.c.l.b16 %v20
  %v89 = vunpack.c.h.b16 %v20
  %v90 = vunpack.c.l.b16 %v21
  %v91 = vunpack.c.l.b16 %v22
  %v92 = vunpack.c.h.b16 %v22
  %v93 = vunpack.c.l.b16 %v23
  %v94 = vunpack.c.l.b16 %v24
  %v95 = vunpack.c.h.b16 %v24
  %v96 = vunpack.c.l.b16 %v25
  %v97 = vunpack.c.l.b16 %v26
  %v98 = vunpack.c.h.b16 %v26
  %v99 = vunpack.c.l.b16 %v27
  %v100 = vunpack.c.l.b16 %v28
  %v101 = vunpack.c.h.b16 %v28
  %v102 = vunpack.c.l.b16 %v29
  %v103 = vpack.c.b16 %v88, %v85
  %v104 = vpack.c.b16 %v89, %v86
  %v105 = vpack.c.b16 %v90, %v87
  %v106 = vpack.c.b16 %v94, %v91
  %v107 = vpack.c.b16 %v95, %v92
  %v108 = vpack.c.b16 %v96, %v93
  %v109 = vpack.c.b16 %v100, %v97
  %v110 = vpack.c.b16 %v101, %v98
  %v111 = vpack.c.b16 %v102, %v99
  %v154 = vunpack.c.l.b16 %v30
  %v155 = vunpack.c.l.b16 %v31
  %v156 = vunpack.c.l.b16 %v32
  %v157 = vunpack.c.l.b16 %v33
  %v158 = vunpack.c.l.b16 %v34
  %v159 = vunpack.c.l.b16 %v35
  %v160 = vunpack.c.l.b16 %v36
  %v161 = vunpack.c.l.b16 %v37
  %v162 = vunpack.c.l.b16 %v38
  %v163 = vunpack.c.l.b16 %v39
  %v164 = vunpack.c.l.b16 %v40
  %v165 = vunpack.c.l.b16 %v41
  %v166 = vunpack.c.l.b16 %v42
  %v167 = vunpack.c.l.b16 %v43
  %v168 = vunpack.c.l.b16 %v44
  %v169 = vunpack.c.l.b16 %v45
  %v170 = vunpack.c.l.b16 %v46
  %v171 = vunpack.c.l.b16 %v47
  %v172 = vunpack.c.l.b16 %v48
  %v173 = vunpack.c.l.b16 %v49
  %v174 = vunpack.c.l.b16 %v50
  %v175 = vunpack.c.l.b16 %v51
  %v176 = vunpack.c.l.b16 %v52
  %v177 = vunpack.c.l.b16 %v53
  %v178 = vunpack.c.l.b16 %v54
  %v179 = vunpack.c.l.b16 %v55
  %v180 = vunpack.c.l.b16 %v56
  %v181 = vunpack.c.l.b16 %v57
  %v182 = vunpack.c.l.b16 %v58
  %v183 = vunpack.c.l.b16 %v59
  %v184 = vunpack.c.l.b16 %v60
  %v185 = vunpack.c.l.b16 %v61
  %v186 = vunpack.c.l.b16 %v62
  %v187 = vunpack.c.l.b16 %v63
  %v188 = vunpack.c.l.b16 %v64
  %v189 = vunpack.c.l.b16 %v65
  %v190 = vpack.c.b16 %v155, %v154
  %v191 = vpack.c.b16 %v157, %v156
  %v192 = vpack.c.b16 %v159, %v158
  %v193 = vpack.c.b16 %v161, %v160
  %v194 = vpack.c.b16 %v163, %v162
  %v195 = vpack.c.b16 %v165, %v164
  %v196 = vpack.c.b16 %v167, %v166
  %v197 = vpack.c.b16 %v169, %v168
  %v198 = vpack.c.b16 %v171, %v170
  %v199 = vpack.c.b16 %v173, %v172
  %v200 = vpack.c.b16 %v175, %v174
  %v201 = vpack.c.b16 %v177, %v176
  %v202 = vpack.c.b16 %v179, %v178
  %v203 = vpack.c.b16 %v181, %v180
  %v204 = vpack.c.b16 %v183, %v182
  %v205 = vpack.c.b16 %v185, %v184
  %v206 = vpack.c.b16 %v187, %v186
  %v207 = vpack.c.b16 %v189, %v188
  %vm226 = vcmask 261120
  %v228 = vsel %vm226, %v105, 0
  %v231 = vsel %vm226, %v108, 0
  %v234 = vsel %vm226, %v111, 0
  %236 = vmatprep.subr.bf16.mxu0 0
  %237 = vmatpush1.bf16.msra.mxu0 %v190
  %238 = vmatprep.subr.bf16.mxu0 0
  %239 = vmatpush1.bf16.msra.mxu0 %v191
  %240 = vmatprep.subr.bf16.mxu0 0
  %241 = vmatpush1.bf16.msra.mxu0 %v192
  %242 = vmatprep.subr.bf16.mxu0 0
  %243 = vmatpush1.bf16.msra.mxu0 %v193
  %244 = vmatprep.subr.bf16.mxu0 0
  %245 = vmatpush1.bf16.msra.mxu0 %v194
  %246 = vmatprep.subr.bf16.mxu0 0
  %247 = vmatpush1.bf16.msra.mxu0 %v195
  %248 = vmatprep.subr.bf16.mxu0 0
  %249 = vmatpush1.bf16.msra.mxu0 %v196
  %250 = vmatprep.subr.bf16.mxu0 0
  %251 = vmatpush1.bf16.msra.mxu0 %v197
  %252 = vmatprep.subr.bf16.mxu0 0
  %253 = vmatpush1.bf16.msra.mxu0 %v198
  %254 = vmatprep.subr.bf16.mxu0 0
  %255 = vmatpush1.bf16.msra.mxu0 %v199
  %256 = vmatprep.subr.bf16.mxu0 0
  %257 = vmatpush1.bf16.msra.mxu0 %v200
  %258 = vmatprep.subr.bf16.mxu0 0
  %259 = vmatpush1.bf16.msra.mxu0 %v201
  %260 = vmatprep.subr.bf16.mxu0 0
  %261 = vmatpush1.bf16.msra.mxu0 %v202
  %262 = vmatprep.subr.bf16.mxu0 0
  %263 = vmatpush1.bf16.msra.mxu0 %v203
  %264 = vmatprep.subr.bf16.mxu0 0
  %265 = vmatpush1.bf16.msra.mxu0 %v204
  %266 = vmatprep.subr.bf16.mxu0 0
  %267 = vmatpush1.bf16.msra.mxu0 %v205
  %268 = vmatprep.mubr.bf16.mxu0 %v104
  %269 = vmatmul.mubr.bf16.gmra.mrb[0].mxu0 %v103
  %v270 = vpop.f32.mrb[0].mxu0
  %v271 = vadd.f32 %v71, %v270
  %v272 = vpop.f32.mrb[0].mxu0
  %v273 = vpop.f32.mrb[0].mxu0
  %v274 = vadd.f32 %v71, %v273
  %v275 = vpop.f32.mrb[0].mxu0
  %276 = vmatprep.mubr.bf16.mxu0 %v107
  %277 = vmatmul.mubr.bf16.gmra.mrb[0].mxu0 %v106
  %v278 = vpop.f32.mrb[0].mxu0
  %v279 = vadd.f32 %v71, %v278
  %v280 = vpop.f32.mrb[0].mxu0
  %v281 = vpop.f32.mrb[0].mxu0
  %v282 = vadd.f32 %v71, %v281
  %v283 = vpop.f32.mrb[0].mxu0
  %284 = vmatprep.mubr.bf16.mxu0 %v110
  %285 = vmatmul.mubr.bf16.gmra.mrb[0].mxu0 %v109
  %v286 = vpop.f32.mrb[0].mxu0
  %v287 = vadd.f32 %v71, %v286
  %v288 = vpop.f32.mrb[0].mxu0
  %v289 = vpop.f32.mrb[0].mxu0
  %v290 = vadd.f32 %v71, %v289
  %v291 = vpop.f32.mrb[0].mxu0
  %292 = vdwg.mxu0
  %293 = vmatprep.subr.bf16.mxu0 0
  %294 = vmatpush1.bf16.msra.mxu0 %v206
  %295 = vmatprep.subr.bf16.mxu0 0
  %296 = vmatpush1.bf16.msra.mxu0 %v207
  %297 = vmatprep.subr.bf16.mxu0 0
  %298 = vmatpush1.bf16.msra.mxu0 0
  %299 = vmatprep.subr.bf16.mxu0 0
  %300 = vmatpush1.bf16.msra.mxu0 0
  %301 = vmatprep.subr.bf16.mxu0 0
  %302 = vmatpush1.bf16.msra.mxu0 0
  %303 = vmatprep.subr.bf16.mxu0 0
  %304 = vmatpush1.bf16.msra.mxu0 0
  %305 = vmatprep.subr.bf16.mxu0 0
  %306 = vmatpush1.bf16.msra.mxu0 0
  %307 = vmatprep.subr.bf16.mxu0 0
  %308 = vmatpush1.bf16.msra.mxu0 0
  %309 = vmatprep.subr.bf16.mxu0 0
  %310 = vmatpush1.bf16.msra.mxu0 0
  %311 = vmatprep.subr.bf16.mxu0 0
  %312 = vmatpush1.bf16.msra.mxu0 0
  %313 = vmatprep.subr.bf16.mxu0 0
  %314 = vmatpush1.bf16.msra.mxu0 0
  %315 = vmatprep.subr.bf16.mxu0 0
  %316 = vmatpush1.bf16.msra.mxu0 0
  %317 = vmatprep.subr.bf16.mxu0 0
  %318 = vmatpush1.bf16.msra.mxu0 0
  %319 = vmatprep.subr.bf16.mxu0 0
  %320 = vmatpush1.bf16.msra.mxu0 0
  %321 = vmatprep.subr.bf16.mxu0 0
  %322 = vmatpush1.bf16.msra.mxu0 0
  %323 = vmatprep.subr.bf16.mxu0 0
  %324 = vmatpush1.bf16.msra.mxu0 0
  %325 = vmatprep.mubr.bf16.mxu0 0
  %326 = vmatmul.mubr.bf16.gmra.mrb[0].mxu0 %v228
  %v327 = vpop.f32.mrb[0].mxu0
  %v328 = vadd.f32 %v271, %v327
  %v329 = vpop.f32.mrb[0].mxu0
  %v330 = vpop.f32.mrb[0].mxu0
  %v331 = vadd.f32 %v274, %v330
  %v332 = vpop.f32.mrb[0].mxu0
  %333 = vmatprep.mubr.bf16.mxu0 0
  %334 = vmatmul.mubr.bf16.gmra.mrb[0].mxu0 %v231
  %v335 = vpop.f32.mrb[0].mxu0
  %v336 = vadd.f32 %v279, %v335
  %v337 = vpop.f32.mrb[0].mxu0
  %v338 = vpop.f32.mrb[0].mxu0
  %v339 = vadd.f32 %v282, %v338
  %v340 = vpop.f32.mrb[0].mxu0
  %341 = vmatprep.mubr.bf16.mxu0 0
  %342 = vmatmul.mubr.bf16.gmra.mrb[0].mxu0 %v234
  %v343 = vpop.f32.mrb[0].mxu0
  %v344 = vadd.f32 %v287, %v343
  %v345 = vpop.f32.mrb[0].mxu0
  %v346 = vpop.f32.mrb[0].mxu0
  %v347 = vadd.f32 %v290, %v346
  %v348 = vpop.f32.mrb[0].mxu0
  %349 = vdwg.mxu0
  %v350 = vmax.f32 %v328, 0.0
  %v351 = vmax.f32 %v331, 0.0
  %v352 = vmax.f32 %v336, 0.0
  %v353 = vmax.f32 %v339, 0.0
  %v354 = vmax.f32 %v344, 0.0
  %v355 = vmax.f32 %v347, 0.0
  %v356 = vld [vmem:[%s3] sm:$0xff]
  %v357 = vld [vmem:[%s3 + $0x8] sm:$0xff]
  %v358 = vld [vmem:[%s3 + $0x10] sm:$0xff]
  %v359 = vld [vmem:[%s3 + $0x18] sm:$0xff]
  %v360 = vld [vmem:[%s3 + $0x20] sm:$0xff]
  %v361 = vld [vmem:[%s3 + $0x28] sm:$0xff]
  %vm362 = vcmp.ge.u32.totalorder %v356, 2147483648
  %vm363 = vcmp.ge.u32.totalorder %v357, 2147483648
  %vm364 = vcmp.ge.u32.totalorder %v358, 2147483648
  %vm365 = vcmp.ge.u32.totalorder %v359, 2147483648
  %vm366 = vcmp.ge.u32.totalorder %v360, 2147483648
  %vm367 = vcmp.ge.u32.totalorder %v361, 2147483648
  %v368 = vmul.f32 %v350, 2.0
  %v369 = vmul.f32 %v351, 2.0
  %v370 = vmul.f32 %v352, 2.0
  %v371 = vmul.f32 %v353, 2.0
  %v372 = vmul.f32 %v354, 2.0
  %v373 = vmul.f32 %v355, 2.0
  %v374 = vsel %vm362, %v368, 0.0
  %v375 = vsel %vm363, %v369, 0.0
  %v376 = vsel %vm364, %v370, 0.0
  %v377 = vsel %vm365, %v371, 0.0
  %v378 = vsel %vm366, %v372, 0.0
  %v379 = vsel %vm367, %v373, 0.0
  %380 = vst [vmem:[%s4] sm:$0xff] %v374
  %381 = vst [vmem:[%s4 + $0x8] sm:$0xff] %v375
  %382 = vst [vmem:[%s4 + $0x10] sm:$0xff] %v376
  %383 = vst [vmem:[%s4 + $0x18] sm:$0xff] %v377
  %384 = vst [vmem:[%s4 + $0x20] sm:$0xff] %v378
  %385 = vst [vmem:[%s4 + $0x28] sm:$0xff] %v379
  // Predicated region
  $region18: #{probabilistic_alexnet_forward.18} parent=0 // pred_check
    _
  $region19: #{probabilistic_alexnet_forward.18} parent=0 // pred_check_branch
    %387 = sbr.rel (0) target = $region21
  $region20: #{probabilistic_alexnet_forward.18} parent=0 // pred_region
    _
  $region21: #{probabilistic_alexnet_forward.18} parent=0 // pred_fallthru
    _
  // Predicated region
  $region22: #{probabilistic_alexnet_forward.18} parent=0 // pred_check
    _
  $region23: #{probabilistic_alexnet_forward.18} parent=0 // pred_check_branch
    %389 = sbr.rel (0) target = $region25
  $region24: #{probabilistic_alexnet_forward.18} parent=0 // pred_region
    _
  $region25: #{probabilistic_alexnet_forward.18} parent=0 // pred_fallthru
    _

// kernel: probabilistic_alexnet_forward.20
$region0: #{probabilistic_alexnet_forward.20}
  #allocation0 [shape = 'u32[]', space=smem, size = 0x4, offset = 0x4, fixed_abs, tag = 'smem constant byte address 0x4 - core index']
  #allocation1 [shape = 'u32[144,128]{1,0:T(1,128)}', space=vmem, size = 0x12000, scoped, tag = 'internal scratch']
  %s0 = inlined_call_operand.vmem [shape: f32[8,32], index: 0, kind: input, shape index: {}]
  %s1 = inlined_call_operand.vmem [shape: f32[8,32], index: 1, kind: input, shape index: {}]
  %s2 = inlined_call_operand.vmem [shape: f32[8,32], index: 2, kind: input, shape index: {}]
  %s3 = inlined_call_operand.vmem [shape: f32[8,32], index: 3, kind: input, shape index: {}]
  %s4 = inlined_call_operand.vmem [shape: f32[8,32], index: 4, kind: input, shape index: {}]
  %s5 = inlined_call_operand.vmem [shape: f32[8,32], index: 5, kind: input, shape index: {}]
  %s6 = inlined_call_operand.vmem [shape: f32[8,32], index: 6, kind: input, shape index: {}]
  %s7 = inlined_call_operand.vmem [shape: f32[8,32], index: 7, kind: input, shape index: {}]
  %s8 = inlined_call_operand.vmem [shape: f32[8,32], index: 8, kind: input, shape index: {}]
  %s9 = inlined_call_operand.vmem [shape: f32[8,32], index: 9, kind: output, shape index: {}]
  %s10 = sld [smem:[#allocation0]]
  $region46: #{probabilistic_alexnet_forward.20} parent=0
    _
  %s12 = ssub.s32 1, %s10
  %s13 = scalar_select 0, %s12, %s10
  // Predicated region
  $region2: #{probabilistic_alexnet_forward.20} parent=0 // pred_check
    _
  $region3: #{probabilistic_alexnet_forward.20} parent=0 // pred_check_branch
    %15 = sbr.rel (0) target = $region5
  $region4: #{probabilistic_alexnet_forward.20} parent=0 // pred_region
    _
  $region5: #{probabilistic_alexnet_forward.20} parent=0 // pred_fallthru
    _
  // Predicated region
  $region6: #{probabilistic_alexnet_forward.20} parent=0 // pred_check
    _
  $region7: #{probabilistic_alexnet_forward.20} parent=0 // pred_check_branch
    %17 = sbr.rel (0) target = $region9
  $region8: #{probabilistic_alexnet_forward.20} parent=0 // pred_region
    _
  $region9: #{probabilistic_alexnet_forward.20} parent=0 // pred_fallthru
    _
  // Predicated region
  $region10: #{probabilistic_alexnet_forward.20} parent=0 // pred_check
    _
  $region11: #{probabilistic_alexnet_forward.20} parent=0 // pred_check_branch
    %19 = sbr.rel (0) target = $region13
  $region12: #{probabilistic_alexnet_forward.20} parent=0 // pred_region
    _
  $region13: #{probabilistic_alexnet_forward.20} parent=0 // pred_fallthru
    _
  // Predicated region
  $region14: #{probabilistic_alexnet_forward.20} parent=0 // pred_check
    _
  $region15: #{probabilistic_alexnet_forward.20} parent=0 // pred_check_branch
    %21 = sbr.rel (0) target = $region17
  $region16: #{probabilistic_alexnet_forward.20} parent=0 // pred_region
    _
  $region17: #{probabilistic_alexnet_forward.20} parent=0 // pred_fallthru
    _
  // Predicated region
  $region18: #{probabilistic_alexnet_forward.20} parent=0 // pred_check
    _
  $region19: #{probabilistic_alexnet_forward.20} parent=0 // pred_check_branch
    %23 = sbr.rel (0) target = $region21
  $region20: #{probabilistic_alexnet_forward.20} parent=0 // pred_region
    _
  $region21: #{probabilistic_alexnet_forward.20} parent=0 // pred_fallthru
    _
  // Predicated region
  $region22: #{probabilistic_alexnet_forward.20} parent=0 // pred_check
    _
  $region23: #{probabilistic_alexnet_forward.20} parent=0 // pred_check_branch
    %25 = sbr.rel (0) target = $region25
  $region24: #{probabilistic_alexnet_forward.20} parent=0 // pred_region
    _
  $region25: #{probabilistic_alexnet_forward.20} parent=0 // pred_fallthru
    _
  // Predicated region
  $region26: #{probabilistic_alexnet_forward.20} parent=0 // pred_check
    _
  $region27: #{probabilistic_alexnet_forward.20} parent=0 // pred_check_branch
    %27 = sbr.rel (0) target = $region29
  $region28: #{probabilistic_alexnet_forward.20} parent=0 // pred_region
    _
  $region29: #{probabilistic_alexnet_forward.20} parent=0 // pred_fallthru
    _
  // Predicated region
  $region30: #{probabilistic_alexnet_forward.20} parent=0 // pred_check
    _
  $region31: #{probabilistic_alexnet_forward.20} parent=0 // pred_check_branch
    %29 = sbr.rel (0) target = $region33
  $region32: #{probabilistic_alexnet_forward.20} parent=0 // pred_region
    _
  $region33: #{probabilistic_alexnet_forward.20} parent=0 // pred_fallthru
    _
  // Predicated region
  $region34: #{probabilistic_alexnet_forward.20} parent=0 // pred_check
    _
  $region35: #{probabilistic_alexnet_forward.20} parent=0 // pred_check_branch
    %31 = sbr.rel (0) target = $region37
  $region36: #{probabilistic_alexnet_forward.20} parent=0 // pred_region
    _
  $region37: #{probabilistic_alexnet_forward.20} parent=0 // pred_fallthru
    _
  %v32 = vld [vmem:[%s0] sm:$0xff]
  %v33 = vld [vmem:[%s1] sm:$0xff]
  %v34 = vld [vmem:[%s2] sm:$0xff]
  %v35 = vld [vmem:[%s3] sm:$0xff]
  %v36 = vld [vmem:[%s4] sm:$0xff]
  %v37 = vld [vmem:[%s5] sm:$0xff]
  %v38 = vld [vmem:[%s6] sm:$0xff]
  %v39 = vld [vmem:[%s7] sm:$0xff]
  %v40 = vld [vmem:[%s8] sm:$0xff]
  %v41 = vmax.f32 %v32, %v33
  %v42 = vmax.f32 %v34, %v35
  %v43 = vmax.f32 %v36, %v37
  %v44 = vmax.f32 %v38, %v39
  %v45 = vmax.f32 %v41, %v42
  %v46 = vmax.f32 %v43, %v44
  %v47 = vmax.f32 %v45, %v46
  %v48 = vmax.f32 %v47, %v40
  %vm49 = vcmask 261120
  %50 = vst.msk [vmem:[%s9] sm:$0xff] %vm49, %v48
  // Predicated region
  $region38: #{probabilistic_alexnet_forward.20} parent=0 // pred_check
    _
  $region39: #{probabilistic_alexnet_forward.20} parent=0 // pred_check_branch
    %52 = sbr.rel (0) target = $region41
  $region40: #{probabilistic_alexnet_forward.20} parent=0 // pred_region
    _
  $region41: #{probabilistic_alexnet_forward.20} parent=0 // pred_fallthru
    _
  // Predicated region
  $region42: #{probabilistic_alexnet_forward.20} parent=0 // pred_check
    _
  $region43: #{probabilistic_alexnet_forward.20} parent=0 // pred_check_branch
    %54 = sbr.rel (0) target = $region45
  $region44: #{probabilistic_alexnet_forward.20} parent=0 // pred_region
    _
  $region45: #{probabilistic_alexnet_forward.20} parent=0 // pred_fallthru
    _

// kernel: probabilistic_alexnet_forward.21
$region0: #{probabilistic_alexnet_forward.21}
  #allocation0 [shape = 'u32[]', space=smem, size = 0x4, offset = 0x4, fixed_abs, tag = 'smem constant byte address 0x4 - core index']
  #allocation1 [shape = 'u32[144,128]{1,0:T(1,128)}', space=vmem, size = 0x12000, scoped, tag = 'internal scratch']
  %s0 = inlined_call_operand.vmem [shape: bf16[16,96], index: 0, kind: input, shape index: {}]
  %s1 = inlined_call_operand.vmem [shape: bf16[96,128], index: 1, kind: input, shape index: {}]
  %s2 = inlined_call_operand.vmem [shape: f32[1,128], index: 2, kind: input, shape index: {}]
  %s3 = inlined_call_operand.vmem [shape: u32[16,128], index: 3, kind: input, shape index: {}]
  %s4 = inlined_call_operand.vmem [shape: f32[16,128], index: 4, kind: output, shape index: {}]
  %s5 = sld [smem:[#allocation0]]
  $region26: #{probabilistic_alexnet_forward.21} parent=0
    _
  %s7 = ssub.s32 1, %s5
  %s8 = scalar_select 0, %s7, %s5
  // Predicated region
  $region2: #{probabilistic_alexnet_forward.21} parent=0 // pred_check
    _
  $region3: #{probabilistic_alexnet_forward.21} parent=0 // pred_check_branch
    %10 = sbr.rel (0) target = $region5
  $region4: #{probabilistic_alexnet_forward.21} parent=0 // pred_region
    _
  $region5: #{probabilistic_alexnet_forward.21} parent=0 // pred_fallthru
    _
  // Predicated region
  $region6: #{probabilistic_alexnet_forward.21} parent=0 // pred_check
    _
  $region7: #{probabilistic_alexnet_forward.21} parent=0 // pred_check_branch
    %12 = sbr.rel (0) target = $region9
  $region8: #{probabilistic_alexnet_forward.21} parent=0 // pred_region
    _
  $region9: #{probabilistic_alexnet_forward.21} parent=0 // pred_fallthru
    _
  // Predicated region
  $region10: #{probabilistic_alexnet_forward.21} parent=0 // pred_check
    _
  $region11: #{probabilistic_alexnet_forward.21} parent=0 // pred_check_branch
    %14 = sbr.rel (0) target = $region13
  $region12: #{probabilistic_alexnet_forward.21} parent=0 // pred_region
    _
  $region13: #{probabilistic_alexnet_forward.21} parent=0 // pred_fallthru
    _
  // Predicated region
  $region14: #{probabilistic_alexnet_forward.21} parent=0 // pred_check
    _
  $region15: #{probabilistic_alexnet_forward.21} parent=0 // pred_check_branch
    %16 = sbr.rel (0) target = $region17
  $region16: #{probabilistic_alexnet_forward.21} parent=0 // pred_region
    _
  $region17: #{probabilistic_alexnet_forward.21} parent=0 // pred_fallthru
    _
  %v18 = vld [vmem:[%s0] sm:$0xf]
  %v19 = vld [vmem:[%s0 + $0x4] sm:$0xf]
  %v20 = vld [vmem:[%s1] sm:$0xf]
  %v21 = vld [vmem:[%s1 + $0x4] sm:$0xf]
  %v22 = vld [vmem:[%s1 + $0x8] sm:$0xf]
  %v23 = vld [vmem:[%s1 + $0xc] sm:$0xf]
  %v24 = vld [vmem:[%s1 + $0x10] sm:$0xf]
  %v25 = vld [vmem:[%s1 + $0x14] sm:$0xf]
  %v26 = vld [vmem:[%s1 + $0x18] sm:$0xf]
  %v27 = vld [vmem:[%s1 + $0x1c] sm:$0xf]
  %v28 = vld [vmem:[%s1 + $0x20] sm:$0xf]
  %v29 = vld [vmem:[%s1 + $0x24] sm:$0xf]
  %v30 = vld [vmem:[%s1 + $0x28] sm:$0xf]
  %v31 = vld [vmem:[%s1 + $0x2c] sm:$0xf]
  %v32 = vld [vmem:[%s2] sm:$0x1]
  %v34 = vlaneseq
  %v35 = vshrl.u32 %v34, 7
  %v36 = vsub.s32 0, %v35
  %v37 = vrot.slane %v32, %v36
  %v41 = vunpack.c.l.b16 %v18
  %v42 = vunpack.c.l.b16 %v19
  %v43 = vpack.c.b16 %v42, %v41
  %v56 = vunpack.c.l.b16 %v20
  %v57 = vunpack.c.l.b16 %v21
  %v58 = vunpack.c.l.b16 %v22
  %v59 = vunpack.c.l.b16 %v23
  %v60 = vunpack.c.l.b16 %v24
  %v61 = vunpack.c.l.b16 %v25
  %v62 = vunpack.c.l.b16 %v26
  %v63 = vunpack.c.l.b16 %v27
  %v64 = vunpack.c.l.b16 %v28
  %v65 = vunpack.c.l.b16 %v29
  %v66 = vunpack.c.l.b16 %v30
  %v67 = vunpack.c.l.b16 %v31
  %v68 = vpack.c.b16 %v57, %v56
  %v69 = vpack.c.b16 %v59, %v58
  %v70 = vpack.c.b16 %v61, %v60
  %v71 = vpack.c.b16 %v63, %v62
  %v72 = vpack.c.b16 %v65, %v64
  %v73 = vpack.c.b16 %v67, %v66
  %vm80 = vcmask 785408
  %v82 = vsel %vm80, %v43, 0
  %84 = vmatprep.subr.bf16.mxu0 0
  %85 = vmatpush1.bf16.msra.mxu0 %v68
  %86 = vmatprep.subr.bf16.mxu0 0
  %87 = vmatpush1.bf16.msra.mxu0 %v69
  %88 = vmatprep.subr.bf16.mxu0 0
  %89 = vmatpush1.bf16.msra.mxu0 %v70
  %90 = vmatprep.subr.bf16.mxu0 0
  %91 = vmatpush1.bf16.msra.mxu0 %v71
  %92 = vmatprep.subr.bf16.mxu0 0
  %93 = vmatpush1.bf16.msra.mxu0 %v72
  %94 = vmatprep.subr.bf16.mxu0 0
  %95 = vmatpush1.bf16.msra.mxu0 %v73
  %96 = vmatprep.subr.bf16.mxu0 0
  %97 = vmatpush1.bf16.msra.mxu0 0
  %98 = vmatprep.subr.bf16.mxu0 0
  %99 = vmatpush1.bf16.msra.mxu0 0
  %100 = vmatprep.subr.bf16.mxu0 0
  %101 = vmatpush1.bf16.msra.mxu0 0
  %102 = vmatprep.subr.bf16.mxu0 0
  %103 = vmatpush1.bf16.msra.mxu0 0
  %104 = vmatprep.subr.bf16.mxu0 0
  %105 = vmatpush1.bf16.msra.mxu0 0
  %106 = vmatprep.subr.bf16.mxu0 0
  %107 = vmatpush1.bf16.msra.mxu0 0
  %108 = vmatprep.subr.bf16.mxu0 0
  %109 = vmatpush1.bf16.msra.mxu0 0
  %110 = vmatprep.subr.bf16.mxu0 0
  %111 = vmatpush1.bf16.msra.mxu0 0
  %112 = vmatprep.subr.bf16.mxu0 0
  %113 = vmatpush1.bf16.msra.mxu0 0
  %114 = vmatprep.subr.bf16.mxu0 0
  %115 = vmatpush1.bf16.msra.mxu0 0
  %116 = vmatprep.mubr.bf16.mxu0 0
  %117 = vmatmul.mubr.bf16.gmra.mrb[0].mxu0 %v82
  %v118 = vpop.f32.mrb[0].mxu0
  %v119 = vadd.f32 %v37, %v118
  %v120 = vpop.f32.mrb[0].mxu0
  %v121 = vpop.f32.mrb[0].mxu0
  %v122 = vadd.f32 %v37, %v121
  %v123 = vpop.f32.mrb[0].mxu0
  %124 = vdwg.mxu0
  %v125 = vmax.f32 %v119, 0.0
  %v126 = vmax.f32 %v122, 0.0
  %v127 = vld [vmem:[%s3] sm:$0xff]
  %v128 = vld [vmem:[%s3 + $0x8] sm:$0xff]
  %vm129 = vcmp.ge.u32.totalorder %v127, 2147483648
  %vm130 = vcmp.ge.u32.totalorder %v128, 2147483648
  %v131 = vmul.f32 %v125, 2.0
  %v132 = vmul.f32 %v126, 2.0
  %v133 = vsel %vm129, %v131, 0.0
  %v134 = vsel %vm130, %v132, 0.0
  %135 = vst [vmem:[%s4] sm:$0xff] %v133
  %136 = vst [vmem:[%s4 + $0x8] sm:$0xff] %v134
  // Predicated region
  $region18: #{probabilistic_alexnet_forward.21} parent=0 // pred_check
    _
  $region19: #{probabilistic_alexnet_forward.21} parent=0 // pred_check_branch
    %138 = sbr.rel (0) target = $region21
  $region20: #{probabilistic_alexnet_forward.21} parent=0 // pred_region
    _
  $region21: #{probabilistic_alexnet_forward.21} parent=0 // pred_fallthru
    _
  // Predicated region
  $region22: #{probabilistic_alexnet_forward.21} parent=0 // pred_check
    _
  $region23: #{probabilistic_alexnet_forward.21} parent=0 // pred_check_branch
    %140 = sbr.rel (0) target = $region25
  $region24: #{probabilistic_alexnet_forward.21} parent=0 // pred_region
    _
  $region25: #{probabilistic_alexnet_forward.21} parent=0 // pred_fallthru
    _

// kernel: probabilistic_alexnet_forward.23
$region0: #{probabilistic_alexnet_forward.23}
  #allocation0 [shape = 'u32[]', space=smem, size = 0x4, offset = 0x4, fixed_abs, tag = 'smem constant byte address 0x4 - core index']
  #allocation1 [shape = 'u32[144,128]{1,0:T(1,128)}', space=vmem, size = 0x12000, scoped, tag = 'internal scratch']
  %s0 = inlined_call_operand.vmem [shape: bf16[16,64], index: 0, kind: input, shape index: {}]
  %s1 = inlined_call_operand.vmem [shape: bf16[64,128], index: 1, kind: input, shape index: {}]
  %s2 = inlined_call_operand.vmem [shape: f32[1,128], index: 2, kind: input, shape index: {}]
  %s3 = inlined_call_operand.vmem [shape: f32[16,128], index: 3, kind: output, shape index: {}]
  %s4 = sld [smem:[#allocation0]]
  $region22: #{probabilistic_alexnet_forward.23} parent=0
    _
  %s6 = ssub.s32 1, %s4
  %s7 = scalar_select 0, %s6, %s4
  // Predicated region
  $region2: #{probabilistic_alexnet_forward.23} parent=0 // pred_check
    _
  $region3: #{probabilistic_alexnet_forward.23} parent=0 // pred_check_branch
    %9 = sbr.rel (0) target = $region5
  $region4: #{probabilistic_alexnet_forward.23} parent=0 // pred_region
    _
  $region5: #{probabilistic_alexnet_forward.23} parent=0 // pred_fallthru
    _
  // Predicated region
  $region6: #{probabilistic_alexnet_forward.23} parent=0 // pred_check
    _
  $region7: #{probabilistic_alexnet_forward.23} parent=0 // pred_check_branch
    %11 = sbr.rel (0) target = $region9
  $region8: #{probabilistic_alexnet_forward.23} parent=0 // pred_region
    _
  $region9: #{probabilistic_alexnet_forward.23} parent=0 // pred_fallthru
    _
  // Predicated region
  $region10: #{probabilistic_alexnet_forward.23} parent=0 // pred_check
    _
  $region11: #{probabilistic_alexnet_forward.23} parent=0 // pred_check_branch
    %13 = sbr.rel (0) target = $region13
  $region12: #{probabilistic_alexnet_forward.23} parent=0 // pred_region
    _
  $region13: #{probabilistic_alexnet_forward.23} parent=0 // pred_fallthru
    _
  %v15 = vld [vmem:[%s0] sm:$0xf]
  %v16 = vld [vmem:[%s0 + $0x4] sm:$0xf]
  %v17 = vld [vmem:[%s1] sm:$0xf]
  %v18 = vld [vmem:[%s1 + $0x4] sm:$0xf]
  %v19 = vld [vmem:[%s1 + $0x8] sm:$0xf]
  %v20 = vld [vmem:[%s1 + $0xc] sm:$0xf]
  %v21 = vld [vmem:[%s1 + $0x10] sm:$0xf]
  %v22 = vld [vmem:[%s1 + $0x14] sm:$0xf]
  %v23 = vld [vmem:[%s1 + $0x18] sm:$0xf]
  %v24 = vld [vmem:[%s1 + $0x1c] sm:$0xf]
  %v25 = vld [vmem:[%s2] sm:$0x1]
  %v27 = vlaneseq
  %v28 = vshrl.u32 %v27, 7
  %v29 = vsub.s32 0, %v28
  %v30 = vrot.slane %v25, %v29
  %v34 = vunpack.c.l.b16 %v15
  %v35 = vunpack.c.l.b16 %v16
  %v36 = vpack.c.b16 %v35, %v34
  %v45 = vunpack.c.l.b16 %v17
  %v46 = vunpack.c.l.b16 %v18
  %v47 = vunpack.c.l.b16 %v19
  %v48 = vunpack.c.l.b16 %v20
  %v49 = vunpack.c.l.b16 %v21
  %v50 = vunpack.c.l.b16 %v22
  %v51 = vunpack.c.l.b16 %v23
  %v52 = vunpack.c.l.b16 %v24
  %v53 = vpack.c.b16 %v46, %v45
  %v54 = vpack.c.b16 %v48, %v47
  %v55 = vpack.c.b16 %v50, %v49
  %v56 = vpack.c.b16 %v52, %v51
  %vm61 = vcmask 523264
  %v63 = vsel %vm61, %v36, 0
  %65 = vmatprep.subr.bf16.mxu0 0
  %66 = vmatpush1.bf16.msra.mxu0 %v53
  %67 = vmatprep.subr.bf16.mxu0 0
  %68 = vmatpush1.bf16.msra.mxu0 %v54
  %69 = vmatprep.subr.bf16.mxu0 0
  %70 = vmatpush1.bf16.msra.mxu0 %v55
  %71 = vmatprep.subr.bf16.mxu0 0
  %72 = vmatpush1.bf16.msra.mxu0 %v56
  %73 = vmatprep.subr.bf16.mxu0 0
  %74 = vmatpush1.bf16.msra.mxu0 0
  %75 = vmatprep.subr.bf16.mxu0 0
  %76 = vmatpush1.bf16.msra.mxu0 0
  %77 = vmatprep.subr.bf16.mxu0 0
  %78 = vmatpush1.bf16.msra.mxu0 0
  %79 = vmatprep.subr.bf16.mxu0 0
  %80 = vmatpush1.bf16.msra.mxu0 0
  %81 = vmatprep.subr.bf16.mxu0 0
  %82 = vmatpush1.bf16.msra.mxu0 0
  %83 = vmatprep.subr.bf16.mxu0 0
  %84 = vmatpush1.bf16.msra.mxu0 0
  %85 = vmatprep.subr.bf16.mxu0 0
  %86 = vmatpush1.bf16.msra.mxu0 0
  %87 = vmatprep.subr.bf16.mxu0 0
  %88 = vmatpush1.bf16.msra.mxu0 0
  %89 = vmatprep.subr.bf16.mxu0 0
  %90 = vmatpush1.bf16.msra.mxu0 0
  %91 = vmatprep.subr.bf16.mxu0 0
  %92 = vmatpush1.bf16.msra.mxu0 0
  %93 = vmatprep.subr.bf16.mxu0 0
  %94 = vmatpush1.bf16.msra.mxu0 0
  %95 = vmatprep.subr.bf16.mxu0 0
  %96 = vmatpush1.bf16.msra.mxu0 0
  %97 = vmatprep.mubr.bf16.mxu0 0
  %98 = vmatmul.mubr.bf16.gmra.mrb[0].mxu0 %v63
  %v99 = vpop.f32.mrb[0].mxu0
  %v100 = vadd.f32 %v30, %v99
  %v101 = vpop.f32.mrb[0].mxu0
  %v102 = vpop.f32.mrb[0].mxu0
  %v103 = vadd.f32 %v30, %v102
  %v104 = vpop.f32.mrb[0].mxu0
  %105 = vdwg.mxu0
  %106 = vst [vmem:[%s3] sm:$0xff] %v100
  %107 = vst [vmem:[%s3 + $0x8] sm:$0xff] %v103
  // Predicated region
  $region14: #{probabilistic_alexnet_forward.23} parent=0 // pred_check
    _
  $region15: #{probabilistic_alexnet_forward.23} parent=0 // pred_check_branch
    %109 = sbr.rel (0) target = $region17
  $region16: #{probabilistic_alexnet_forward.23} parent=0 // pred_region
    _
  $region17: #{probabilistic_alexnet_forward.23} parent=0 // pred_fallthru
    _
  // Predicated region
  $region18: #{probabilistic_alexnet_forward.23} parent=0 // pred_check
    _
  $region19: #{probabilistic_alexnet_forward.23} parent=0 // pred_check_branch
    %111 = sbr.rel (0) target = $region21
  $region20: #{probabilistic_alexnet_forward.23} parent=0 // pred_region
    _
  $region21: #{probabilistic_alexnet_forward.23} parent=0 // pred_fallthru
    _

// kernel: probabilistic_alexnet_forward.22
$region0: #{probabilistic_alexnet_forward.22}
  #allocation0 [shape = 'u32[]', space=smem, size = 0x4, offset = 0x4, fixed_abs, tag = 'smem constant byte address 0x4 - core index']
  #allocation1 [shape = 'u32[144,128]{1,0:T(1,128)}', space=vmem, size = 0x12000, scoped, tag = 'internal scratch']
  %s0 = inlined_call_operand.vmem [shape: bf16[16,64], index: 0, kind: input, shape index: {}]
  %s1 = inlined_call_operand.vmem [shape: bf16[64,128], index: 1, kind: input, shape index: {}]
  %s2 = inlined_call_operand.vmem [shape: f32[1,128], index: 2, kind: input, shape index: {}]
  %s3 = inlined_call_operand.vmem [shape: u32[16,128], index: 3, kind: input, shape index: {}]
  %s4 = inlined_call_operand.vmem [shape: f32[16,128], index: 4, kind: output, shape index: {}]
  %s5 = sld [smem:[#allocation0]]
  $region26: #{probabilistic_alexnet_forward.22} parent=0
    _
  %s7 = ssub.s32 1, %s5
  %s8 = scalar_select 0, %s7, %s5
  // Predicated region
  $region2: #{probabilistic_alexnet_forward.22} parent=0 // pred_check
    _
  $region3: #{probabilistic_alexnet_forward.22} parent=0 // pred_check_branch
    %10 = sbr.rel (0) target = $region5
  $region4: #{probabilistic_alexnet_forward.22} parent=0 // pred_region
    _
  $region5: #{probabilistic_alexnet_forward.22} parent=0 // pred_fallthru
    _
  // Predicated region
  $region6: #{probabilistic_alexnet_forward.22} parent=0 // pred_check
    _
  $region7: #{probabilistic_alexnet_forward.22} parent=0 // pred_check_branch
    %12 = sbr.rel (0) target = $region9
  $region8: #{probabilistic_alexnet_forward.22} parent=0 // pred_region
    _
  $region9: #{probabilistic_alexnet_forward.22} parent=0 // pred_fallthru
    _
  // Predicated region
  $region10: #{probabilistic_alexnet_forward.22} parent=0 // pred_check
    _
  $region11: #{probabilistic_alexnet_forward.22} parent=0 // pred_check_branch
    %14 = sbr.rel (0) target = $region13
  $region12: #{probabilistic_alexnet_forward.22} parent=0 // pred_region
    _
  $region13: #{probabilistic_alexnet_forward.22} parent=0 // pred_fallthru
    _
  // Predicated region
  $region14: #{probabilistic_alexnet_forward.22} parent=0 // pred_check
    _
  $region15: #{probabilistic_alexnet_forward.22} parent=0 // pred_check_branch
    %16 = sbr.rel (0) target = $region17
  $region16: #{probabilistic_alexnet_forward.22} parent=0 // pred_region
    _
  $region17: #{probabilistic_alexnet_forward.22} parent=0 // pred_fallthru
    _
  %v18 = vld [vmem:[%s0] sm:$0xf]
  %v19 = vld [vmem:[%s0 + $0x4] sm:$0xf]
  %v20 = vld [vmem:[%s1] sm:$0xf]
  %v21 = vld [vmem:[%s1 + $0x4] sm:$0xf]
  %v22 = vld [vmem:[%s1 + $0x8] sm:$0xf]
  %v23 = vld [vmem:[%s1 + $0xc] sm:$0xf]
  %v24 = vld [vmem:[%s1 + $0x10] sm:$0xf]
  %v25 = vld [vmem:[%s1 + $0x14] sm:$0xf]
  %v26 = vld [vmem:[%s1 + $0x18] sm:$0xf]
  %v27 = vld [vmem:[%s1 + $0x1c] sm:$0xf]
  %v28 = vld [vmem:[%s2] sm:$0x1]
  %v30 = vlaneseq
  %v31 = vshrl.u32 %v30, 7
  %v32 = vsub.s32 0, %v31
  %v33 = vrot.slane %v28, %v32
  %v37 = vunpack.c.l.b16 %v18
  %v38 = vunpack.c.l.b16 %v19
  %v39 = vpack.c.b16 %v38, %v37
  %v48 = vunpack.c.l.b16 %v20
  %v49 = vunpack.c.l.b16 %v21
  %v50 = vunpack.c.l.b16 %v22
  %v51 = vunpack.c.l.b16 %v23
  %v52 = vunpack.c.l.b16 %v24
  %v53 = vunpack.c.l.b16 %v25
  %v54 = vunpack.c.l.b16 %v26
  %v55 = vunpack.c.l.b16 %v27
  %v56 = vpack.c.b16 %v49, %v48
  %v57 = vpack.c.b16 %v51, %v50
  %v58 = vpack.c.b16 %v53, %v52
  %v59 = vpack.c.b16 %v55, %v54
  %vm64 = vcmask 523264
  %v66 = vsel %vm64, %v39, 0
  %68 = vmatprep.subr.bf16.mxu0 0
  %69 = vmatpush1.bf16.msra.mxu0 %v56
  %70 = vmatprep.subr.bf16.mxu0 0
  %71 = vmatpush1.bf16.msra.mxu0 %v57
  %72 = vmatprep.subr.bf16.mxu0 0
  %73 = vmatpush1.bf16.msra.mxu0 %v58
  %74 = vmatprep.subr.bf16.mxu0 0
  %75 = vmatpush1.bf16.msra.mxu0 %v59
  %76 = vmatprep.subr.bf16.mxu0 0
  %77 = vmatpush1.bf16.msra.mxu0 0
  %78 = vmatprep.subr.bf16.mxu0 0
  %79 = vmatpush1.bf16.msra.mxu0 0
  %80 = vmatprep.subr.bf16.mxu0 0
  %81 = vmatpush1.bf16.msra.mxu0 0
  %82 = vmatprep.subr.bf16.mxu0 0
  %83 = vmatpush1.bf16.msra.mxu0 0
  %84 = vmatprep.subr.bf16.mxu0 0
  %85 = vmatpush1.bf16.msra.mxu0 0
  %86 = vmatprep.subr.bf16.mxu0 0
  %87 = vmatpush1.bf16.msra.mxu0 0
  %88 = vmatprep.subr.bf16.mxu0 0
  %89 = vmatpush1.bf16.msra.mxu0 0
  %90 = vmatprep.subr.bf16.mxu0 0
  %91 = vmatpush1.bf16.msra.mxu0 0
  %92 = vmatprep.subr.bf16.mxu0 0
  %93 = vmatpush1.bf16.msra.mxu0 0
  %94 = vmatprep.subr.bf16.mxu0 0
  %95 = vmatpush1.bf16.msra.mxu0 0
  %96 = vmatprep.subr.bf16.mxu0 0
  %97 = vmatpush1.bf16.msra.mxu0 0
  %98 = vmatprep.subr.bf16.mxu0 0
  %99 = vmatpush1.bf16.msra.mxu0 0
  %100 = vmatprep.mubr.bf16.mxu0 0
  %101 = vmatmul.mubr.bf16.gmra.mrb[0].mxu0 %v66
  %v102 = vpop.f32.mrb[0].mxu0
  %v103 = vadd.f32 %v33, %v102
  %v104 = vpop.f32.mrb[0].mxu0
  %v105 = vpop.f32.mrb[0].mxu0
  %v106 = vadd.f32 %v33, %v105
  %v107 = vpop.f32.mrb[0].mxu0
  %108 = vdwg.mxu0
  %v109 = vmax.f32 %v103, 0.0
  %v110 = vmax.f32 %v106, 0.0
  %v111 = vld [vmem:[%s3] sm:$0xff]
  %v112 = vld [vmem:[%s3 + $0x8] sm:$0xff]
  %vm113 = vcmp.ge.u32.totalorder %v111, 2147483648
  %vm114 = vcmp.ge.u32.totalorder %v112, 2147483648
  %v115 = vmul.f32 %v109, 2.0
  %v116 = vmul.f32 %v110, 2.0
  %v117 = vsel %vm113, %v115, 0.0
  %v118 = vsel %vm114, %v116, 0.0
  %119 = vst [vmem:[%s4] sm:$0xff] %v117
  %120 = vst [vmem:[%s4 + $0x8] sm:$0xff] %v118
  // Predicated region
  $region18: #{probabilistic_alexnet_forward.22} parent=0 // pred_check
    _
  $region19: #{probabilistic_alexnet_forward.22} parent=0 // pred_check_branch
    %122 = sbr.rel (0) target = $region21
  $region20: #{probabilistic_alexnet_forward.22} parent=0 // pred_region
    _
  $region21: #{probabilistic_alexnet_forward.22} parent=0 // pred_fallthru
    _
  // Predicated region
  $region22: #{probabilistic_alexnet_forward.22} parent=0 // pred_check
    _
  $region23: #{probabilistic_alexnet_forward.22} parent=0 // pred_check_branch
    %124 = sbr.rel (0) target = $region25
  $region24: #{probabilistic_alexnet_forward.22} parent=0 // pred_region
    _
  $region25: #{probabilistic_alexnet_forward.22} parent=0 // pred_fallthru
    _

</llo_original>
